<compile_context>
chip_gen: v7x
topology: tpu7x:2x2x1
jax: 0.10.0
libtpu: 0.0.40
codegen_flags: <defaults>
</compile_context>

<pallas_src>
import functools

import jax
import jax.numpy as jnp
from jax import lax
from jax.experimental import pallas as pl
from jax.experimental.pallas import tpu as pltpu

BN_EPS = 1e-5
RELU_CAP = 20.0  # the module's ReLU is Hardtanh(0, 20)

# 3x3 tap offsets in (kh, kw) order: tap index t = kh*3 + kw, (dh, dw) = (kh-1, kw-1)
_OFFSETS = tuple((dh, dw) for dh in (-1, 0, 1) for dw in (-1, 0, 1))


# ------------------------------ Pallas kernel -------------------------------

def basic_block_kernel(x_ref, masks_ref, w1_ref, b1_ref, w2_ref, b2_ref, o_ref,
                       *, H, W):
    """Fused BasicBlock forward for a block of `nb` images.

    x_ref    : (nb, Cin, H*W)      VMEM  input, spatially flattened (lane-dense)
    masks_ref: (9, H*W)            VMEM  precomputed per-tap zero-pad validity masks
    w1_ref   : (9*Cin, Cout, 1)    VMEM  conv1 weights (BN1 scale folded), row k = t*Cin+ci
    b1_ref   : (Cout, 1)           VMEM  folded BN1 bias
    w2_ref   : (9*Cout, Cout, 1)   VMEM  conv2 weights (BN2 scale folded)
    b2_ref   : (Cout, 1)           VMEM  folded BN2 bias
    o_ref    : (nb, Cout, H*W)     VMEM  output
    """
    HW = H * W
    nb = x_ref.shape[0]
    cout = b1_ref.shape[0]

    x = x_ref[...]          # (nb, Cin, HW) f32
    masks = masks_ref[...]  # (9, HW) f32
    w1 = w1_ref[...]        # (9*Cin, Cout, 1)
    w2 = w2_ref[...]        # (9*Cout, Cout, 1)
    b1 = b1_ref[...]        # (Cout, 1)
    b2 = b2_ref[...]        # (Cout, 1)

    def conv3x3_bn(act, w_cols, bias):
        """3x3 'same' conv with zero pad + folded-BN bias: (C, HW) -> (Cout, HW).

        Tap-outer structure: per tap one roll (XLU) + one mask multiply, then
        per input channel a single broadcasted multiply-add onto the full
        (Cout, HW) accumulator (weight column broadcast over lanes, tap row
        broadcast over the Cout sublanes).
        """
        c_in = act.shape[0]
        acc = jnp.broadcast_to(bias, (cout, HW))            # bias-initialized accumulator
        for t, (dh, dw) in enumerate(_OFFSETS):
            s = dh * W + dw
            # want y[i] = act[i + s]; roll(a, k)[i] == a[i - k]  =>  k = -s (mod HW)
            rolled = act if s == 0 else pltpu.roll(act, (-s) % HW, 1)
            # zero the out-of-image taps (also kills the circular wrap of the roll)
            shifted = rolled if (dh == 0 and dw == 0) else rolled * masks[t:t + 1, :]
            for ci in range(c_in):
                # (1, HW) tap row  *  (Cout, 1) weight column  ->  (Cout, HW)
                acc = acc + shifted[ci:ci + 1, :] * w_cols[t * c_in + ci]
        return acc

    outs = []
    for n in range(nb):
        xn = x[n]                                            # (Cin, HW)
        # conv1 + folded BN1 + Hardtanh(0, 20) -- kept as a value, no VMEM scratch
        a1 = jnp.clip(conv3x3_bn(xn, w1, b1), 0.0, RELU_CAP)
        # conv2 + folded BN2 + identity residual + Hardtanh(0, 20)
        y = conv3x3_bn(a1, w2, b2) + xn                      # downsample=None -> identity
        outs.append(jnp.clip(y, 0.0, RELU_CAP))
    o_ref[...] = jnp.stack(outs, axis=0)                     # single full-block store


# ------------------------------ glue wrapper --------------------------------

def _fold_bn(gamma, beta, mean, var):
    scale = gamma / jnp.sqrt(var + BN_EPS)
    bias = beta - mean * scale
    return scale, bias


def _make_masks(H, W):
    """(9, H*W) f32 validity masks for the 3x3 'same' conv on the flat spatial axis."""
    pos = jnp.arange(H * W, dtype=jnp.int32)
    hh = pos // W
    ww = pos % W
    rows = []
    for dh, dw in _OFFSETS:
        valid = (((hh + dh) >= 0) & ((hh + dh) < H) &
                 ((ww + dw) >= 0) & ((ww + dw) < W))
        rows.append(valid.astype(jnp.float32))
    return jnp.stack(rows, axis=0)


def basic_block_forward(x_nchw, params, *, images_per_block=None):
    """BasicBlock.forward for NCHW input (PyTorch convention)."""
    N, Cin, H, W = x_nchw.shape
    HW = H * W
    Cout = params["w1"].shape[-1]
    assert params["w1"].shape == (3, 3, Cin, Cout)
    assert Cin == Cout, \
        "identity residual requires inplanes == planes (stride=1, no downsample)"
    # TODO(synk): stride>1 / downsample path of BasicBlock is not implemented here.

    # Whole batch per grid step by default (fewest, fullest steps -> least overhead
    # on v5e/v6e).  On v7x pass images_per_block=N//2 so the "parallel" batch axis
    # is split across its two TensorCores.
    nb = N if images_per_block is None else images_per_block
    assert N % nb == 0, "images_per_block must divide the batch"
    grid = (N // nb,)

    s1, b1 = _fold_bn(params["gamma1"], params["beta1"], params["mean1"], params["var1"])
    s2, b2 = _fold_bn(params["gamma2"], params["beta2"], params["mean2"], params["var2"])

    # Fold the BN scale into the conv weights (conv is linear); keep only the bias.
    # HWIO (3,3,C,Cout) -> (9*C, Cout, 1): row k = (kh*3+kw)*C + ci, one (Cout,1)
    # weight column per (tap, input-channel) pair.
    w1_cols = (params["w1"] * s1).astype(jnp.float32).reshape(9 * Cin, Cout)[..., None]
    w2_cols = (params["w2"] * s2).astype(jnp.float32).reshape(9 * Cout, Cout)[..., None]
    b1_col = b1.astype(jnp.float32).reshape(Cout, 1)
    b2_col = b2.astype(jnp.float32).reshape(Cout, 1)
    masks = _make_masks(H, W)                                   # host-precomputed

    # NCHW -> (N, C, H*W): pure reshape, no transpose / extra HBM pass.
    x_flat = x_nchw.astype(jnp.float32).reshape(N, Cin, HW)

    kernel = functools.partial(basic_block_kernel, H=H, W=W)
    out = pl.pallas_call(
        kernel,
        grid=grid,
        in_specs=[
            pl.BlockSpec((nb, Cin, HW), lambda g: (g, 0, 0)),         # activations
            pl.BlockSpec((9, HW), lambda g: (0, 0)),                  # pad masks
            pl.BlockSpec((9 * Cin, Cout, 1), lambda g: (0, 0, 0)),    # conv1 weight cols
            pl.BlockSpec((Cout, 1), lambda g: (0, 0)),                # bn1 bias
            pl.BlockSpec((9 * Cout, Cout, 1), lambda g: (0, 0, 0)),   # conv2 weight cols
            pl.BlockSpec((Cout, 1), lambda g: (0, 0)),                # bn2 bias
        ],
        out_specs=pl.BlockSpec((nb, Cout, HW), lambda g: (g, 0, 0)),
        out_shape=jax.ShapeDtypeStruct((N, Cout, HW), jnp.float32),
        # Batch axis stays 'parallel' so v7x can shard grid steps over its 2 TCs.
        compiler_params=pltpu.CompilerParams(dimension_semantics=("parallel",)),
    )(x_flat, masks, w1_cols, b1_col, w2_cols, b2_col)
    return out.reshape(N, Cout, H, W)


# ------------------------------ reference check -----------------------------

def _reference(x_nchw, params):
    x = jnp.transpose(x_nchw, (0, 2, 3, 1)).astype(jnp.float32)
    dn = ("NHWC", "HWIO", "NHWC")
    s1, b1 = _fold_bn(params["gamma1"], params["beta1"], params["mean1"], params["var1"])
    s2, b2 = _fold_bn(params["gamma2"], params["beta2"], params["mean2"], params["var2"])
    out = lax.conv_general_dilated(x, params["w1"], (1, 1), "SAME",
                                   dimension_numbers=dn,
                                   precision=lax.Precision.HIGHEST)
    out = jnp.clip(out * s1 + b1, 0.0, RELU_CAP)
    out = lax.conv_general_dilated(out, params["w2"], (1, 1), "SAME",
                                   dimension_numbers=dn,
                                   precision=lax.Precision.HIGHEST)
    out = jnp.clip(out * s2 + b2 + x, 0.0, RELU_CAP)
    return jnp.transpose(out, (0, 3, 1, 2))


# ---------------------------------- main -------------------------------------

if __name__ == "__main__":
    inplanes = planes = 4   # BasicBlock(inplanes=4, planes=4, stride=1)
    N, H, W = 2, 16, 16

    key = jax.random.PRNGKey(0)
    ks = jax.random.split(key, 11)

    params = {
        # conv weights in HWIO
        "w1": 0.1 * jax.random.normal(ks[0], (3, 3, inplanes, planes), jnp.float32),
        "w2": 0.1 * jax.random.normal(ks[1], (3, 3, planes, planes), jnp.float32),
        # bn1
        "gamma1": 1.0 + 0.1 * jax.random.normal(ks[2], (planes,), jnp.float32),
        "beta1": 0.1 * jax.random.normal(ks[3], (planes,), jnp.float32),
        "mean1": 0.1 * jax.random.normal(ks[4], (planes,), jnp.float32),
        "var1": 0.5 + jnp.abs(jax.random.normal(ks[5], (planes,), jnp.float32)),
        # bn2
        "gamma2": 1.0 + 0.1 * jax.random.normal(ks[6], (planes,), jnp.float32),
        "beta2": 0.1 * jax.random.normal(ks[7], (planes,), jnp.float32),
        "mean2": 0.1 * jax.random.normal(ks[8], (planes,), jnp.float32),
        "var2": 0.5 + jnp.abs(jax.random.normal(ks[9], (planes,), jnp.float32)),
    }

    x = jax.random.normal(ks[10], (N, inplanes, H, W), jnp.float32)  # NCHW input

    out = jax.block_until_ready(basic_block_forward(x, params))
    ref = jax.block_until_ready(_reference(x, params))

    assert out.shape == (N, planes, H, W), out.shape
    max_err = float(jnp.max(jnp.abs(out - ref)))
    # All-f32 VPU math in the kernel vs. HIGHEST-precision XLA conv reference:
    # differences are summation-order / BN-fold rounding only (~1e-5).
    assert jnp.allclose(out, ref, atol=1e-3, rtol=1e-3), max_err

    print("KERNEL_OK")
</pallas_src>

<mosaic_0001>
module attributes {stable_mosaic.version = 11 : i64} {
  func.func @basic_block_kernel(%arg0: i32, %arg1: memref<2x4x256xf32, #tpu.memory_space<vmem>>, %arg2: memref<9x256xf32, #tpu.memory_space<vmem>>, %arg3: memref<36x4x1xf32, #tpu.memory_space<vmem>>, %arg4: memref<4x1xf32, #tpu.memory_space<vmem>>, %arg5: memref<36x4x1xf32, #tpu.memory_space<vmem>>, %arg6: memref<4x1xf32, #tpu.memory_space<vmem>>, %arg7: memref<2x4x256xf32, #tpu.memory_space<vmem>>) attributes {dimension_semantics = [#tpu.dimension_semantics<parallel>], iteration_bounds = array<i64: 1>, scalar_prefetch = 0 : i64, scratch_operands = 0 : i64, tpu.core_type = #tpu.core_type<tc>, window_params = [{transform_indices = @transform_0, window_bounds = array<i64: 2, 4, 256>}, {pipeline_mode = #tpu.pipeline_mode<synchronous>, transform_indices = @transform_1, window_bounds = array<i64: 9, 256>}, {pipeline_mode = #tpu.pipeline_mode<synchronous>, transform_indices = @transform_2, window_bounds = array<i64: 36, 4, 1>}, {pipeline_mode = #tpu.pipeline_mode<synchronous>, transform_indices = @transform_3, window_bounds = array<i64: 4, 1>}, {pipeline_mode = #tpu.pipeline_mode<synchronous>, transform_indices = @transform_4, window_bounds = array<i64: 36, 4, 1>}, {pipeline_mode = #tpu.pipeline_mode<synchronous>, transform_indices = @transform_5, window_bounds = array<i64: 4, 1>}, {transform_indices = @transform_6, window_bounds = array<i64: 2, 4, 256>}]} {
    %c0 = arith.constant 0 : index
    %c0_0 = arith.constant 0 : index
    %c0_1 = arith.constant 0 : index
    %0 = vector.load %arg1[%c0, %c0_0, %c0_1] : memref<2x4x256xf32, #tpu.memory_space<vmem>>, vector<2x4x256xf32>
    %c0_2 = arith.constant 0 : index
    %c0_3 = arith.constant 0 : index
    %1 = vector.load %arg2[%c0_2, %c0_3] : memref<9x256xf32, #tpu.memory_space<vmem>>, vector<9x256xf32>
    %c0_4 = arith.constant 0 : index
    %c0_5 = arith.constant 0 : index
    %c0_6 = arith.constant 0 : index
    %2 = vector.load %arg3[%c0_4, %c0_5, %c0_6] : memref<36x4x1xf32, #tpu.memory_space<vmem>>, vector<36x4x1xf32>
    %c0_7 = arith.constant 0 : index
    %c0_8 = arith.constant 0 : index
    %c0_9 = arith.constant 0 : index
    %3 = vector.load %arg5[%c0_7, %c0_8, %c0_9] : memref<36x4x1xf32, #tpu.memory_space<vmem>>, vector<36x4x1xf32>
    %c0_10 = arith.constant 0 : index
    %c0_11 = arith.constant 0 : index
    %4 = vector.load %arg4[%c0_10, %c0_11] : memref<4x1xf32, #tpu.memory_space<vmem>>, vector<4x1xf32>
    %c0_12 = arith.constant 0 : index
    %c0_13 = arith.constant 0 : index
    %5 = vector.load %arg6[%c0_12, %c0_13] : memref<4x1xf32, #tpu.memory_space<vmem>>, vector<4x1xf32>
    %6 = vector.extract_strided_slice %0 {offsets = [0, 0, 0], sizes = [1, 4, 256], strides = [1, 1, 1]} : vector<2x4x256xf32> to vector<1x4x256xf32>
    %7 = vector.shape_cast %6 : vector<1x4x256xf32> to vector<4x256xf32>
    %8 = vector.shape_cast %4 : vector<4x1xf32> to vector<4x1xf32>
    %9 = vector.broadcast %8 : vector<4x1xf32> to vector<4x256xf32>
    %c17_i32 = arith.constant 17 : i32
    %10 = tpu.dynamic_rotate %7 by %c17_i32 dim 1 : vector<4x256xf32>, i32 -> vector<4x256xf32>
    %11 = vector.extract_strided_slice %1 {offsets = [0, 0], sizes = [1, 256], strides = [1, 1]} : vector<9x256xf32> to vector<1x256xf32>
    %12 = vector.broadcast %11 : vector<1x256xf32> to vector<4x256xf32>
    %13 = arith.mulf %10, %12 : vector<4x256xf32>
    %14 = vector.extract_strided_slice %13 {offsets = [0, 0], sizes = [1, 256], strides = [1, 1]} : vector<4x256xf32> to vector<1x256xf32>
    %15 = vector.extract_strided_slice %2 {offsets = [0, 0, 0], sizes = [1, 4, 1], strides = [1, 1, 1]} : vector<36x4x1xf32> to vector<1x4x1xf32>
    %16 = vector.shape_cast %15 : vector<1x4x1xf32> to vector<4x1xf32>
    %17 = vector.broadcast %14 : vector<1x256xf32> to vector<4x256xf32>
    %18 = vector.broadcast %16 : vector<4x1xf32> to vector<4x256xf32>
    %19 = arith.mulf %17, %18 : vector<4x256xf32>
    %20 = arith.addf %9, %19 : vector<4x256xf32>
    %21 = vector.extract_strided_slice %13 {offsets = [1, 0], sizes = [1, 256], strides = [1, 1]} : vector<4x256xf32> to vector<1x256xf32>
    %22 = vector.extract_strided_slice %2 {offsets = [1, 0, 0], sizes = [1, 4, 1], strides = [1, 1, 1]} : vector<36x4x1xf32> to vector<1x4x1xf32>
    %23 = vector.shape_cast %22 : vector<1x4x1xf32> to vector<4x1xf32>
    %24 = vector.broadcast %21 : vector<1x256xf32> to vector<4x256xf32>
    %25 = vector.broadcast %23 : vector<4x1xf32> to vector<4x256xf32>
    %26 = arith.mulf %24, %25 : vector<4x256xf32>
    %27 = arith.addf %20, %26 : vector<4x256xf32>
    %28 = vector.extract_strided_slice %13 {offsets = [2, 0], sizes = [1, 256], strides = [1, 1]} : vector<4x256xf32> to vector<1x256xf32>
    %29 = vector.extract_strided_slice %2 {offsets = [2, 0, 0], sizes = [1, 4, 1], strides = [1, 1, 1]} : vector<36x4x1xf32> to vector<1x4x1xf32>
    %30 = vector.shape_cast %29 : vector<1x4x1xf32> to vector<4x1xf32>
    %31 = vector.broadcast %28 : vector<1x256xf32> to vector<4x256xf32>
    %32 = vector.broadcast %30 : vector<4x1xf32> to vector<4x256xf32>
    %33 = arith.mulf %31, %32 : vector<4x256xf32>
    %34 = arith.addf %27, %33 : vector<4x256xf32>
    %35 = vector.extract_strided_slice %13 {offsets = [3, 0], sizes = [1, 256], strides = [1, 1]} : vector<4x256xf32> to vector<1x256xf32>
    %36 = vector.extract_strided_slice %2 {offsets = [3, 0, 0], sizes = [1, 4, 1], strides = [1, 1, 1]} : vector<36x4x1xf32> to vector<1x4x1xf32>
    %37 = vector.shape_cast %36 : vector<1x4x1xf32> to vector<4x1xf32>
    %38 = vector.broadcast %35 : vector<1x256xf32> to vector<4x256xf32>
    %39 = vector.broadcast %37 : vector<4x1xf32> to vector<4x256xf32>
    %40 = arith.mulf %38, %39 : vector<4x256xf32>
    %41 = arith.addf %34, %40 : vector<4x256xf32>
    %c16_i32 = arith.constant 16 : i32
    %42 = tpu.dynamic_rotate %7 by %c16_i32 dim 1 : vector<4x256xf32>, i32 -> vector<4x256xf32>
    %43 = vector.extract_strided_slice %1 {offsets = [1, 0], sizes = [1, 256], strides = [1, 1]} : vector<9x256xf32> to vector<1x256xf32>
    %44 = vector.broadcast %43 : vector<1x256xf32> to vector<4x256xf32>
    %45 = arith.mulf %42, %44 : vector<4x256xf32>
    %46 = vector.extract_strided_slice %45 {offsets = [0, 0], sizes = [1, 256], strides = [1, 1]} : vector<4x256xf32> to vector<1x256xf32>
    %47 = vector.extract_strided_slice %2 {offsets = [4, 0, 0], sizes = [1, 4, 1], strides = [1, 1, 1]} : vector<36x4x1xf32> to vector<1x4x1xf32>
    %48 = vector.shape_cast %47 : vector<1x4x1xf32> to vector<4x1xf32>
    %49 = vector.broadcast %46 : vector<1x256xf32> to vector<4x256xf32>
    %50 = vector.broadcast %48 : vector<4x1xf32> to vector<4x256xf32>
    %51 = arith.mulf %49, %50 : vector<4x256xf32>
    %52 = arith.addf %41, %51 : vector<4x256xf32>
    %53 = vector.extract_strided_slice %45 {offsets = [1, 0], sizes = [1, 256], strides = [1, 1]} : vector<4x256xf32> to vector<1x256xf32>
    %54 = vector.extract_strided_slice %2 {offsets = [5, 0, 0], sizes = [1, 4, 1], strides = [1, 1, 1]} : vector<36x4x1xf32> to vector<1x4x1xf32>
    %55 = vector.shape_cast %54 : vector<1x4x1xf32> to vector<4x1xf32>
    %56 = vector.broadcast %53 : vector<1x256xf32> to vector<4x256xf32>
    %57 = vector.broadcast %55 : vector<4x1xf32> to vector<4x256xf32>
    %58 = arith.mulf %56, %57 : vector<4x256xf32>
    %59 = arith.addf %52, %58 : vector<4x256xf32>
    %60 = vector.extract_strided_slice %45 {offsets = [2, 0], sizes = [1, 256], strides = [1, 1]} : vector<4x256xf32> to vector<1x256xf32>
    %61 = vector.extract_strided_slice %2 {offsets = [6, 0, 0], sizes = [1, 4, 1], strides = [1, 1, 1]} : vector<36x4x1xf32> to vector<1x4x1xf32>
    %62 = vector.shape_cast %61 : vector<1x4x1xf32> to vector<4x1xf32>
    %63 = vector.broadcast %60 : vector<1x256xf32> to vector<4x256xf32>
    %64 = vector.broadcast %62 : vector<4x1xf32> to vector<4x256xf32>
    %65 = arith.mulf %63, %64 : vector<4x256xf32>
    %66 = arith.addf %59, %65 : vector<4x256xf32>
    %67 = vector.extract_strided_slice %45 {offsets = [3, 0], sizes = [1, 256], strides = [1, 1]} : vector<4x256xf32> to vector<1x256xf32>
    %68 = vector.extract_strided_slice %2 {offsets = [7, 0, 0], sizes = [1, 4, 1], strides = [1, 1, 1]} : vector<36x4x1xf32> to vector<1x4x1xf32>
    %69 = vector.shape_cast %68 : vector<1x4x1xf32> to vector<4x1xf32>
    %70 = vector.broadcast %67 : vector<1x256xf32> to vector<4x256xf32>
    %71 = vector.broadcast %69 : vector<4x1xf32> to vector<4x256xf32>
    %72 = arith.mulf %70, %71 : vector<4x256xf32>
    %73 = arith.addf %66, %72 : vector<4x256xf32>
    %c15_i32 = arith.constant 15 : i32
    %74 = tpu.dynamic_rotate %7 by %c15_i32 dim 1 : vector<4x256xf32>, i32 -> vector<4x256xf32>
    %75 = vector.extract_strided_slice %1 {offsets = [2, 0], sizes = [1, 256], strides = [1, 1]} : vector<9x256xf32> to vector<1x256xf32>
    %76 = vector.broadcast %75 : vector<1x256xf32> to vector<4x256xf32>
    %77 = arith.mulf %74, %76 : vector<4x256xf32>
    %78 = vector.extract_strided_slice %77 {offsets = [0, 0], sizes = [1, 256], strides = [1, 1]} : vector<4x256xf32> to vector<1x256xf32>
    %79 = vector.extract_strided_slice %2 {offsets = [8, 0, 0], sizes = [1, 4, 1], strides = [1, 1, 1]} : vector<36x4x1xf32> to vector<1x4x1xf32>
    %80 = vector.shape_cast %79 : vector<1x4x1xf32> to vector<4x1xf32>
    %81 = vector.broadcast %78 : vector<1x256xf32> to vector<4x256xf32>
    %82 = vector.broadcast %80 : vector<4x1xf32> to vector<4x256xf32>
    %83 = arith.mulf %81, %82 : vector<4x256xf32>
    %84 = arith.addf %73, %83 : vector<4x256xf32>
    %85 = vector.extract_strided_slice %77 {offsets = [1, 0], sizes = [1, 256], strides = [1, 1]} : vector<4x256xf32> to vector<1x256xf32>
    %86 = vector.extract_strided_slice %2 {offsets = [9, 0, 0], sizes = [1, 4, 1], strides = [1, 1, 1]} : vector<36x4x1xf32> to vector<1x4x1xf32>
    %87 = vector.shape_cast %86 : vector<1x4x1xf32> to vector<4x1xf32>
    %88 = vector.broadcast %85 : vector<1x256xf32> to vector<4x256xf32>
    %89 = vector.broadcast %87 : vector<4x1xf32> to vector<4x256xf32>
    %90 = arith.mulf %88, %89 : vector<4x256xf32>
    %91 = arith.addf %84, %90 : vector<4x256xf32>
    %92 = vector.extract_strided_slice %77 {offsets = [2, 0], sizes = [1, 256], strides = [1, 1]} : vector<4x256xf32> to vector<1x256xf32>
    %93 = vector.extract_strided_slice %2 {offsets = [10, 0, 0], sizes = [1, 4, 1], strides = [1, 1, 1]} : vector<36x4x1xf32> to vector<1x4x1xf32>
    %94 = vector.shape_cast %93 : vector<1x4x1xf32> to vector<4x1xf32>
    %95 = vector.broadcast %92 : vector<1x256xf32> to vector<4x256xf32>
    %96 = vector.broadcast %94 : vector<4x1xf32> to vector<4x256xf32>
    %97 = arith.mulf %95, %96 : vector<4x256xf32>
    %98 = arith.addf %91, %97 : vector<4x256xf32>
    %99 = vector.extract_strided_slice %77 {offsets = [3, 0], sizes = [1, 256], strides = [1, 1]} : vector<4x256xf32> to vector<1x256xf32>
    %100 = vector.extract_strided_slice %2 {offsets = [11, 0, 0], sizes = [1, 4, 1], strides = [1, 1, 1]} : vector<36x4x1xf32> to vector<1x4x1xf32>
    %101 = vector.shape_cast %100 : vector<1x4x1xf32> to vector<4x1xf32>
    %102 = vector.broadcast %99 : vector<1x256xf32> to vector<4x256xf32>
    %103 = vector.broadcast %101 : vector<4x1xf32> to vector<4x256xf32>
    %104 = arith.mulf %102, %103 : vector<4x256xf32>
    %105 = arith.addf %98, %104 : vector<4x256xf32>
    %c1_i32 = arith.constant 1 : i32
    %106 = tpu.dynamic_rotate %7 by %c1_i32 dim 1 : vector<4x256xf32>, i32 -> vector<4x256xf32>
    %107 = vector.extract_strided_slice %1 {offsets = [3, 0], sizes = [1, 256], strides = [1, 1]} : vector<9x256xf32> to vector<1x256xf32>
    %108 = vector.broadcast %107 : vector<1x256xf32> to vector<4x256xf32>
    %109 = arith.mulf %106, %108 : vector<4x256xf32>
    %110 = vector.extract_strided_slice %109 {offsets = [0, 0], sizes = [1, 256], strides = [1, 1]} : vector<4x256xf32> to vector<1x256xf32>
    %111 = vector.extract_strided_slice %2 {offsets = [12, 0, 0], sizes = [1, 4, 1], strides = [1, 1, 1]} : vector<36x4x1xf32> to vector<1x4x1xf32>
    %112 = vector.shape_cast %111 : vector<1x4x1xf32> to vector<4x1xf32>
    %113 = vector.broadcast %110 : vector<1x256xf32> to vector<4x256xf32>
    %114 = vector.broadcast %112 : vector<4x1xf32> to vector<4x256xf32>
    %115 = arith.mulf %113, %114 : vector<4x256xf32>
    %116 = arith.addf %105, %115 : vector<4x256xf32>
    %117 = vector.extract_strided_slice %109 {offsets = [1, 0], sizes = [1, 256], strides = [1, 1]} : vector<4x256xf32> to vector<1x256xf32>
    %118 = vector.extract_strided_slice %2 {offsets = [13, 0, 0], sizes = [1, 4, 1], strides = [1, 1, 1]} : vector<36x4x1xf32> to vector<1x4x1xf32>
    %119 = vector.shape_cast %118 : vector<1x4x1xf32> to vector<4x1xf32>
    %120 = vector.broadcast %117 : vector<1x256xf32> to vector<4x256xf32>
    %121 = vector.broadcast %119 : vector<4x1xf32> to vector<4x256xf32>
    %122 = arith.mulf %120, %121 : vector<4x256xf32>
    %123 = arith.addf %116, %122 : vector<4x256xf32>
    %124 = vector.extract_strided_slice %109 {offsets = [2, 0], sizes = [1, 256], strides = [1, 1]} : vector<4x256xf32> to vector<1x256xf32>
    %125 = vector.extract_strided_slice %2 {offsets = [14, 0, 0], sizes = [1, 4, 1], strides = [1, 1, 1]} : vector<36x4x1xf32> to vector<1x4x1xf32>
    %126 = vector.shape_cast %125 : vector<1x4x1xf32> to vector<4x1xf32>
    %127 = vector.broadcast %124 : vector<1x256xf32> to vector<4x256xf32>
    %128 = vector.broadcast %126 : vector<4x1xf32> to vector<4x256xf32>
    %129 = arith.mulf %127, %128 : vector<4x256xf32>
    %130 = arith.addf %123, %129 : vector<4x256xf32>
    %131 = vector.extract_strided_slice %109 {offsets = [3, 0], sizes = [1, 256], strides = [1, 1]} : vector<4x256xf32> to vector<1x256xf32>
    %132 = vector.extract_strided_slice %2 {offsets = [15, 0, 0], sizes = [1, 4, 1], strides = [1, 1, 1]} : vector<36x4x1xf32> to vector<1x4x1xf32>
    %133 = vector.shape_cast %132 : vector<1x4x1xf32> to vector<4x1xf32>
    %134 = vector.broadcast %131 : vector<1x256xf32> to vector<4x256xf32>
    %135 = vector.broadcast %133 : vector<4x1xf32> to vector<4x256xf32>
    %136 = arith.mulf %134, %135 : vector<4x256xf32>
    %137 = arith.addf %130, %136 : vector<4x256xf32>
    %138 = vector.extract_strided_slice %7 {offsets = [0, 0], sizes = [1, 256], strides = [1, 1]} : vector<4x256xf32> to vector<1x256xf32>
    %139 = vector.extract_strided_slice %2 {offsets = [16, 0, 0], sizes = [1, 4, 1], strides = [1, 1, 1]} : vector<36x4x1xf32> to vector<1x4x1xf32>
    %140 = vector.shape_cast %139 : vector<1x4x1xf32> to vector<4x1xf32>
    %141 = vector.broadcast %138 : vector<1x256xf32> to vector<4x256xf32>
    %142 = vector.broadcast %140 : vector<4x1xf32> to vector<4x256xf32>
    %143 = arith.mulf %141, %142 : vector<4x256xf32>
    %144 = arith.addf %137, %143 : vector<4x256xf32>
    %145 = vector.extract_strided_slice %7 {offsets = [1, 0], sizes = [1, 256], strides = [1, 1]} : vector<4x256xf32> to vector<1x256xf32>
    %146 = vector.extract_strided_slice %2 {offsets = [17, 0, 0], sizes = [1, 4, 1], strides = [1, 1, 1]} : vector<36x4x1xf32> to vector<1x4x1xf32>
    %147 = vector.shape_cast %146 : vector<1x4x1xf32> to vector<4x1xf32>
    %148 = vector.broadcast %145 : vector<1x256xf32> to vector<4x256xf32>
    %149 = vector.broadcast %147 : vector<4x1xf32> to vector<4x256xf32>
    %150 = arith.mulf %148, %149 : vector<4x256xf32>
    %151 = arith.addf %144, %150 : vector<4x256xf32>
    %152 = vector.extract_strided_slice %7 {offsets = [2, 0], sizes = [1, 256], strides = [1, 1]} : vector<4x256xf32> to vector<1x256xf32>
    %153 = vector.extract_strided_slice %2 {offsets = [18, 0, 0], sizes = [1, 4, 1], strides = [1, 1, 1]} : vector<36x4x1xf32> to vector<1x4x1xf32>
    %154 = vector.shape_cast %153 : vector<1x4x1xf32> to vector<4x1xf32>
    %155 = vector.broadcast %152 : vector<1x256xf32> to vector<4x256xf32>
    %156 = vector.broadcast %154 : vector<4x1xf32> to vector<4x256xf32>
    %157 = arith.mulf %155, %156 : vector<4x256xf32>
    %158 = arith.addf %151, %157 : vector<4x256xf32>
    %159 = vector.extract_strided_slice %7 {offsets = [3, 0], sizes = [1, 256], strides = [1, 1]} : vector<4x256xf32> to vector<1x256xf32>
    %160 = vector.extract_strided_slice %2 {offsets = [19, 0, 0], sizes = [1, 4, 1], strides = [1, 1, 1]} : vector<36x4x1xf32> to vector<1x4x1xf32>
    %161 = vector.shape_cast %160 : vector<1x4x1xf32> to vector<4x1xf32>
    %162 = vector.broadcast %159 : vector<1x256xf32> to vector<4x256xf32>
    %163 = vector.broadcast %161 : vector<4x1xf32> to vector<4x256xf32>
    %164 = arith.mulf %162, %163 : vector<4x256xf32>
    %165 = arith.addf %158, %164 : vector<4x256xf32>
    %c255_i32 = arith.constant 255 : i32
    %166 = tpu.dynamic_rotate %7 by %c255_i32 dim 1 : vector<4x256xf32>, i32 -> vector<4x256xf32>
    %167 = vector.extract_strided_slice %1 {offsets = [5, 0], sizes = [1, 256], strides = [1, 1]} : vector<9x256xf32> to vector<1x256xf32>
    %168 = vector.broadcast %167 : vector<1x256xf32> to vector<4x256xf32>
    %169 = arith.mulf %166, %168 : vector<4x256xf32>
    %170 = vector.extract_strided_slice %169 {offsets = [0, 0], sizes = [1, 256], strides = [1, 1]} : vector<4x256xf32> to vector<1x256xf32>
    %171 = vector.extract_strided_slice %2 {offsets = [20, 0, 0], sizes = [1, 4, 1], strides = [1, 1, 1]} : vector<36x4x1xf32> to vector<1x4x1xf32>
    %172 = vector.shape_cast %171 : vector<1x4x1xf32> to vector<4x1xf32>
    %173 = vector.broadcast %170 : vector<1x256xf32> to vector<4x256xf32>
    %174 = vector.broadcast %172 : vector<4x1xf32> to vector<4x256xf32>
    %175 = arith.mulf %173, %174 : vector<4x256xf32>
    %176 = arith.addf %165, %175 : vector<4x256xf32>
    %177 = vector.extract_strided_slice %169 {offsets = [1, 0], sizes = [1, 256], strides = [1, 1]} : vector<4x256xf32> to vector<1x256xf32>
    %178 = vector.extract_strided_slice %2 {offsets = [21, 0, 0], sizes = [1, 4, 1], strides = [1, 1, 1]} : vector<36x4x1xf32> to vector<1x4x1xf32>
    %179 = vector.shape_cast %178 : vector<1x4x1xf32> to vector<4x1xf32>
    %180 = vector.broadcast %177 : vector<1x256xf32> to vector<4x256xf32>
    %181 = vector.broadcast %179 : vector<4x1xf32> to vector<4x256xf32>
    %182 = arith.mulf %180, %181 : vector<4x256xf32>
    %183 = arith.addf %176, %182 : vector<4x256xf32>
    %184 = vector.extract_strided_slice %169 {offsets = [2, 0], sizes = [1, 256], strides = [1, 1]} : vector<4x256xf32> to vector<1x256xf32>
    %185 = vector.extract_strided_slice %2 {offsets = [22, 0, 0], sizes = [1, 4, 1], strides = [1, 1, 1]} : vector<36x4x1xf32> to vector<1x4x1xf32>
    %186 = vector.shape_cast %185 : vector<1x4x1xf32> to vector<4x1xf32>
    %187 = vector.broadcast %184 : vector<1x256xf32> to vector<4x256xf32>
    %188 = vector.broadcast %186 : vector<4x1xf32> to vector<4x256xf32>
    %189 = arith.mulf %187, %188 : vector<4x256xf32>
    %190 = arith.addf %183, %189 : vector<4x256xf32>
    %191 = vector.extract_strided_slice %169 {offsets = [3, 0], sizes = [1, 256], strides = [1, 1]} : vector<4x256xf32> to vector<1x256xf32>
    %192 = vector.extract_strided_slice %2 {offsets = [23, 0, 0], sizes = [1, 4, 1], strides = [1, 1, 1]} : vector<36x4x1xf32> to vector<1x4x1xf32>
    %193 = vector.shape_cast %192 : vector<1x4x1xf32> to vector<4x1xf32>
    %194 = vector.broadcast %191 : vector<1x256xf32> to vector<4x256xf32>
    %195 = vector.broadcast %193 : vector<4x1xf32> to vector<4x256xf32>
    %196 = arith.mulf %194, %195 : vector<4x256xf32>
    %197 = arith.addf %190, %196 : vector<4x256xf32>
    %c241_i32 = arith.constant 241 : i32
    %198 = tpu.dynamic_rotate %7 by %c241_i32 dim 1 : vector<4x256xf32>, i32 -> vector<4x256xf32>
    %199 = vector.extract_strided_slice %1 {offsets = [6, 0], sizes = [1, 256], strides = [1, 1]} : vector<9x256xf32> to vector<1x256xf32>
    %200 = vector.broadcast %199 : vector<1x256xf32> to vector<4x256xf32>
    %201 = arith.mulf %198, %200 : vector<4x256xf32>
    %202 = vector.extract_strided_slice %201 {offsets = [0, 0], sizes = [1, 256], strides = [1, 1]} : vector<4x256xf32> to vector<1x256xf32>
    %203 = vector.extract_strided_slice %2 {offsets = [24, 0, 0], sizes = [1, 4, 1], strides = [1, 1, 1]} : vector<36x4x1xf32> to vector<1x4x1xf32>
    %204 = vector.shape_cast %203 : vector<1x4x1xf32> to vector<4x1xf32>
    %205 = vector.broadcast %202 : vector<1x256xf32> to vector<4x256xf32>
    %206 = vector.broadcast %204 : vector<4x1xf32> to vector<4x256xf32>
    %207 = arith.mulf %205, %206 : vector<4x256xf32>
    %208 = arith.addf %197, %207 : vector<4x256xf32>
    %209 = vector.extract_strided_slice %201 {offsets = [1, 0], sizes = [1, 256], strides = [1, 1]} : vector<4x256xf32> to vector<1x256xf32>
    %210 = vector.extract_strided_slice %2 {offsets = [25, 0, 0], sizes = [1, 4, 1], strides = [1, 1, 1]} : vector<36x4x1xf32> to vector<1x4x1xf32>
    %211 = vector.shape_cast %210 : vector<1x4x1xf32> to vector<4x1xf32>
    %212 = vector.broadcast %209 : vector<1x256xf32> to vector<4x256xf32>
    %213 = vector.broadcast %211 : vector<4x1xf32> to vector<4x256xf32>
    %214 = arith.mulf %212, %213 : vector<4x256xf32>
    %215 = arith.addf %208, %214 : vector<4x256xf32>
    %216 = vector.extract_strided_slice %201 {offsets = [2, 0], sizes = [1, 256], strides = [1, 1]} : vector<4x256xf32> to vector<1x256xf32>
    %217 = vector.extract_strided_slice %2 {offsets = [26, 0, 0], sizes = [1, 4, 1], strides = [1, 1, 1]} : vector<36x4x1xf32> to vector<1x4x1xf32>
    %218 = vector.shape_cast %217 : vector<1x4x1xf32> to vector<4x1xf32>
    %219 = vector.broadcast %216 : vector<1x256xf32> to vector<4x256xf32>
    %220 = vector.broadcast %218 : vector<4x1xf32> to vector<4x256xf32>
    %221 = arith.mulf %219, %220 : vector<4x256xf32>
    %222 = arith.addf %215, %221 : vector<4x256xf32>
    %223 = vector.extract_strided_slice %201 {offsets = [3, 0], sizes = [1, 256], strides = [1, 1]} : vector<4x256xf32> to vector<1x256xf32>
    %224 = vector.extract_strided_slice %2 {offsets = [27, 0, 0], sizes = [1, 4, 1], strides = [1, 1, 1]} : vector<36x4x1xf32> to vector<1x4x1xf32>
    %225 = vector.shape_cast %224 : vector<1x4x1xf32> to vector<4x1xf32>
    %226 = vector.broadcast %223 : vector<1x256xf32> to vector<4x256xf32>
    %227 = vector.broadcast %225 : vector<4x1xf32> to vector<4x256xf32>
    %228 = arith.mulf %226, %227 : vector<4x256xf32>
    %229 = arith.addf %222, %228 : vector<4x256xf32>
    %c240_i32 = arith.constant 240 : i32
    %230 = tpu.dynamic_rotate %7 by %c240_i32 dim 1 : vector<4x256xf32>, i32 -> vector<4x256xf32>
    %231 = vector.extract_strided_slice %1 {offsets = [7, 0], sizes = [1, 256], strides = [1, 1]} : vector<9x256xf32> to vector<1x256xf32>
    %232 = vector.broadcast %231 : vector<1x256xf32> to vector<4x256xf32>
    %233 = arith.mulf %230, %232 : vector<4x256xf32>
    %234 = vector.extract_strided_slice %233 {offsets = [0, 0], sizes = [1, 256], strides = [1, 1]} : vector<4x256xf32> to vector<1x256xf32>
    %235 = vector.extract_strided_slice %2 {offsets = [28, 0, 0], sizes = [1, 4, 1], strides = [1, 1, 1]} : vector<36x4x1xf32> to vector<1x4x1xf32>
    %236 = vector.shape_cast %235 : vector<1x4x1xf32> to vector<4x1xf32>
    %237 = vector.broadcast %234 : vector<1x256xf32> to vector<4x256xf32>
    %238 = vector.broadcast %236 : vector<4x1xf32> to vector<4x256xf32>
    %239 = arith.mulf %237, %238 : vector<4x256xf32>
    %240 = arith.addf %229, %239 : vector<4x256xf32>
    %241 = vector.extract_strided_slice %233 {offsets = [1, 0], sizes = [1, 256], strides = [1, 1]} : vector<4x256xf32> to vector<1x256xf32>
    %242 = vector.extract_strided_slice %2 {offsets = [29, 0, 0], sizes = [1, 4, 1], strides = [1, 1, 1]} : vector<36x4x1xf32> to vector<1x4x1xf32>
    %243 = vector.shape_cast %242 : vector<1x4x1xf32> to vector<4x1xf32>
    %244 = vector.broadcast %241 : vector<1x256xf32> to vector<4x256xf32>
    %245 = vector.broadcast %243 : vector<4x1xf32> to vector<4x256xf32>
    %246 = arith.mulf %244, %245 : vector<4x256xf32>
    %247 = arith.addf %240, %246 : vector<4x256xf32>
    %248 = vector.extract_strided_slice %233 {offsets = [2, 0], sizes = [1, 256], strides = [1, 1]} : vector<4x256xf32> to vector<1x256xf32>
    %249 = vector.extract_strided_slice %2 {offsets = [30, 0, 0], sizes = [1, 4, 1], strides = [1, 1, 1]} : vector<36x4x1xf32> to vector<1x4x1xf32>
    %250 = vector.shape_cast %249 : vector<1x4x1xf32> to vector<4x1xf32>
    %251 = vector.broadcast %248 : vector<1x256xf32> to vector<4x256xf32>
    %252 = vector.broadcast %250 : vector<4x1xf32> to vector<4x256xf32>
    %253 = arith.mulf %251, %252 : vector<4x256xf32>
    %254 = arith.addf %247, %253 : vector<4x256xf32>
    %255 = vector.extract_strided_slice %233 {offsets = [3, 0], sizes = [1, 256], strides = [1, 1]} : vector<4x256xf32> to vector<1x256xf32>
    %256 = vector.extract_strided_slice %2 {offsets = [31, 0, 0], sizes = [1, 4, 1], strides = [1, 1, 1]} : vector<36x4x1xf32> to vector<1x4x1xf32>
    %257 = vector.shape_cast %256 : vector<1x4x1xf32> to vector<4x1xf32>
    %258 = vector.broadcast %255 : vector<1x256xf32> to vector<4x256xf32>
    %259 = vector.broadcast %257 : vector<4x1xf32> to vector<4x256xf32>
    %260 = arith.mulf %258, %259 : vector<4x256xf32>
    %261 = arith.addf %254, %260 : vector<4x256xf32>
    %c239_i32 = arith.constant 239 : i32
    %262 = tpu.dynamic_rotate %7 by %c239_i32 dim 1 : vector<4x256xf32>, i32 -> vector<4x256xf32>
    %263 = vector.extract_strided_slice %1 {offsets = [8, 0], sizes = [1, 256], strides = [1, 1]} : vector<9x256xf32> to vector<1x256xf32>
    %264 = vector.broadcast %263 : vector<1x256xf32> to vector<4x256xf32>
    %265 = arith.mulf %262, %264 : vector<4x256xf32>
    %266 = vector.extract_strided_slice %265 {offsets = [0, 0], sizes = [1, 256], strides = [1, 1]} : vector<4x256xf32> to vector<1x256xf32>
    %267 = vector.extract_strided_slice %2 {offsets = [32, 0, 0], sizes = [1, 4, 1], strides = [1, 1, 1]} : vector<36x4x1xf32> to vector<1x4x1xf32>
    %268 = vector.shape_cast %267 : vector<1x4x1xf32> to vector<4x1xf32>
    %269 = vector.broadcast %266 : vector<1x256xf32> to vector<4x256xf32>
    %270 = vector.broadcast %268 : vector<4x1xf32> to vector<4x256xf32>
    %271 = arith.mulf %269, %270 : vector<4x256xf32>
    %272 = arith.addf %261, %271 : vector<4x256xf32>
    %273 = vector.extract_strided_slice %265 {offsets = [1, 0], sizes = [1, 256], strides = [1, 1]} : vector<4x256xf32> to vector<1x256xf32>
    %274 = vector.extract_strided_slice %2 {offsets = [33, 0, 0], sizes = [1, 4, 1], strides = [1, 1, 1]} : vector<36x4x1xf32> to vector<1x4x1xf32>
    %275 = vector.shape_cast %274 : vector<1x4x1xf32> to vector<4x1xf32>
    %276 = vector.broadcast %273 : vector<1x256xf32> to vector<4x256xf32>
    %277 = vector.broadcast %275 : vector<4x1xf32> to vector<4x256xf32>
    %278 = arith.mulf %276, %277 : vector<4x256xf32>
    %279 = arith.addf %272, %278 : vector<4x256xf32>
    %280 = vector.extract_strided_slice %265 {offsets = [2, 0], sizes = [1, 256], strides = [1, 1]} : vector<4x256xf32> to vector<1x256xf32>
    %281 = vector.extract_strided_slice %2 {offsets = [34, 0, 0], sizes = [1, 4, 1], strides = [1, 1, 1]} : vector<36x4x1xf32> to vector<1x4x1xf32>
    %282 = vector.shape_cast %281 : vector<1x4x1xf32> to vector<4x1xf32>
    %283 = vector.broadcast %280 : vector<1x256xf32> to vector<4x256xf32>
    %284 = vector.broadcast %282 : vector<4x1xf32> to vector<4x256xf32>
    %285 = arith.mulf %283, %284 : vector<4x256xf32>
    %286 = arith.addf %279, %285 : vector<4x256xf32>
    %287 = vector.extract_strided_slice %265 {offsets = [3, 0], sizes = [1, 256], strides = [1, 1]} : vector<4x256xf32> to vector<1x256xf32>
    %288 = vector.extract_strided_slice %2 {offsets = [35, 0, 0], sizes = [1, 4, 1], strides = [1, 1, 1]} : vector<36x4x1xf32> to vector<1x4x1xf32>
    %289 = vector.shape_cast %288 : vector<1x4x1xf32> to vector<4x1xf32>
    %290 = vector.broadcast %287 : vector<1x256xf32> to vector<4x256xf32>
    %291 = vector.broadcast %289 : vector<4x1xf32> to vector<4x256xf32>
    %292 = arith.mulf %290, %291 : vector<4x256xf32>
    %293 = arith.addf %286, %292 : vector<4x256xf32>
    %cst = arith.constant 0.000000e+00 : f32
    %cst_14 = arith.constant 2.000000e+01 : f32
    %294 = vector.broadcast %cst : f32 to vector<4x256xf32>
    %295 = arith.maximumf %294, %293 : vector<4x256xf32>
    %296 = vector.broadcast %cst_14 : f32 to vector<4x256xf32>
    %297 = arith.minimumf %296, %295 : vector<4x256xf32>
    %298 = vector.shape_cast %5 : vector<4x1xf32> to vector<4x1xf32>
    %299 = vector.broadcast %298 : vector<4x1xf32> to vector<4x256xf32>
    %c17_i32_15 = arith.constant 17 : i32
    %300 = tpu.dynamic_rotate %297 by %c17_i32_15 dim 1 : vector<4x256xf32>, i32 -> vector<4x256xf32>
    %301 = vector.extract_strided_slice %1 {offsets = [0, 0], sizes = [1, 256], strides = [1, 1]} : vector<9x256xf32> to vector<1x256xf32>
    %302 = vector.broadcast %301 : vector<1x256xf32> to vector<4x256xf32>
    %303 = arith.mulf %300, %302 : vector<4x256xf32>
    %304 = vector.extract_strided_slice %303 {offsets = [0, 0], sizes = [1, 256], strides = [1, 1]} : vector<4x256xf32> to vector<1x256xf32>
    %305 = vector.extract_strided_slice %3 {offsets = [0, 0, 0], sizes = [1, 4, 1], strides = [1, 1, 1]} : vector<36x4x1xf32> to vector<1x4x1xf32>
    %306 = vector.shape_cast %305 : vector<1x4x1xf32> to vector<4x1xf32>
    %307 = vector.broadcast %304 : vector<1x256xf32> to vector<4x256xf32>
    %308 = vector.broadcast %306 : vector<4x1xf32> to vector<4x256xf32>
    %309 = arith.mulf %307, %308 : vector<4x256xf32>
    %310 = arith.addf %299, %309 : vector<4x256xf32>
    %311 = vector.extract_strided_slice %303 {offsets = [1, 0], sizes = [1, 256], strides = [1, 1]} : vector<4x256xf32> to vector<1x256xf32>
    %312 = vector.extract_strided_slice %3 {offsets = [1, 0, 0], sizes = [1, 4, 1], strides = [1, 1, 1]} : vector<36x4x1xf32> to vector<1x4x1xf32>
    %313 = vector.shape_cast %312 : vector<1x4x1xf32> to vector<4x1xf32>
    %314 = vector.broadcast %311 : vector<1x256xf32> to vector<4x256xf32>
    %315 = vector.broadcast %313 : vector<4x1xf32> to vector<4x256xf32>
    %316 = arith.mulf %314, %315 : vector<4x256xf32>
    %317 = arith.addf %310, %316 : vector<4x256xf32>
    %318 = vector.extract_strided_slice %303 {offsets = [2, 0], sizes = [1, 256], strides = [1, 1]} : vector<4x256xf32> to vector<1x256xf32>
    %319 = vector.extract_strided_slice %3 {offsets = [2, 0, 0], sizes = [1, 4, 1], strides = [1, 1, 1]} : vector<36x4x1xf32> to vector<1x4x1xf32>
    %320 = vector.shape_cast %319 : vector<1x4x1xf32> to vector<4x1xf32>
    %321 = vector.broadcast %318 : vector<1x256xf32> to vector<4x256xf32>
    %322 = vector.broadcast %320 : vector<4x1xf32> to vector<4x256xf32>
    %323 = arith.mulf %321, %322 : vector<4x256xf32>
    %324 = arith.addf %317, %323 : vector<4x256xf32>
    %325 = vector.extract_strided_slice %303 {offsets = [3, 0], sizes = [1, 256], strides = [1, 1]} : vector<4x256xf32> to vector<1x256xf32>
    %326 = vector.extract_strided_slice %3 {offsets = [3, 0, 0], sizes = [1, 4, 1], strides = [1, 1, 1]} : vector<36x4x1xf32> to vector<1x4x1xf32>
    %327 = vector.shape_cast %326 : vector<1x4x1xf32> to vector<4x1xf32>
    %328 = vector.broadcast %325 : vector<1x256xf32> to vector<4x256xf32>
    %329 = vector.broadcast %327 : vector<4x1xf32> to vector<4x256xf32>
    %330 = arith.mulf %328, %329 : vector<4x256xf32>
    %331 = arith.addf %324, %330 : vector<4x256xf32>
    %c16_i32_16 = arith.constant 16 : i32
    %332 = tpu.dynamic_rotate %297 by %c16_i32_16 dim 1 : vector<4x256xf32>, i32 -> vector<4x256xf32>
    %333 = vector.extract_strided_slice %1 {offsets = [1, 0], sizes = [1, 256], strides = [1, 1]} : vector<9x256xf32> to vector<1x256xf32>
    %334 = vector.broadcast %333 : vector<1x256xf32> to vector<4x256xf32>
    %335 = arith.mulf %332, %334 : vector<4x256xf32>
    %336 = vector.extract_strided_slice %335 {offsets = [0, 0], sizes = [1, 256], strides = [1, 1]} : vector<4x256xf32> to vector<1x256xf32>
    %337 = vector.extract_strided_slice %3 {offsets = [4, 0, 0], sizes = [1, 4, 1], strides = [1, 1, 1]} : vector<36x4x1xf32> to vector<1x4x1xf32>
    %338 = vector.shape_cast %337 : vector<1x4x1xf32> to vector<4x1xf32>
    %339 = vector.broadcast %336 : vector<1x256xf32> to vector<4x256xf32>
    %340 = vector.broadcast %338 : vector<4x1xf32> to vector<4x256xf32>
    %341 = arith.mulf %339, %340 : vector<4x256xf32>
    %342 = arith.addf %331, %341 : vector<4x256xf32>
    %343 = vector.extract_strided_slice %335 {offsets = [1, 0], sizes = [1, 256], strides = [1, 1]} : vector<4x256xf32> to vector<1x256xf32>
    %344 = vector.extract_strided_slice %3 {offsets = [5, 0, 0], sizes = [1, 4, 1], strides = [1, 1, 1]} : vector<36x4x1xf32> to vector<1x4x1xf32>
    %345 = vector.shape_cast %344 : vector<1x4x1xf32> to vector<4x1xf32>
    %346 = vector.broadcast %343 : vector<1x256xf32> to vector<4x256xf32>
    %347 = vector.broadcast %345 : vector<4x1xf32> to vector<4x256xf32>
    %348 = arith.mulf %346, %347 : vector<4x256xf32>
    %349 = arith.addf %342, %348 : vector<4x256xf32>
    %350 = vector.extract_strided_slice %335 {offsets = [2, 0], sizes = [1, 256], strides = [1, 1]} : vector<4x256xf32> to vector<1x256xf32>
    %351 = vector.extract_strided_slice %3 {offsets = [6, 0, 0], sizes = [1, 4, 1], strides = [1, 1, 1]} : vector<36x4x1xf32> to vector<1x4x1xf32>
    %352 = vector.shape_cast %351 : vector<1x4x1xf32> to vector<4x1xf32>
    %353 = vector.broadcast %350 : vector<1x256xf32> to vector<4x256xf32>
    %354 = vector.broadcast %352 : vector<4x1xf32> to vector<4x256xf32>
    %355 = arith.mulf %353, %354 : vector<4x256xf32>
    %356 = arith.addf %349, %355 : vector<4x256xf32>
    %357 = vector.extract_strided_slice %335 {offsets = [3, 0], sizes = [1, 256], strides = [1, 1]} : vector<4x256xf32> to vector<1x256xf32>
    %358 = vector.extract_strided_slice %3 {offsets = [7, 0, 0], sizes = [1, 4, 1], strides = [1, 1, 1]} : vector<36x4x1xf32> to vector<1x4x1xf32>
    %359 = vector.shape_cast %358 : vector<1x4x1xf32> to vector<4x1xf32>
    %360 = vector.broadcast %357 : vector<1x256xf32> to vector<4x256xf32>
    %361 = vector.broadcast %359 : vector<4x1xf32> to vector<4x256xf32>
    %362 = arith.mulf %360, %361 : vector<4x256xf32>
    %363 = arith.addf %356, %362 : vector<4x256xf32>
    %c15_i32_17 = arith.constant 15 : i32
    %364 = tpu.dynamic_rotate %297 by %c15_i32_17 dim 1 : vector<4x256xf32>, i32 -> vector<4x256xf32>
    %365 = vector.extract_strided_slice %1 {offsets = [2, 0], sizes = [1, 256], strides = [1, 1]} : vector<9x256xf32> to vector<1x256xf32>
    %366 = vector.broadcast %365 : vector<1x256xf32> to vector<4x256xf32>
    %367 = arith.mulf %364, %366 : vector<4x256xf32>
    %368 = vector.extract_strided_slice %367 {offsets = [0, 0], sizes = [1, 256], strides = [1, 1]} : vector<4x256xf32> to vector<1x256xf32>
    %369 = vector.extract_strided_slice %3 {offsets = [8, 0, 0], sizes = [1, 4, 1], strides = [1, 1, 1]} : vector<36x4x1xf32> to vector<1x4x1xf32>
    %370 = vector.shape_cast %369 : vector<1x4x1xf32> to vector<4x1xf32>
    %371 = vector.broadcast %368 : vector<1x256xf32> to vector<4x256xf32>
    %372 = vector.broadcast %370 : vector<4x1xf32> to vector<4x256xf32>
    %373 = arith.mulf %371, %372 : vector<4x256xf32>
    %374 = arith.addf %363, %373 : vector<4x256xf32>
    %375 = vector.extract_strided_slice %367 {offsets = [1, 0], sizes = [1, 256], strides = [1, 1]} : vector<4x256xf32> to vector<1x256xf32>
    %376 = vector.extract_strided_slice %3 {offsets = [9, 0, 0], sizes = [1, 4, 1], strides = [1, 1, 1]} : vector<36x4x1xf32> to vector<1x4x1xf32>
    %377 = vector.shape_cast %376 : vector<1x4x1xf32> to vector<4x1xf32>
    %378 = vector.broadcast %375 : vector<1x256xf32> to vector<4x256xf32>
    %379 = vector.broadcast %377 : vector<4x1xf32> to vector<4x256xf32>
    %380 = arith.mulf %378, %379 : vector<4x256xf32>
    %381 = arith.addf %374, %380 : vector<4x256xf32>
    %382 = vector.extract_strided_slice %367 {offsets = [2, 0], sizes = [1, 256], strides = [1, 1]} : vector<4x256xf32> to vector<1x256xf32>
    %383 = vector.extract_strided_slice %3 {offsets = [10, 0, 0], sizes = [1, 4, 1], strides = [1, 1, 1]} : vector<36x4x1xf32> to vector<1x4x1xf32>
    %384 = vector.shape_cast %383 : vector<1x4x1xf32> to vector<4x1xf32>
    %385 = vector.broadcast %382 : vector<1x256xf32> to vector<4x256xf32>
    %386 = vector.broadcast %384 : vector<4x1xf32> to vector<4x256xf32>
    %387 = arith.mulf %385, %386 : vector<4x256xf32>
    %388 = arith.addf %381, %387 : vector<4x256xf32>
    %389 = vector.extract_strided_slice %367 {offsets = [3, 0], sizes = [1, 256], strides = [1, 1]} : vector<4x256xf32> to vector<1x256xf32>
    %390 = vector.extract_strided_slice %3 {offsets = [11, 0, 0], sizes = [1, 4, 1], strides = [1, 1, 1]} : vector<36x4x1xf32> to vector<1x4x1xf32>
    %391 = vector.shape_cast %390 : vector<1x4x1xf32> to vector<4x1xf32>
    %392 = vector.broadcast %389 : vector<1x256xf32> to vector<4x256xf32>
    %393 = vector.broadcast %391 : vector<4x1xf32> to vector<4x256xf32>
    %394 = arith.mulf %392, %393 : vector<4x256xf32>
    %395 = arith.addf %388, %394 : vector<4x256xf32>
    %c1_i32_18 = arith.constant 1 : i32
    %396 = tpu.dynamic_rotate %297 by %c1_i32_18 dim 1 : vector<4x256xf32>, i32 -> vector<4x256xf32>
    %397 = vector.extract_strided_slice %1 {offsets = [3, 0], sizes = [1, 256], strides = [1, 1]} : vector<9x256xf32> to vector<1x256xf32>
    %398 = vector.broadcast %397 : vector<1x256xf32> to vector<4x256xf32>
    %399 = arith.mulf %396, %398 : vector<4x256xf32>
    %400 = vector.extract_strided_slice %399 {offsets = [0, 0], sizes = [1, 256], strides = [1, 1]} : vector<4x256xf32> to vector<1x256xf32>
    %401 = vector.extract_strided_slice %3 {offsets = [12, 0, 0], sizes = [1, 4, 1], strides = [1, 1, 1]} : vector<36x4x1xf32> to vector<1x4x1xf32>
    %402 = vector.shape_cast %401 : vector<1x4x1xf32> to vector<4x1xf32>
    %403 = vector.broadcast %400 : vector<1x256xf32> to vector<4x256xf32>
    %404 = vector.broadcast %402 : vector<4x1xf32> to vector<4x256xf32>
    %405 = arith.mulf %403, %404 : vector<4x256xf32>
    %406 = arith.addf %395, %405 : vector<4x256xf32>
    %407 = vector.extract_strided_slice %399 {offsets = [1, 0], sizes = [1, 256], strides = [1, 1]} : vector<4x256xf32> to vector<1x256xf32>
    %408 = vector.extract_strided_slice %3 {offsets = [13, 0, 0], sizes = [1, 4, 1], strides = [1, 1, 1]} : vector<36x4x1xf32> to vector<1x4x1xf32>
    %409 = vector.shape_cast %408 : vector<1x4x1xf32> to vector<4x1xf32>
    %410 = vector.broadcast %407 : vector<1x256xf32> to vector<4x256xf32>
    %411 = vector.broadcast %409 : vector<4x1xf32> to vector<4x256xf32>
    %412 = arith.mulf %410, %411 : vector<4x256xf32>
    %413 = arith.addf %406, %412 : vector<4x256xf32>
    %414 = vector.extract_strided_slice %399 {offsets = [2, 0], sizes = [1, 256], strides = [1, 1]} : vector<4x256xf32> to vector<1x256xf32>
    %415 = vector.extract_strided_slice %3 {offsets = [14, 0, 0], sizes = [1, 4, 1], strides = [1, 1, 1]} : vector<36x4x1xf32> to vector<1x4x1xf32>
    %416 = vector.shape_cast %415 : vector<1x4x1xf32> to vector<4x1xf32>
    %417 = vector.broadcast %414 : vector<1x256xf32> to vector<4x256xf32>
    %418 = vector.broadcast %416 : vector<4x1xf32> to vector<4x256xf32>
    %419 = arith.mulf %417, %418 : vector<4x256xf32>
    %420 = arith.addf %413, %419 : vector<4x256xf32>
    %421 = vector.extract_strided_slice %399 {offsets = [3, 0], sizes = [1, 256], strides = [1, 1]} : vector<4x256xf32> to vector<1x256xf32>
    %422 = vector.extract_strided_slice %3 {offsets = [15, 0, 0], sizes = [1, 4, 1], strides = [1, 1, 1]} : vector<36x4x1xf32> to vector<1x4x1xf32>
    %423 = vector.shape_cast %422 : vector<1x4x1xf32> to vector<4x1xf32>
    %424 = vector.broadcast %421 : vector<1x256xf32> to vector<4x256xf32>
    %425 = vector.broadcast %423 : vector<4x1xf32> to vector<4x256xf32>
    %426 = arith.mulf %424, %425 : vector<4x256xf32>
    %427 = arith.addf %420, %426 : vector<4x256xf32>
    %428 = vector.extract_strided_slice %297 {offsets = [0, 0], sizes = [1, 256], strides = [1, 1]} : vector<4x256xf32> to vector<1x256xf32>
    %429 = vector.extract_strided_slice %3 {offsets = [16, 0, 0], sizes = [1, 4, 1], strides = [1, 1, 1]} : vector<36x4x1xf32> to vector<1x4x1xf32>
    %430 = vector.shape_cast %429 : vector<1x4x1xf32> to vector<4x1xf32>
    %431 = vector.broadcast %428 : vector<1x256xf32> to vector<4x256xf32>
    %432 = vector.broadcast %430 : vector<4x1xf32> to vector<4x256xf32>
    %433 = arith.mulf %431, %432 : vector<4x256xf32>
    %434 = arith.addf %427, %433 : vector<4x256xf32>
    %435 = vector.extract_strided_slice %297 {offsets = [1, 0], sizes = [1, 256], strides = [1, 1]} : vector<4x256xf32> to vector<1x256xf32>
    %436 = vector.extract_strided_slice %3 {offsets = [17, 0, 0], sizes = [1, 4, 1], strides = [1, 1, 1]} : vector<36x4x1xf32> to vector<1x4x1xf32>
    %437 = vector.shape_cast %436 : vector<1x4x1xf32> to vector<4x1xf32>
    %438 = vector.broadcast %435 : vector<1x256xf32> to vector<4x256xf32>
    %439 = vector.broadcast %437 : vector<4x1xf32> to vector<4x256xf32>
    %440 = arith.mulf %438, %439 : vector<4x256xf32>
    %441 = arith.addf %434, %440 : vector<4x256xf32>
    %442 = vector.extract_strided_slice %297 {offsets = [2, 0], sizes = [1, 256], strides = [1, 1]} : vector<4x256xf32> to vector<1x256xf32>
    %443 = vector.extract_strided_slice %3 {offsets = [18, 0, 0], sizes = [1, 4, 1], strides = [1, 1, 1]} : vector<36x4x1xf32> to vector<1x4x1xf32>
    %444 = vector.shape_cast %443 : vector<1x4x1xf32> to vector<4x1xf32>
    %445 = vector.broadcast %442 : vector<1x256xf32> to vector<4x256xf32>
    %446 = vector.broadcast %444 : vector<4x1xf32> to vector<4x256xf32>
    %447 = arith.mulf %445, %446 : vector<4x256xf32>
    %448 = arith.addf %441, %447 : vector<4x256xf32>
    %449 = vector.extract_strided_slice %297 {offsets = [3, 0], sizes = [1, 256], strides = [1, 1]} : vector<4x256xf32> to vector<1x256xf32>
    %450 = vector.extract_strided_slice %3 {offsets = [19, 0, 0], sizes = [1, 4, 1], strides = [1, 1, 1]} : vector<36x4x1xf32> to vector<1x4x1xf32>
    %451 = vector.shape_cast %450 : vector<1x4x1xf32> to vector<4x1xf32>
    %452 = vector.broadcast %449 : vector<1x256xf32> to vector<4x256xf32>
    %453 = vector.broadcast %451 : vector<4x1xf32> to vector<4x256xf32>
    %454 = arith.mulf %452, %453 : vector<4x256xf32>
    %455 = arith.addf %448, %454 : vector<4x256xf32>
    %c255_i32_19 = arith.constant 255 : i32
    %456 = tpu.dynamic_rotate %297 by %c255_i32_19 dim 1 : vector<4x256xf32>, i32 -> vector<4x256xf32>
    %457 = vector.extract_strided_slice %1 {offsets = [5, 0], sizes = [1, 256], strides = [1, 1]} : vector<9x256xf32> to vector<1x256xf32>
    %458 = vector.broadcast %457 : vector<1x256xf32> to vector<4x256xf32>
    %459 = arith.mulf %456, %458 : vector<4x256xf32>
    %460 = vector.extract_strided_slice %459 {offsets = [0, 0], sizes = [1, 256], strides = [1, 1]} : vector<4x256xf32> to vector<1x256xf32>
    %461 = vector.extract_strided_slice %3 {offsets = [20, 0, 0], sizes = [1, 4, 1], strides = [1, 1, 1]} : vector<36x4x1xf32> to vector<1x4x1xf32>
    %462 = vector.shape_cast %461 : vector<1x4x1xf32> to vector<4x1xf32>
    %463 = vector.broadcast %460 : vector<1x256xf32> to vector<4x256xf32>
    %464 = vector.broadcast %462 : vector<4x1xf32> to vector<4x256xf32>
    %465 = arith.mulf %463, %464 : vector<4x256xf32>
    %466 = arith.addf %455, %465 : vector<4x256xf32>
    %467 = vector.extract_strided_slice %459 {offsets = [1, 0], sizes = [1, 256], strides = [1, 1]} : vector<4x256xf32> to vector<1x256xf32>
    %468 = vector.extract_strided_slice %3 {offsets = [21, 0, 0], sizes = [1, 4, 1], strides = [1, 1, 1]} : vector<36x4x1xf32> to vector<1x4x1xf32>
    %469 = vector.shape_cast %468 : vector<1x4x1xf32> to vector<4x1xf32>
    %470 = vector.broadcast %467 : vector<1x256xf32> to vector<4x256xf32>
    %471 = vector.broadcast %469 : vector<4x1xf32> to vector<4x256xf32>
    %472 = arith.mulf %470, %471 : vector<4x256xf32>
    %473 = arith.addf %466, %472 : vector<4x256xf32>
    %474 = vector.extract_strided_slice %459 {offsets = [2, 0], sizes = [1, 256], strides = [1, 1]} : vector<4x256xf32> to vector<1x256xf32>
    %475 = vector.extract_strided_slice %3 {offsets = [22, 0, 0], sizes = [1, 4, 1], strides = [1, 1, 1]} : vector<36x4x1xf32> to vector<1x4x1xf32>
    %476 = vector.shape_cast %475 : vector<1x4x1xf32> to vector<4x1xf32>
    %477 = vector.broadcast %474 : vector<1x256xf32> to vector<4x256xf32>
    %478 = vector.broadcast %476 : vector<4x1xf32> to vector<4x256xf32>
    %479 = arith.mulf %477, %478 : vector<4x256xf32>
    %480 = arith.addf %473, %479 : vector<4x256xf32>
    %481 = vector.extract_strided_slice %459 {offsets = [3, 0], sizes = [1, 256], strides = [1, 1]} : vector<4x256xf32> to vector<1x256xf32>
    %482 = vector.extract_strided_slice %3 {offsets = [23, 0, 0], sizes = [1, 4, 1], strides = [1, 1, 1]} : vector<36x4x1xf32> to vector<1x4x1xf32>
    %483 = vector.shape_cast %482 : vector<1x4x1xf32> to vector<4x1xf32>
    %484 = vector.broadcast %481 : vector<1x256xf32> to vector<4x256xf32>
    %485 = vector.broadcast %483 : vector<4x1xf32> to vector<4x256xf32>
    %486 = arith.mulf %484, %485 : vector<4x256xf32>
    %487 = arith.addf %480, %486 : vector<4x256xf32>
    %c241_i32_20 = arith.constant 241 : i32
    %488 = tpu.dynamic_rotate %297 by %c241_i32_20 dim 1 : vector<4x256xf32>, i32 -> vector<4x256xf32>
    %489 = vector.extract_strided_slice %1 {offsets = [6, 0], sizes = [1, 256], strides = [1, 1]} : vector<9x256xf32> to vector<1x256xf32>
    %490 = vector.broadcast %489 : vector<1x256xf32> to vector<4x256xf32>
    %491 = arith.mulf %488, %490 : vector<4x256xf32>
    %492 = vector.extract_strided_slice %491 {offsets = [0, 0], sizes = [1, 256], strides = [1, 1]} : vector<4x256xf32> to vector<1x256xf32>
    %493 = vector.extract_strided_slice %3 {offsets = [24, 0, 0], sizes = [1, 4, 1], strides = [1, 1, 1]} : vector<36x4x1xf32> to vector<1x4x1xf32>
    %494 = vector.shape_cast %493 : vector<1x4x1xf32> to vector<4x1xf32>
    %495 = vector.broadcast %492 : vector<1x256xf32> to vector<4x256xf32>
    %496 = vector.broadcast %494 : vector<4x1xf32> to vector<4x256xf32>
    %497 = arith.mulf %495, %496 : vector<4x256xf32>
    %498 = arith.addf %487, %497 : vector<4x256xf32>
    %499 = vector.extract_strided_slice %491 {offsets = [1, 0], sizes = [1, 256], strides = [1, 1]} : vector<4x256xf32> to vector<1x256xf32>
    %500 = vector.extract_strided_slice %3 {offsets = [25, 0, 0], sizes = [1, 4, 1], strides = [1, 1, 1]} : vector<36x4x1xf32> to vector<1x4x1xf32>
    %501 = vector.shape_cast %500 : vector<1x4x1xf32> to vector<4x1xf32>
    %502 = vector.broadcast %499 : vector<1x256xf32> to vector<4x256xf32>
    %503 = vector.broadcast %501 : vector<4x1xf32> to vector<4x256xf32>
    %504 = arith.mulf %502, %503 : vector<4x256xf32>
    %505 = arith.addf %498, %504 : vector<4x256xf32>
    %506 = vector.extract_strided_slice %491 {offsets = [2, 0], sizes = [1, 256], strides = [1, 1]} : vector<4x256xf32> to vector<1x256xf32>
    %507 = vector.extract_strided_slice %3 {offsets = [26, 0, 0], sizes = [1, 4, 1], strides = [1, 1, 1]} : vector<36x4x1xf32> to vector<1x4x1xf32>
    %508 = vector.shape_cast %507 : vector<1x4x1xf32> to vector<4x1xf32>
    %509 = vector.broadcast %506 : vector<1x256xf32> to vector<4x256xf32>
    %510 = vector.broadcast %508 : vector<4x1xf32> to vector<4x256xf32>
    %511 = arith.mulf %509, %510 : vector<4x256xf32>
    %512 = arith.addf %505, %511 : vector<4x256xf32>
    %513 = vector.extract_strided_slice %491 {offsets = [3, 0], sizes = [1, 256], strides = [1, 1]} : vector<4x256xf32> to vector<1x256xf32>
    %514 = vector.extract_strided_slice %3 {offsets = [27, 0, 0], sizes = [1, 4, 1], strides = [1, 1, 1]} : vector<36x4x1xf32> to vector<1x4x1xf32>
    %515 = vector.shape_cast %514 : vector<1x4x1xf32> to vector<4x1xf32>
    %516 = vector.broadcast %513 : vector<1x256xf32> to vector<4x256xf32>
    %517 = vector.broadcast %515 : vector<4x1xf32> to vector<4x256xf32>
    %518 = arith.mulf %516, %517 : vector<4x256xf32>
    %519 = arith.addf %512, %518 : vector<4x256xf32>
    %c240_i32_21 = arith.constant 240 : i32
    %520 = tpu.dynamic_rotate %297 by %c240_i32_21 dim 1 : vector<4x256xf32>, i32 -> vector<4x256xf32>
    %521 = vector.extract_strided_slice %1 {offsets = [7, 0], sizes = [1, 256], strides = [1, 1]} : vector<9x256xf32> to vector<1x256xf32>
    %522 = vector.broadcast %521 : vector<1x256xf32> to vector<4x256xf32>
    %523 = arith.mulf %520, %522 : vector<4x256xf32>
    %524 = vector.extract_strided_slice %523 {offsets = [0, 0], sizes = [1, 256], strides = [1, 1]} : vector<4x256xf32> to vector<1x256xf32>
    %525 = vector.extract_strided_slice %3 {offsets = [28, 0, 0], sizes = [1, 4, 1], strides = [1, 1, 1]} : vector<36x4x1xf32> to vector<1x4x1xf32>
    %526 = vector.shape_cast %525 : vector<1x4x1xf32> to vector<4x1xf32>
    %527 = vector.broadcast %524 : vector<1x256xf32> to vector<4x256xf32>
    %528 = vector.broadcast %526 : vector<4x1xf32> to vector<4x256xf32>
    %529 = arith.mulf %527, %528 : vector<4x256xf32>
    %530 = arith.addf %519, %529 : vector<4x256xf32>
    %531 = vector.extract_strided_slice %523 {offsets = [1, 0], sizes = [1, 256], strides = [1, 1]} : vector<4x256xf32> to vector<1x256xf32>
    %532 = vector.extract_strided_slice %3 {offsets = [29, 0, 0], sizes = [1, 4, 1], strides = [1, 1, 1]} : vector<36x4x1xf32> to vector<1x4x1xf32>
    %533 = vector.shape_cast %532 : vector<1x4x1xf32> to vector<4x1xf32>
    %534 = vector.broadcast %531 : vector<1x256xf32> to vector<4x256xf32>
    %535 = vector.broadcast %533 : vector<4x1xf32> to vector<4x256xf32>
    %536 = arith.mulf %534, %535 : vector<4x256xf32>
    %537 = arith.addf %530, %536 : vector<4x256xf32>
    %538 = vector.extract_strided_slice %523 {offsets = [2, 0], sizes = [1, 256], strides = [1, 1]} : vector<4x256xf32> to vector<1x256xf32>
    %539 = vector.extract_strided_slice %3 {offsets = [30, 0, 0], sizes = [1, 4, 1], strides = [1, 1, 1]} : vector<36x4x1xf32> to vector<1x4x1xf32>
    %540 = vector.shape_cast %539 : vector<1x4x1xf32> to vector<4x1xf32>
    %541 = vector.broadcast %538 : vector<1x256xf32> to vector<4x256xf32>
    %542 = vector.broadcast %540 : vector<4x1xf32> to vector<4x256xf32>
    %543 = arith.mulf %541, %542 : vector<4x256xf32>
    %544 = arith.addf %537, %543 : vector<4x256xf32>
    %545 = vector.extract_strided_slice %523 {offsets = [3, 0], sizes = [1, 256], strides = [1, 1]} : vector<4x256xf32> to vector<1x256xf32>
    %546 = vector.extract_strided_slice %3 {offsets = [31, 0, 0], sizes = [1, 4, 1], strides = [1, 1, 1]} : vector<36x4x1xf32> to vector<1x4x1xf32>
    %547 = vector.shape_cast %546 : vector<1x4x1xf32> to vector<4x1xf32>
    %548 = vector.broadcast %545 : vector<1x256xf32> to vector<4x256xf32>
    %549 = vector.broadcast %547 : vector<4x1xf32> to vector<4x256xf32>
    %550 = arith.mulf %548, %549 : vector<4x256xf32>
    %551 = arith.addf %544, %550 : vector<4x256xf32>
    %c239_i32_22 = arith.constant 239 : i32
    %552 = tpu.dynamic_rotate %297 by %c239_i32_22 dim 1 : vector<4x256xf32>, i32 -> vector<4x256xf32>
    %553 = vector.extract_strided_slice %1 {offsets = [8, 0], sizes = [1, 256], strides = [1, 1]} : vector<9x256xf32> to vector<1x256xf32>
    %554 = vector.broadcast %553 : vector<1x256xf32> to vector<4x256xf32>
    %555 = arith.mulf %552, %554 : vector<4x256xf32>
    %556 = vector.extract_strided_slice %555 {offsets = [0, 0], sizes = [1, 256], strides = [1, 1]} : vector<4x256xf32> to vector<1x256xf32>
    %557 = vector.extract_strided_slice %3 {offsets = [32, 0, 0], sizes = [1, 4, 1], strides = [1, 1, 1]} : vector<36x4x1xf32> to vector<1x4x1xf32>
    %558 = vector.shape_cast %557 : vector<1x4x1xf32> to vector<4x1xf32>
    %559 = vector.broadcast %556 : vector<1x256xf32> to vector<4x256xf32>
    %560 = vector.broadcast %558 : vector<4x1xf32> to vector<4x256xf32>
    %561 = arith.mulf %559, %560 : vector<4x256xf32>
    %562 = arith.addf %551, %561 : vector<4x256xf32>
    %563 = vector.extract_strided_slice %555 {offsets = [1, 0], sizes = [1, 256], strides = [1, 1]} : vector<4x256xf32> to vector<1x256xf32>
    %564 = vector.extract_strided_slice %3 {offsets = [33, 0, 0], sizes = [1, 4, 1], strides = [1, 1, 1]} : vector<36x4x1xf32> to vector<1x4x1xf32>
    %565 = vector.shape_cast %564 : vector<1x4x1xf32> to vector<4x1xf32>
    %566 = vector.broadcast %563 : vector<1x256xf32> to vector<4x256xf32>
    %567 = vector.broadcast %565 : vector<4x1xf32> to vector<4x256xf32>
    %568 = arith.mulf %566, %567 : vector<4x256xf32>
    %569 = arith.addf %562, %568 : vector<4x256xf32>
    %570 = vector.extract_strided_slice %555 {offsets = [2, 0], sizes = [1, 256], strides = [1, 1]} : vector<4x256xf32> to vector<1x256xf32>
    %571 = vector.extract_strided_slice %3 {offsets = [34, 0, 0], sizes = [1, 4, 1], strides = [1, 1, 1]} : vector<36x4x1xf32> to vector<1x4x1xf32>
    %572 = vector.shape_cast %571 : vector<1x4x1xf32> to vector<4x1xf32>
    %573 = vector.broadcast %570 : vector<1x256xf32> to vector<4x256xf32>
    %574 = vector.broadcast %572 : vector<4x1xf32> to vector<4x256xf32>
    %575 = arith.mulf %573, %574 : vector<4x256xf32>
    %576 = arith.addf %569, %575 : vector<4x256xf32>
    %577 = vector.extract_strided_slice %555 {offsets = [3, 0], sizes = [1, 256], strides = [1, 1]} : vector<4x256xf32> to vector<1x256xf32>
    %578 = vector.extract_strided_slice %3 {offsets = [35, 0, 0], sizes = [1, 4, 1], strides = [1, 1, 1]} : vector<36x4x1xf32> to vector<1x4x1xf32>
    %579 = vector.shape_cast %578 : vector<1x4x1xf32> to vector<4x1xf32>
    %580 = vector.broadcast %577 : vector<1x256xf32> to vector<4x256xf32>
    %581 = vector.broadcast %579 : vector<4x1xf32> to vector<4x256xf32>
    %582 = arith.mulf %580, %581 : vector<4x256xf32>
    %583 = arith.addf %576, %582 : vector<4x256xf32>
    %584 = arith.addf %583, %7 : vector<4x256xf32>
    %cst_23 = arith.constant 0.000000e+00 : f32
    %cst_24 = arith.constant 2.000000e+01 : f32
    %585 = vector.broadcast %cst_23 : f32 to vector<4x256xf32>
    %586 = arith.maximumf %585, %584 : vector<4x256xf32>
    %587 = vector.broadcast %cst_24 : f32 to vector<4x256xf32>
    %588 = arith.minimumf %587, %586 : vector<4x256xf32>
    %589 = vector.extract_strided_slice %0 {offsets = [1, 0, 0], sizes = [1, 4, 256], strides = [1, 1, 1]} : vector<2x4x256xf32> to vector<1x4x256xf32>
    %590 = vector.shape_cast %589 : vector<1x4x256xf32> to vector<4x256xf32>
    %591 = vector.shape_cast %4 : vector<4x1xf32> to vector<4x1xf32>
    %592 = vector.broadcast %591 : vector<4x1xf32> to vector<4x256xf32>
    %c17_i32_25 = arith.constant 17 : i32
    %593 = tpu.dynamic_rotate %590 by %c17_i32_25 dim 1 : vector<4x256xf32>, i32 -> vector<4x256xf32>
    %594 = vector.extract_strided_slice %1 {offsets = [0, 0], sizes = [1, 256], strides = [1, 1]} : vector<9x256xf32> to vector<1x256xf32>
    %595 = vector.broadcast %594 : vector<1x256xf32> to vector<4x256xf32>
    %596 = arith.mulf %593, %595 : vector<4x256xf32>
    %597 = vector.extract_strided_slice %596 {offsets = [0, 0], sizes = [1, 256], strides = [1, 1]} : vector<4x256xf32> to vector<1x256xf32>
    %598 = vector.extract_strided_slice %2 {offsets = [0, 0, 0], sizes = [1, 4, 1], strides = [1, 1, 1]} : vector<36x4x1xf32> to vector<1x4x1xf32>
    %599 = vector.shape_cast %598 : vector<1x4x1xf32> to vector<4x1xf32>
    %600 = vector.broadcast %597 : vector<1x256xf32> to vector<4x256xf32>
    %601 = vector.broadcast %599 : vector<4x1xf32> to vector<4x256xf32>
    %602 = arith.mulf %600, %601 : vector<4x256xf32>
    %603 = arith.addf %592, %602 : vector<4x256xf32>
    %604 = vector.extract_strided_slice %596 {offsets = [1, 0], sizes = [1, 256], strides = [1, 1]} : vector<4x256xf32> to vector<1x256xf32>
    %605 = vector.extract_strided_slice %2 {offsets = [1, 0, 0], sizes = [1, 4, 1], strides = [1, 1, 1]} : vector<36x4x1xf32> to vector<1x4x1xf32>
    %606 = vector.shape_cast %605 : vector<1x4x1xf32> to vector<4x1xf32>
    %607 = vector.broadcast %604 : vector<1x256xf32> to vector<4x256xf32>
    %608 = vector.broadcast %606 : vector<4x1xf32> to vector<4x256xf32>
    %609 = arith.mulf %607, %608 : vector<4x256xf32>
    %610 = arith.addf %603, %609 : vector<4x256xf32>
    %611 = vector.extract_strided_slice %596 {offsets = [2, 0], sizes = [1, 256], strides = [1, 1]} : vector<4x256xf32> to vector<1x256xf32>
    %612 = vector.extract_strided_slice %2 {offsets = [2, 0, 0], sizes = [1, 4, 1], strides = [1, 1, 1]} : vector<36x4x1xf32> to vector<1x4x1xf32>
    %613 = vector.shape_cast %612 : vector<1x4x1xf32> to vector<4x1xf32>
    %614 = vector.broadcast %611 : vector<1x256xf32> to vector<4x256xf32>
    %615 = vector.broadcast %613 : vector<4x1xf32> to vector<4x256xf32>
    %616 = arith.mulf %614, %615 : vector<4x256xf32>
    %617 = arith.addf %610, %616 : vector<4x256xf32>
    %618 = vector.extract_strided_slice %596 {offsets = [3, 0], sizes = [1, 256], strides = [1, 1]} : vector<4x256xf32> to vector<1x256xf32>
    %619 = vector.extract_strided_slice %2 {offsets = [3, 0, 0], sizes = [1, 4, 1], strides = [1, 1, 1]} : vector<36x4x1xf32> to vector<1x4x1xf32>
    %620 = vector.shape_cast %619 : vector<1x4x1xf32> to vector<4x1xf32>
    %621 = vector.broadcast %618 : vector<1x256xf32> to vector<4x256xf32>
    %622 = vector.broadcast %620 : vector<4x1xf32> to vector<4x256xf32>
    %623 = arith.mulf %621, %622 : vector<4x256xf32>
    %624 = arith.addf %617, %623 : vector<4x256xf32>
    %c16_i32_26 = arith.constant 16 : i32
    %625 = tpu.dynamic_rotate %590 by %c16_i32_26 dim 1 : vector<4x256xf32>, i32 -> vector<4x256xf32>
    %626 = vector.extract_strided_slice %1 {offsets = [1, 0], sizes = [1, 256], strides = [1, 1]} : vector<9x256xf32> to vector<1x256xf32>
    %627 = vector.broadcast %626 : vector<1x256xf32> to vector<4x256xf32>
    %628 = arith.mulf %625, %627 : vector<4x256xf32>
    %629 = vector.extract_strided_slice %628 {offsets = [0, 0], sizes = [1, 256], strides = [1, 1]} : vector<4x256xf32> to vector<1x256xf32>
    %630 = vector.extract_strided_slice %2 {offsets = [4, 0, 0], sizes = [1, 4, 1], strides = [1, 1, 1]} : vector<36x4x1xf32> to vector<1x4x1xf32>
    %631 = vector.shape_cast %630 : vector<1x4x1xf32> to vector<4x1xf32>
    %632 = vector.broadcast %629 : vector<1x256xf32> to vector<4x256xf32>
    %633 = vector.broadcast %631 : vector<4x1xf32> to vector<4x256xf32>
    %634 = arith.mulf %632, %633 : vector<4x256xf32>
    %635 = arith.addf %624, %634 : vector<4x256xf32>
    %636 = vector.extract_strided_slice %628 {offsets = [1, 0], sizes = [1, 256], strides = [1, 1]} : vector<4x256xf32> to vector<1x256xf32>
    %637 = vector.extract_strided_slice %2 {offsets = [5, 0, 0], sizes = [1, 4, 1], strides = [1, 1, 1]} : vector<36x4x1xf32> to vector<1x4x1xf32>
    %638 = vector.shape_cast %637 : vector<1x4x1xf32> to vector<4x1xf32>
    %639 = vector.broadcast %636 : vector<1x256xf32> to vector<4x256xf32>
    %640 = vector.broadcast %638 : vector<4x1xf32> to vector<4x256xf32>
    %641 = arith.mulf %639, %640 : vector<4x256xf32>
    %642 = arith.addf %635, %641 : vector<4x256xf32>
    %643 = vector.extract_strided_slice %628 {offsets = [2, 0], sizes = [1, 256], strides = [1, 1]} : vector<4x256xf32> to vector<1x256xf32>
    %644 = vector.extract_strided_slice %2 {offsets = [6, 0, 0], sizes = [1, 4, 1], strides = [1, 1, 1]} : vector<36x4x1xf32> to vector<1x4x1xf32>
    %645 = vector.shape_cast %644 : vector<1x4x1xf32> to vector<4x1xf32>
    %646 = vector.broadcast %643 : vector<1x256xf32> to vector<4x256xf32>
    %647 = vector.broadcast %645 : vector<4x1xf32> to vector<4x256xf32>
    %648 = arith.mulf %646, %647 : vector<4x256xf32>
    %649 = arith.addf %642, %648 : vector<4x256xf32>
    %650 = vector.extract_strided_slice %628 {offsets = [3, 0], sizes = [1, 256], strides = [1, 1]} : vector<4x256xf32> to vector<1x256xf32>
    %651 = vector.extract_strided_slice %2 {offsets = [7, 0, 0], sizes = [1, 4, 1], strides = [1, 1, 1]} : vector<36x4x1xf32> to vector<1x4x1xf32>
    %652 = vector.shape_cast %651 : vector<1x4x1xf32> to vector<4x1xf32>
    %653 = vector.broadcast %650 : vector<1x256xf32> to vector<4x256xf32>
    %654 = vector.broadcast %652 : vector<4x1xf32> to vector<4x256xf32>
    %655 = arith.mulf %653, %654 : vector<4x256xf32>
    %656 = arith.addf %649, %655 : vector<4x256xf32>
    %c15_i32_27 = arith.constant 15 : i32
    %657 = tpu.dynamic_rotate %590 by %c15_i32_27 dim 1 : vector<4x256xf32>, i32 -> vector<4x256xf32>
    %658 = vector.extract_strided_slice %1 {offsets = [2, 0], sizes = [1, 256], strides = [1, 1]} : vector<9x256xf32> to vector<1x256xf32>
    %659 = vector.broadcast %658 : vector<1x256xf32> to vector<4x256xf32>
    %660 = arith.mulf %657, %659 : vector<4x256xf32>
    %661 = vector.extract_strided_slice %660 {offsets = [0, 0], sizes = [1, 256], strides = [1, 1]} : vector<4x256xf32> to vector<1x256xf32>
    %662 = vector.extract_strided_slice %2 {offsets = [8, 0, 0], sizes = [1, 4, 1], strides = [1, 1, 1]} : vector<36x4x1xf32> to vector<1x4x1xf32>
    %663 = vector.shape_cast %662 : vector<1x4x1xf32> to vector<4x1xf32>
    %664 = vector.broadcast %661 : vector<1x256xf32> to vector<4x256xf32>
    %665 = vector.broadcast %663 : vector<4x1xf32> to vector<4x256xf32>
    %666 = arith.mulf %664, %665 : vector<4x256xf32>
    %667 = arith.addf %656, %666 : vector<4x256xf32>
    %668 = vector.extract_strided_slice %660 {offsets = [1, 0], sizes = [1, 256], strides = [1, 1]} : vector<4x256xf32> to vector<1x256xf32>
    %669 = vector.extract_strided_slice %2 {offsets = [9, 0, 0], sizes = [1, 4, 1], strides = [1, 1, 1]} : vector<36x4x1xf32> to vector<1x4x1xf32>
    %670 = vector.shape_cast %669 : vector<1x4x1xf32> to vector<4x1xf32>
    %671 = vector.broadcast %668 : vector<1x256xf32> to vector<4x256xf32>
    %672 = vector.broadcast %670 : vector<4x1xf32> to vector<4x256xf32>
    %673 = arith.mulf %671, %672 : vector<4x256xf32>
    %674 = arith.addf %667, %673 : vector<4x256xf32>
    %675 = vector.extract_strided_slice %660 {offsets = [2, 0], sizes = [1, 256], strides = [1, 1]} : vector<4x256xf32> to vector<1x256xf32>
    %676 = vector.extract_strided_slice %2 {offsets = [10, 0, 0], sizes = [1, 4, 1], strides = [1, 1, 1]} : vector<36x4x1xf32> to vector<1x4x1xf32>
    %677 = vector.shape_cast %676 : vector<1x4x1xf32> to vector<4x1xf32>
    %678 = vector.broadcast %675 : vector<1x256xf32> to vector<4x256xf32>
    %679 = vector.broadcast %677 : vector<4x1xf32> to vector<4x256xf32>
    %680 = arith.mulf %678, %679 : vector<4x256xf32>
    %681 = arith.addf %674, %680 : vector<4x256xf32>
    %682 = vector.extract_strided_slice %660 {offsets = [3, 0], sizes = [1, 256], strides = [1, 1]} : vector<4x256xf32> to vector<1x256xf32>
    %683 = vector.extract_strided_slice %2 {offsets = [11, 0, 0], sizes = [1, 4, 1], strides = [1, 1, 1]} : vector<36x4x1xf32> to vector<1x4x1xf32>
    %684 = vector.shape_cast %683 : vector<1x4x1xf32> to vector<4x1xf32>
    %685 = vector.broadcast %682 : vector<1x256xf32> to vector<4x256xf32>
    %686 = vector.broadcast %684 : vector<4x1xf32> to vector<4x256xf32>
    %687 = arith.mulf %685, %686 : vector<4x256xf32>
    %688 = arith.addf %681, %687 : vector<4x256xf32>
    %c1_i32_28 = arith.constant 1 : i32
    %689 = tpu.dynamic_rotate %590 by %c1_i32_28 dim 1 : vector<4x256xf32>, i32 -> vector<4x256xf32>
    %690 = vector.extract_strided_slice %1 {offsets = [3, 0], sizes = [1, 256], strides = [1, 1]} : vector<9x256xf32> to vector<1x256xf32>
    %691 = vector.broadcast %690 : vector<1x256xf32> to vector<4x256xf32>
    %692 = arith.mulf %689, %691 : vector<4x256xf32>
    %693 = vector.extract_strided_slice %692 {offsets = [0, 0], sizes = [1, 256], strides = [1, 1]} : vector<4x256xf32> to vector<1x256xf32>
    %694 = vector.extract_strided_slice %2 {offsets = [12, 0, 0], sizes = [1, 4, 1], strides = [1, 1, 1]} : vector<36x4x1xf32> to vector<1x4x1xf32>
    %695 = vector.shape_cast %694 : vector<1x4x1xf32> to vector<4x1xf32>
    %696 = vector.broadcast %693 : vector<1x256xf32> to vector<4x256xf32>
    %697 = vector.broadcast %695 : vector<4x1xf32> to vector<4x256xf32>
    %698 = arith.mulf %696, %697 : vector<4x256xf32>
    %699 = arith.addf %688, %698 : vector<4x256xf32>
    %700 = vector.extract_strided_slice %692 {offsets = [1, 0], sizes = [1, 256], strides = [1, 1]} : vector<4x256xf32> to vector<1x256xf32>
    %701 = vector.extract_strided_slice %2 {offsets = [13, 0, 0], sizes = [1, 4, 1], strides = [1, 1, 1]} : vector<36x4x1xf32> to vector<1x4x1xf32>
    %702 = vector.shape_cast %701 : vector<1x4x1xf32> to vector<4x1xf32>
    %703 = vector.broadcast %700 : vector<1x256xf32> to vector<4x256xf32>
    %704 = vector.broadcast %702 : vector<4x1xf32> to vector<4x256xf32>
    %705 = arith.mulf %703, %704 : vector<4x256xf32>
    %706 = arith.addf %699, %705 : vector<4x256xf32>
    %707 = vector.extract_strided_slice %692 {offsets = [2, 0], sizes = [1, 256], strides = [1, 1]} : vector<4x256xf32> to vector<1x256xf32>
    %708 = vector.extract_strided_slice %2 {offsets = [14, 0, 0], sizes = [1, 4, 1], strides = [1, 1, 1]} : vector<36x4x1xf32> to vector<1x4x1xf32>
    %709 = vector.shape_cast %708 : vector<1x4x1xf32> to vector<4x1xf32>
    %710 = vector.broadcast %707 : vector<1x256xf32> to vector<4x256xf32>
    %711 = vector.broadcast %709 : vector<4x1xf32> to vector<4x256xf32>
    %712 = arith.mulf %710, %711 : vector<4x256xf32>
    %713 = arith.addf %706, %712 : vector<4x256xf32>
    %714 = vector.extract_strided_slice %692 {offsets = [3, 0], sizes = [1, 256], strides = [1, 1]} : vector<4x256xf32> to vector<1x256xf32>
    %715 = vector.extract_strided_slice %2 {offsets = [15, 0, 0], sizes = [1, 4, 1], strides = [1, 1, 1]} : vector<36x4x1xf32> to vector<1x4x1xf32>
    %716 = vector.shape_cast %715 : vector<1x4x1xf32> to vector<4x1xf32>
    %717 = vector.broadcast %714 : vector<1x256xf32> to vector<4x256xf32>
    %718 = vector.broadcast %716 : vector<4x1xf32> to vector<4x256xf32>
    %719 = arith.mulf %717, %718 : vector<4x256xf32>
    %720 = arith.addf %713, %719 : vector<4x256xf32>
    %721 = vector.extract_strided_slice %590 {offsets = [0, 0], sizes = [1, 256], strides = [1, 1]} : vector<4x256xf32> to vector<1x256xf32>
    %722 = vector.extract_strided_slice %2 {offsets = [16, 0, 0], sizes = [1, 4, 1], strides = [1, 1, 1]} : vector<36x4x1xf32> to vector<1x4x1xf32>
    %723 = vector.shape_cast %722 : vector<1x4x1xf32> to vector<4x1xf32>
    %724 = vector.broadcast %721 : vector<1x256xf32> to vector<4x256xf32>
    %725 = vector.broadcast %723 : vector<4x1xf32> to vector<4x256xf32>
    %726 = arith.mulf %724, %725 : vector<4x256xf32>
    %727 = arith.addf %720, %726 : vector<4x256xf32>
    %728 = vector.extract_strided_slice %590 {offsets = [1, 0], sizes = [1, 256], strides = [1, 1]} : vector<4x256xf32> to vector<1x256xf32>
    %729 = vector.extract_strided_slice %2 {offsets = [17, 0, 0], sizes = [1, 4, 1], strides = [1, 1, 1]} : vector<36x4x1xf32> to vector<1x4x1xf32>
    %730 = vector.shape_cast %729 : vector<1x4x1xf32> to vector<4x1xf32>
    %731 = vector.broadcast %728 : vector<1x256xf32> to vector<4x256xf32>
    %732 = vector.broadcast %730 : vector<4x1xf32> to vector<4x256xf32>
    %733 = arith.mulf %731, %732 : vector<4x256xf32>
    %734 = arith.addf %727, %733 : vector<4x256xf32>
    %735 = vector.extract_strided_slice %590 {offsets = [2, 0], sizes = [1, 256], strides = [1, 1]} : vector<4x256xf32> to vector<1x256xf32>
    %736 = vector.extract_strided_slice %2 {offsets = [18, 0, 0], sizes = [1, 4, 1], strides = [1, 1, 1]} : vector<36x4x1xf32> to vector<1x4x1xf32>
    %737 = vector.shape_cast %736 : vector<1x4x1xf32> to vector<4x1xf32>
    %738 = vector.broadcast %735 : vector<1x256xf32> to vector<4x256xf32>
    %739 = vector.broadcast %737 : vector<4x1xf32> to vector<4x256xf32>
    %740 = arith.mulf %738, %739 : vector<4x256xf32>
    %741 = arith.addf %734, %740 : vector<4x256xf32>
    %742 = vector.extract_strided_slice %590 {offsets = [3, 0], sizes = [1, 256], strides = [1, 1]} : vector<4x256xf32> to vector<1x256xf32>
    %743 = vector.extract_strided_slice %2 {offsets = [19, 0, 0], sizes = [1, 4, 1], strides = [1, 1, 1]} : vector<36x4x1xf32> to vector<1x4x1xf32>
    %744 = vector.shape_cast %743 : vector<1x4x1xf32> to vector<4x1xf32>
    %745 = vector.broadcast %742 : vector<1x256xf32> to vector<4x256xf32>
    %746 = vector.broadcast %744 : vector<4x1xf32> to vector<4x256xf32>
    %747 = arith.mulf %745, %746 : vector<4x256xf32>
    %748 = arith.addf %741, %747 : vector<4x256xf32>
    %c255_i32_29 = arith.constant 255 : i32
    %749 = tpu.dynamic_rotate %590 by %c255_i32_29 dim 1 : vector<4x256xf32>, i32 -> vector<4x256xf32>
    %750 = vector.extract_strided_slice %1 {offsets = [5, 0], sizes = [1, 256], strides = [1, 1]} : vector<9x256xf32> to vector<1x256xf32>
    %751 = vector.broadcast %750 : vector<1x256xf32> to vector<4x256xf32>
    %752 = arith.mulf %749, %751 : vector<4x256xf32>
    %753 = vector.extract_strided_slice %752 {offsets = [0, 0], sizes = [1, 256], strides = [1, 1]} : vector<4x256xf32> to vector<1x256xf32>
    %754 = vector.extract_strided_slice %2 {offsets = [20, 0, 0], sizes = [1, 4, 1], strides = [1, 1, 1]} : vector<36x4x1xf32> to vector<1x4x1xf32>
    %755 = vector.shape_cast %754 : vector<1x4x1xf32> to vector<4x1xf32>
    %756 = vector.broadcast %753 : vector<1x256xf32> to vector<4x256xf32>
    %757 = vector.broadcast %755 : vector<4x1xf32> to vector<4x256xf32>
    %758 = arith.mulf %756, %757 : vector<4x256xf32>
    %759 = arith.addf %748, %758 : vector<4x256xf32>
    %760 = vector.extract_strided_slice %752 {offsets = [1, 0], sizes = [1, 256], strides = [1, 1]} : vector<4x256xf32> to vector<1x256xf32>
    %761 = vector.extract_strided_slice %2 {offsets = [21, 0, 0], sizes = [1, 4, 1], strides = [1, 1, 1]} : vector<36x4x1xf32> to vector<1x4x1xf32>
    %762 = vector.shape_cast %761 : vector<1x4x1xf32> to vector<4x1xf32>
    %763 = vector.broadcast %760 : vector<1x256xf32> to vector<4x256xf32>
    %764 = vector.broadcast %762 : vector<4x1xf32> to vector<4x256xf32>
    %765 = arith.mulf %763, %764 : vector<4x256xf32>
    %766 = arith.addf %759, %765 : vector<4x256xf32>
    %767 = vector.extract_strided_slice %752 {offsets = [2, 0], sizes = [1, 256], strides = [1, 1]} : vector<4x256xf32> to vector<1x256xf32>
    %768 = vector.extract_strided_slice %2 {offsets = [22, 0, 0], sizes = [1, 4, 1], strides = [1, 1, 1]} : vector<36x4x1xf32> to vector<1x4x1xf32>
    %769 = vector.shape_cast %768 : vector<1x4x1xf32> to vector<4x1xf32>
    %770 = vector.broadcast %767 : vector<1x256xf32> to vector<4x256xf32>
    %771 = vector.broadcast %769 : vector<4x1xf32> to vector<4x256xf32>
    %772 = arith.mulf %770, %771 : vector<4x256xf32>
    %773 = arith.addf %766, %772 : vector<4x256xf32>
    %774 = vector.extract_strided_slice %752 {offsets = [3, 0], sizes = [1, 256], strides = [1, 1]} : vector<4x256xf32> to vector<1x256xf32>
    %775 = vector.extract_strided_slice %2 {offsets = [23, 0, 0], sizes = [1, 4, 1], strides = [1, 1, 1]} : vector<36x4x1xf32> to vector<1x4x1xf32>
    %776 = vector.shape_cast %775 : vector<1x4x1xf32> to vector<4x1xf32>
    %777 = vector.broadcast %774 : vector<1x256xf32> to vector<4x256xf32>
    %778 = vector.broadcast %776 : vector<4x1xf32> to vector<4x256xf32>
    %779 = arith.mulf %777, %778 : vector<4x256xf32>
    %780 = arith.addf %773, %779 : vector<4x256xf32>
    %c241_i32_30 = arith.constant 241 : i32
    %781 = tpu.dynamic_rotate %590 by %c241_i32_30 dim 1 : vector<4x256xf32>, i32 -> vector<4x256xf32>
    %782 = vector.extract_strided_slice %1 {offsets = [6, 0], sizes = [1, 256], strides = [1, 1]} : vector<9x256xf32> to vector<1x256xf32>
    %783 = vector.broadcast %782 : vector<1x256xf32> to vector<4x256xf32>
    %784 = arith.mulf %781, %783 : vector<4x256xf32>
    %785 = vector.extract_strided_slice %784 {offsets = [0, 0], sizes = [1, 256], strides = [1, 1]} : vector<4x256xf32> to vector<1x256xf32>
    %786 = vector.extract_strided_slice %2 {offsets = [24, 0, 0], sizes = [1, 4, 1], strides = [1, 1, 1]} : vector<36x4x1xf32> to vector<1x4x1xf32>
    %787 = vector.shape_cast %786 : vector<1x4x1xf32> to vector<4x1xf32>
    %788 = vector.broadcast %785 : vector<1x256xf32> to vector<4x256xf32>
    %789 = vector.broadcast %787 : vector<4x1xf32> to vector<4x256xf32>
    %790 = arith.mulf %788, %789 : vector<4x256xf32>
    %791 = arith.addf %780, %790 : vector<4x256xf32>
    %792 = vector.extract_strided_slice %784 {offsets = [1, 0], sizes = [1, 256], strides = [1, 1]} : vector<4x256xf32> to vector<1x256xf32>
    %793 = vector.extract_strided_slice %2 {offsets = [25, 0, 0], sizes = [1, 4, 1], strides = [1, 1, 1]} : vector<36x4x1xf32> to vector<1x4x1xf32>
    %794 = vector.shape_cast %793 : vector<1x4x1xf32> to vector<4x1xf32>
    %795 = vector.broadcast %792 : vector<1x256xf32> to vector<4x256xf32>
    %796 = vector.broadcast %794 : vector<4x1xf32> to vector<4x256xf32>
    %797 = arith.mulf %795, %796 : vector<4x256xf32>
    %798 = arith.addf %791, %797 : vector<4x256xf32>
    %799 = vector.extract_strided_slice %784 {offsets = [2, 0], sizes = [1, 256], strides = [1, 1]} : vector<4x256xf32> to vector<1x256xf32>
    %800 = vector.extract_strided_slice %2 {offsets = [26, 0, 0], sizes = [1, 4, 1], strides = [1, 1, 1]} : vector<36x4x1xf32> to vector<1x4x1xf32>
    %801 = vector.shape_cast %800 : vector<1x4x1xf32> to vector<4x1xf32>
    %802 = vector.broadcast %799 : vector<1x256xf32> to vector<4x256xf32>
    %803 = vector.broadcast %801 : vector<4x1xf32> to vector<4x256xf32>
    %804 = arith.mulf %802, %803 : vector<4x256xf32>
    %805 = arith.addf %798, %804 : vector<4x256xf32>
    %806 = vector.extract_strided_slice %784 {offsets = [3, 0], sizes = [1, 256], strides = [1, 1]} : vector<4x256xf32> to vector<1x256xf32>
    %807 = vector.extract_strided_slice %2 {offsets = [27, 0, 0], sizes = [1, 4, 1], strides = [1, 1, 1]} : vector<36x4x1xf32> to vector<1x4x1xf32>
    %808 = vector.shape_cast %807 : vector<1x4x1xf32> to vector<4x1xf32>
    %809 = vector.broadcast %806 : vector<1x256xf32> to vector<4x256xf32>
    %810 = vector.broadcast %808 : vector<4x1xf32> to vector<4x256xf32>
    %811 = arith.mulf %809, %810 : vector<4x256xf32>
    %812 = arith.addf %805, %811 : vector<4x256xf32>
    %c240_i32_31 = arith.constant 240 : i32
    %813 = tpu.dynamic_rotate %590 by %c240_i32_31 dim 1 : vector<4x256xf32>, i32 -> vector<4x256xf32>
    %814 = vector.extract_strided_slice %1 {offsets = [7, 0], sizes = [1, 256], strides = [1, 1]} : vector<9x256xf32> to vector<1x256xf32>
    %815 = vector.broadcast %814 : vector<1x256xf32> to vector<4x256xf32>
    %816 = arith.mulf %813, %815 : vector<4x256xf32>
    %817 = vector.extract_strided_slice %816 {offsets = [0, 0], sizes = [1, 256], strides = [1, 1]} : vector<4x256xf32> to vector<1x256xf32>
    %818 = vector.extract_strided_slice %2 {offsets = [28, 0, 0], sizes = [1, 4, 1], strides = [1, 1, 1]} : vector<36x4x1xf32> to vector<1x4x1xf32>
    %819 = vector.shape_cast %818 : vector<1x4x1xf32> to vector<4x1xf32>
    %820 = vector.broadcast %817 : vector<1x256xf32> to vector<4x256xf32>
    %821 = vector.broadcast %819 : vector<4x1xf32> to vector<4x256xf32>
    %822 = arith.mulf %820, %821 : vector<4x256xf32>
    %823 = arith.addf %812, %822 : vector<4x256xf32>
    %824 = vector.extract_strided_slice %816 {offsets = [1, 0], sizes = [1, 256], strides = [1, 1]} : vector<4x256xf32> to vector<1x256xf32>
    %825 = vector.extract_strided_slice %2 {offsets = [29, 0, 0], sizes = [1, 4, 1], strides = [1, 1, 1]} : vector<36x4x1xf32> to vector<1x4x1xf32>
    %826 = vector.shape_cast %825 : vector<1x4x1xf32> to vector<4x1xf32>
    %827 = vector.broadcast %824 : vector<1x256xf32> to vector<4x256xf32>
    %828 = vector.broadcast %826 : vector<4x1xf32> to vector<4x256xf32>
    %829 = arith.mulf %827, %828 : vector<4x256xf32>
    %830 = arith.addf %823, %829 : vector<4x256xf32>
    %831 = vector.extract_strided_slice %816 {offsets = [2, 0], sizes = [1, 256], strides = [1, 1]} : vector<4x256xf32> to vector<1x256xf32>
    %832 = vector.extract_strided_slice %2 {offsets = [30, 0, 0], sizes = [1, 4, 1], strides = [1, 1, 1]} : vector<36x4x1xf32> to vector<1x4x1xf32>
    %833 = vector.shape_cast %832 : vector<1x4x1xf32> to vector<4x1xf32>
    %834 = vector.broadcast %831 : vector<1x256xf32> to vector<4x256xf32>
    %835 = vector.broadcast %833 : vector<4x1xf32> to vector<4x256xf32>
    %836 = arith.mulf %834, %835 : vector<4x256xf32>
    %837 = arith.addf %830, %836 : vector<4x256xf32>
    %838 = vector.extract_strided_slice %816 {offsets = [3, 0], sizes = [1, 256], strides = [1, 1]} : vector<4x256xf32> to vector<1x256xf32>
    %839 = vector.extract_strided_slice %2 {offsets = [31, 0, 0], sizes = [1, 4, 1], strides = [1, 1, 1]} : vector<36x4x1xf32> to vector<1x4x1xf32>
    %840 = vector.shape_cast %839 : vector<1x4x1xf32> to vector<4x1xf32>
    %841 = vector.broadcast %838 : vector<1x256xf32> to vector<4x256xf32>
    %842 = vector.broadcast %840 : vector<4x1xf32> to vector<4x256xf32>
    %843 = arith.mulf %841, %842 : vector<4x256xf32>
    %844 = arith.addf %837, %843 : vector<4x256xf32>
    %c239_i32_32 = arith.constant 239 : i32
    %845 = tpu.dynamic_rotate %590 by %c239_i32_32 dim 1 : vector<4x256xf32>, i32 -> vector<4x256xf32>
    %846 = vector.extract_strided_slice %1 {offsets = [8, 0], sizes = [1, 256], strides = [1, 1]} : vector<9x256xf32> to vector<1x256xf32>
    %847 = vector.broadcast %846 : vector<1x256xf32> to vector<4x256xf32>
    %848 = arith.mulf %845, %847 : vector<4x256xf32>
    %849 = vector.extract_strided_slice %848 {offsets = [0, 0], sizes = [1, 256], strides = [1, 1]} : vector<4x256xf32> to vector<1x256xf32>
    %850 = vector.extract_strided_slice %2 {offsets = [32, 0, 0], sizes = [1, 4, 1], strides = [1, 1, 1]} : vector<36x4x1xf32> to vector<1x4x1xf32>
    %851 = vector.shape_cast %850 : vector<1x4x1xf32> to vector<4x1xf32>
    %852 = vector.broadcast %849 : vector<1x256xf32> to vector<4x256xf32>
    %853 = vector.broadcast %851 : vector<4x1xf32> to vector<4x256xf32>
    %854 = arith.mulf %852, %853 : vector<4x256xf32>
    %855 = arith.addf %844, %854 : vector<4x256xf32>
    %856 = vector.extract_strided_slice %848 {offsets = [1, 0], sizes = [1, 256], strides = [1, 1]} : vector<4x256xf32> to vector<1x256xf32>
    %857 = vector.extract_strided_slice %2 {offsets = [33, 0, 0], sizes = [1, 4, 1], strides = [1, 1, 1]} : vector<36x4x1xf32> to vector<1x4x1xf32>
    %858 = vector.shape_cast %857 : vector<1x4x1xf32> to vector<4x1xf32>
    %859 = vector.broadcast %856 : vector<1x256xf32> to vector<4x256xf32>
    %860 = vector.broadcast %858 : vector<4x1xf32> to vector<4x256xf32>
    %861 = arith.mulf %859, %860 : vector<4x256xf32>
    %862 = arith.addf %855, %861 : vector<4x256xf32>
    %863 = vector.extract_strided_slice %848 {offsets = [2, 0], sizes = [1, 256], strides = [1, 1]} : vector<4x256xf32> to vector<1x256xf32>
    %864 = vector.extract_strided_slice %2 {offsets = [34, 0, 0], sizes = [1, 4, 1], strides = [1, 1, 1]} : vector<36x4x1xf32> to vector<1x4x1xf32>
    %865 = vector.shape_cast %864 : vector<1x4x1xf32> to vector<4x1xf32>
    %866 = vector.broadcast %863 : vector<1x256xf32> to vector<4x256xf32>
    %867 = vector.broadcast %865 : vector<4x1xf32> to vector<4x256xf32>
    %868 = arith.mulf %866, %867 : vector<4x256xf32>
    %869 = arith.addf %862, %868 : vector<4x256xf32>
    %870 = vector.extract_strided_slice %848 {offsets = [3, 0], sizes = [1, 256], strides = [1, 1]} : vector<4x256xf32> to vector<1x256xf32>
    %871 = vector.extract_strided_slice %2 {offsets = [35, 0, 0], sizes = [1, 4, 1], strides = [1, 1, 1]} : vector<36x4x1xf32> to vector<1x4x1xf32>
    %872 = vector.shape_cast %871 : vector<1x4x1xf32> to vector<4x1xf32>
    %873 = vector.broadcast %870 : vector<1x256xf32> to vector<4x256xf32>
    %874 = vector.broadcast %872 : vector<4x1xf32> to vector<4x256xf32>
    %875 = arith.mulf %873, %874 : vector<4x256xf32>
    %876 = arith.addf %869, %875 : vector<4x256xf32>
    %cst_33 = arith.constant 0.000000e+00 : f32
    %cst_34 = arith.constant 2.000000e+01 : f32
    %877 = vector.broadcast %cst_33 : f32 to vector<4x256xf32>
    %878 = arith.maximumf %877, %876 : vector<4x256xf32>
    %879 = vector.broadcast %cst_34 : f32 to vector<4x256xf32>
    %880 = arith.minimumf %879, %878 : vector<4x256xf32>
    %881 = vector.shape_cast %5 : vector<4x1xf32> to vector<4x1xf32>
    %882 = vector.broadcast %881 : vector<4x1xf32> to vector<4x256xf32>
    %c17_i32_35 = arith.constant 17 : i32
    %883 = tpu.dynamic_rotate %880 by %c17_i32_35 dim 1 : vector<4x256xf32>, i32 -> vector<4x256xf32>
    %884 = vector.extract_strided_slice %1 {offsets = [0, 0], sizes = [1, 256], strides = [1, 1]} : vector<9x256xf32> to vector<1x256xf32>
    %885 = vector.broadcast %884 : vector<1x256xf32> to vector<4x256xf32>
    %886 = arith.mulf %883, %885 : vector<4x256xf32>
    %887 = vector.extract_strided_slice %886 {offsets = [0, 0], sizes = [1, 256], strides = [1, 1]} : vector<4x256xf32> to vector<1x256xf32>
    %888 = vector.extract_strided_slice %3 {offsets = [0, 0, 0], sizes = [1, 4, 1], strides = [1, 1, 1]} : vector<36x4x1xf32> to vector<1x4x1xf32>
    %889 = vector.shape_cast %888 : vector<1x4x1xf32> to vector<4x1xf32>
    %890 = vector.broadcast %887 : vector<1x256xf32> to vector<4x256xf32>
    %891 = vector.broadcast %889 : vector<4x1xf32> to vector<4x256xf32>
    %892 = arith.mulf %890, %891 : vector<4x256xf32>
    %893 = arith.addf %882, %892 : vector<4x256xf32>
    %894 = vector.extract_strided_slice %886 {offsets = [1, 0], sizes = [1, 256], strides = [1, 1]} : vector<4x256xf32> to vector<1x256xf32>
    %895 = vector.extract_strided_slice %3 {offsets = [1, 0, 0], sizes = [1, 4, 1], strides = [1, 1, 1]} : vector<36x4x1xf32> to vector<1x4x1xf32>
    %896 = vector.shape_cast %895 : vector<1x4x1xf32> to vector<4x1xf32>
    %897 = vector.broadcast %894 : vector<1x256xf32> to vector<4x256xf32>
    %898 = vector.broadcast %896 : vector<4x1xf32> to vector<4x256xf32>
    %899 = arith.mulf %897, %898 : vector<4x256xf32>
    %900 = arith.addf %893, %899 : vector<4x256xf32>
    %901 = vector.extract_strided_slice %886 {offsets = [2, 0], sizes = [1, 256], strides = [1, 1]} : vector<4x256xf32> to vector<1x256xf32>
    %902 = vector.extract_strided_slice %3 {offsets = [2, 0, 0], sizes = [1, 4, 1], strides = [1, 1, 1]} : vector<36x4x1xf32> to vector<1x4x1xf32>
    %903 = vector.shape_cast %902 : vector<1x4x1xf32> to vector<4x1xf32>
    %904 = vector.broadcast %901 : vector<1x256xf32> to vector<4x256xf32>
    %905 = vector.broadcast %903 : vector<4x1xf32> to vector<4x256xf32>
    %906 = arith.mulf %904, %905 : vector<4x256xf32>
    %907 = arith.addf %900, %906 : vector<4x256xf32>
    %908 = vector.extract_strided_slice %886 {offsets = [3, 0], sizes = [1, 256], strides = [1, 1]} : vector<4x256xf32> to vector<1x256xf32>
    %909 = vector.extract_strided_slice %3 {offsets = [3, 0, 0], sizes = [1, 4, 1], strides = [1, 1, 1]} : vector<36x4x1xf32> to vector<1x4x1xf32>
    %910 = vector.shape_cast %909 : vector<1x4x1xf32> to vector<4x1xf32>
    %911 = vector.broadcast %908 : vector<1x256xf32> to vector<4x256xf32>
    %912 = vector.broadcast %910 : vector<4x1xf32> to vector<4x256xf32>
    %913 = arith.mulf %911, %912 : vector<4x256xf32>
    %914 = arith.addf %907, %913 : vector<4x256xf32>
    %c16_i32_36 = arith.constant 16 : i32
    %915 = tpu.dynamic_rotate %880 by %c16_i32_36 dim 1 : vector<4x256xf32>, i32 -> vector<4x256xf32>
    %916 = vector.extract_strided_slice %1 {offsets = [1, 0], sizes = [1, 256], strides = [1, 1]} : vector<9x256xf32> to vector<1x256xf32>
    %917 = vector.broadcast %916 : vector<1x256xf32> to vector<4x256xf32>
    %918 = arith.mulf %915, %917 : vector<4x256xf32>
    %919 = vector.extract_strided_slice %918 {offsets = [0, 0], sizes = [1, 256], strides = [1, 1]} : vector<4x256xf32> to vector<1x256xf32>
    %920 = vector.extract_strided_slice %3 {offsets = [4, 0, 0], sizes = [1, 4, 1], strides = [1, 1, 1]} : vector<36x4x1xf32> to vector<1x4x1xf32>
    %921 = vector.shape_cast %920 : vector<1x4x1xf32> to vector<4x1xf32>
    %922 = vector.broadcast %919 : vector<1x256xf32> to vector<4x256xf32>
    %923 = vector.broadcast %921 : vector<4x1xf32> to vector<4x256xf32>
    %924 = arith.mulf %922, %923 : vector<4x256xf32>
    %925 = arith.addf %914, %924 : vector<4x256xf32>
    %926 = vector.extract_strided_slice %918 {offsets = [1, 0], sizes = [1, 256], strides = [1, 1]} : vector<4x256xf32> to vector<1x256xf32>
    %927 = vector.extract_strided_slice %3 {offsets = [5, 0, 0], sizes = [1, 4, 1], strides = [1, 1, 1]} : vector<36x4x1xf32> to vector<1x4x1xf32>
    %928 = vector.shape_cast %927 : vector<1x4x1xf32> to vector<4x1xf32>
    %929 = vector.broadcast %926 : vector<1x256xf32> to vector<4x256xf32>
    %930 = vector.broadcast %928 : vector<4x1xf32> to vector<4x256xf32>
    %931 = arith.mulf %929, %930 : vector<4x256xf32>
    %932 = arith.addf %925, %931 : vector<4x256xf32>
    %933 = vector.extract_strided_slice %918 {offsets = [2, 0], sizes = [1, 256], strides = [1, 1]} : vector<4x256xf32> to vector<1x256xf32>
    %934 = vector.extract_strided_slice %3 {offsets = [6, 0, 0], sizes = [1, 4, 1], strides = [1, 1, 1]} : vector<36x4x1xf32> to vector<1x4x1xf32>
    %935 = vector.shape_cast %934 : vector<1x4x1xf32> to vector<4x1xf32>
    %936 = vector.broadcast %933 : vector<1x256xf32> to vector<4x256xf32>
    %937 = vector.broadcast %935 : vector<4x1xf32> to vector<4x256xf32>
    %938 = arith.mulf %936, %937 : vector<4x256xf32>
    %939 = arith.addf %932, %938 : vector<4x256xf32>
    %940 = vector.extract_strided_slice %918 {offsets = [3, 0], sizes = [1, 256], strides = [1, 1]} : vector<4x256xf32> to vector<1x256xf32>
    %941 = vector.extract_strided_slice %3 {offsets = [7, 0, 0], sizes = [1, 4, 1], strides = [1, 1, 1]} : vector<36x4x1xf32> to vector<1x4x1xf32>
    %942 = vector.shape_cast %941 : vector<1x4x1xf32> to vector<4x1xf32>
    %943 = vector.broadcast %940 : vector<1x256xf32> to vector<4x256xf32>
    %944 = vector.broadcast %942 : vector<4x1xf32> to vector<4x256xf32>
    %945 = arith.mulf %943, %944 : vector<4x256xf32>
    %946 = arith.addf %939, %945 : vector<4x256xf32>
    %c15_i32_37 = arith.constant 15 : i32
    %947 = tpu.dynamic_rotate %880 by %c15_i32_37 dim 1 : vector<4x256xf32>, i32 -> vector<4x256xf32>
    %948 = vector.extract_strided_slice %1 {offsets = [2, 0], sizes = [1, 256], strides = [1, 1]} : vector<9x256xf32> to vector<1x256xf32>
    %949 = vector.broadcast %948 : vector<1x256xf32> to vector<4x256xf32>
    %950 = arith.mulf %947, %949 : vector<4x256xf32>
    %951 = vector.extract_strided_slice %950 {offsets = [0, 0], sizes = [1, 256], strides = [1, 1]} : vector<4x256xf32> to vector<1x256xf32>
    %952 = vector.extract_strided_slice %3 {offsets = [8, 0, 0], sizes = [1, 4, 1], strides = [1, 1, 1]} : vector<36x4x1xf32> to vector<1x4x1xf32>
    %953 = vector.shape_cast %952 : vector<1x4x1xf32> to vector<4x1xf32>
    %954 = vector.broadcast %951 : vector<1x256xf32> to vector<4x256xf32>
    %955 = vector.broadcast %953 : vector<4x1xf32> to vector<4x256xf32>
    %956 = arith.mulf %954, %955 : vector<4x256xf32>
    %957 = arith.addf %946, %956 : vector<4x256xf32>
    %958 = vector.extract_strided_slice %950 {offsets = [1, 0], sizes = [1, 256], strides = [1, 1]} : vector<4x256xf32> to vector<1x256xf32>
    %959 = vector.extract_strided_slice %3 {offsets = [9, 0, 0], sizes = [1, 4, 1], strides = [1, 1, 1]} : vector<36x4x1xf32> to vector<1x4x1xf32>
    %960 = vector.shape_cast %959 : vector<1x4x1xf32> to vector<4x1xf32>
    %961 = vector.broadcast %958 : vector<1x256xf32> to vector<4x256xf32>
    %962 = vector.broadcast %960 : vector<4x1xf32> to vector<4x256xf32>
    %963 = arith.mulf %961, %962 : vector<4x256xf32>
    %964 = arith.addf %957, %963 : vector<4x256xf32>
    %965 = vector.extract_strided_slice %950 {offsets = [2, 0], sizes = [1, 256], strides = [1, 1]} : vector<4x256xf32> to vector<1x256xf32>
    %966 = vector.extract_strided_slice %3 {offsets = [10, 0, 0], sizes = [1, 4, 1], strides = [1, 1, 1]} : vector<36x4x1xf32> to vector<1x4x1xf32>
    %967 = vector.shape_cast %966 : vector<1x4x1xf32> to vector<4x1xf32>
    %968 = vector.broadcast %965 : vector<1x256xf32> to vector<4x256xf32>
    %969 = vector.broadcast %967 : vector<4x1xf32> to vector<4x256xf32>
    %970 = arith.mulf %968, %969 : vector<4x256xf32>
    %971 = arith.addf %964, %970 : vector<4x256xf32>
    %972 = vector.extract_strided_slice %950 {offsets = [3, 0], sizes = [1, 256], strides = [1, 1]} : vector<4x256xf32> to vector<1x256xf32>
    %973 = vector.extract_strided_slice %3 {offsets = [11, 0, 0], sizes = [1, 4, 1], strides = [1, 1, 1]} : vector<36x4x1xf32> to vector<1x4x1xf32>
    %974 = vector.shape_cast %973 : vector<1x4x1xf32> to vector<4x1xf32>
    %975 = vector.broadcast %972 : vector<1x256xf32> to vector<4x256xf32>
    %976 = vector.broadcast %974 : vector<4x1xf32> to vector<4x256xf32>
    %977 = arith.mulf %975, %976 : vector<4x256xf32>
    %978 = arith.addf %971, %977 : vector<4x256xf32>
    %c1_i32_38 = arith.constant 1 : i32
    %979 = tpu.dynamic_rotate %880 by %c1_i32_38 dim 1 : vector<4x256xf32>, i32 -> vector<4x256xf32>
    %980 = vector.extract_strided_slice %1 {offsets = [3, 0], sizes = [1, 256], strides = [1, 1]} : vector<9x256xf32> to vector<1x256xf32>
    %981 = vector.broadcast %980 : vector<1x256xf32> to vector<4x256xf32>
    %982 = arith.mulf %979, %981 : vector<4x256xf32>
    %983 = vector.extract_strided_slice %982 {offsets = [0, 0], sizes = [1, 256], strides = [1, 1]} : vector<4x256xf32> to vector<1x256xf32>
    %984 = vector.extract_strided_slice %3 {offsets = [12, 0, 0], sizes = [1, 4, 1], strides = [1, 1, 1]} : vector<36x4x1xf32> to vector<1x4x1xf32>
    %985 = vector.shape_cast %984 : vector<1x4x1xf32> to vector<4x1xf32>
    %986 = vector.broadcast %983 : vector<1x256xf32> to vector<4x256xf32>
    %987 = vector.broadcast %985 : vector<4x1xf32> to vector<4x256xf32>
    %988 = arith.mulf %986, %987 : vector<4x256xf32>
    %989 = arith.addf %978, %988 : vector<4x256xf32>
    %990 = vector.extract_strided_slice %982 {offsets = [1, 0], sizes = [1, 256], strides = [1, 1]} : vector<4x256xf32> to vector<1x256xf32>
    %991 = vector.extract_strided_slice %3 {offsets = [13, 0, 0], sizes = [1, 4, 1], strides = [1, 1, 1]} : vector<36x4x1xf32> to vector<1x4x1xf32>
    %992 = vector.shape_cast %991 : vector<1x4x1xf32> to vector<4x1xf32>
    %993 = vector.broadcast %990 : vector<1x256xf32> to vector<4x256xf32>
    %994 = vector.broadcast %992 : vector<4x1xf32> to vector<4x256xf32>
    %995 = arith.mulf %993, %994 : vector<4x256xf32>
    %996 = arith.addf %989, %995 : vector<4x256xf32>
    %997 = vector.extract_strided_slice %982 {offsets = [2, 0], sizes = [1, 256], strides = [1, 1]} : vector<4x256xf32> to vector<1x256xf32>
    %998 = vector.extract_strided_slice %3 {offsets = [14, 0, 0], sizes = [1, 4, 1], strides = [1, 1, 1]} : vector<36x4x1xf32> to vector<1x4x1xf32>
    %999 = vector.shape_cast %998 : vector<1x4x1xf32> to vector<4x1xf32>
    %1000 = vector.broadcast %997 : vector<1x256xf32> to vector<4x256xf32>
    %1001 = vector.broadcast %999 : vector<4x1xf32> to vector<4x256xf32>
    %1002 = arith.mulf %1000, %1001 : vector<4x256xf32>
    %1003 = arith.addf %996, %1002 : vector<4x256xf32>
    %1004 = vector.extract_strided_slice %982 {offsets = [3, 0], sizes = [1, 256], strides = [1, 1]} : vector<4x256xf32> to vector<1x256xf32>
    %1005 = vector.extract_strided_slice %3 {offsets = [15, 0, 0], sizes = [1, 4, 1], strides = [1, 1, 1]} : vector<36x4x1xf32> to vector<1x4x1xf32>
    %1006 = vector.shape_cast %1005 : vector<1x4x1xf32> to vector<4x1xf32>
    %1007 = vector.broadcast %1004 : vector<1x256xf32> to vector<4x256xf32>
    %1008 = vector.broadcast %1006 : vector<4x1xf32> to vector<4x256xf32>
    %1009 = arith.mulf %1007, %1008 : vector<4x256xf32>
    %1010 = arith.addf %1003, %1009 : vector<4x256xf32>
    %1011 = vector.extract_strided_slice %880 {offsets = [0, 0], sizes = [1, 256], strides = [1, 1]} : vector<4x256xf32> to vector<1x256xf32>
    %1012 = vector.extract_strided_slice %3 {offsets = [16, 0, 0], sizes = [1, 4, 1], strides = [1, 1, 1]} : vector<36x4x1xf32> to vector<1x4x1xf32>
    %1013 = vector.shape_cast %1012 : vector<1x4x1xf32> to vector<4x1xf32>
    %1014 = vector.broadcast %1011 : vector<1x256xf32> to vector<4x256xf32>
    %1015 = vector.broadcast %1013 : vector<4x1xf32> to vector<4x256xf32>
    %1016 = arith.mulf %1014, %1015 : vector<4x256xf32>
    %1017 = arith.addf %1010, %1016 : vector<4x256xf32>
    %1018 = vector.extract_strided_slice %880 {offsets = [1, 0], sizes = [1, 256], strides = [1, 1]} : vector<4x256xf32> to vector<1x256xf32>
    %1019 = vector.extract_strided_slice %3 {offsets = [17, 0, 0], sizes = [1, 4, 1], strides = [1, 1, 1]} : vector<36x4x1xf32> to vector<1x4x1xf32>
    %1020 = vector.shape_cast %1019 : vector<1x4x1xf32> to vector<4x1xf32>
    %1021 = vector.broadcast %1018 : vector<1x256xf32> to vector<4x256xf32>
    %1022 = vector.broadcast %1020 : vector<4x1xf32> to vector<4x256xf32>
    %1023 = arith.mulf %1021, %1022 : vector<4x256xf32>
    %1024 = arith.addf %1017, %1023 : vector<4x256xf32>
    %1025 = vector.extract_strided_slice %880 {offsets = [2, 0], sizes = [1, 256], strides = [1, 1]} : vector<4x256xf32> to vector<1x256xf32>
    %1026 = vector.extract_strided_slice %3 {offsets = [18, 0, 0], sizes = [1, 4, 1], strides = [1, 1, 1]} : vector<36x4x1xf32> to vector<1x4x1xf32>
    %1027 = vector.shape_cast %1026 : vector<1x4x1xf32> to vector<4x1xf32>
    %1028 = vector.broadcast %1025 : vector<1x256xf32> to vector<4x256xf32>
    %1029 = vector.broadcast %1027 : vector<4x1xf32> to vector<4x256xf32>
    %1030 = arith.mulf %1028, %1029 : vector<4x256xf32>
    %1031 = arith.addf %1024, %1030 : vector<4x256xf32>
    %1032 = vector.extract_strided_slice %880 {offsets = [3, 0], sizes = [1, 256], strides = [1, 1]} : vector<4x256xf32> to vector<1x256xf32>
    %1033 = vector.extract_strided_slice %3 {offsets = [19, 0, 0], sizes = [1, 4, 1], strides = [1, 1, 1]} : vector<36x4x1xf32> to vector<1x4x1xf32>
    %1034 = vector.shape_cast %1033 : vector<1x4x1xf32> to vector<4x1xf32>
    %1035 = vector.broadcast %1032 : vector<1x256xf32> to vector<4x256xf32>
    %1036 = vector.broadcast %1034 : vector<4x1xf32> to vector<4x256xf32>
    %1037 = arith.mulf %1035, %1036 : vector<4x256xf32>
    %1038 = arith.addf %1031, %1037 : vector<4x256xf32>
    %c255_i32_39 = arith.constant 255 : i32
    %1039 = tpu.dynamic_rotate %880 by %c255_i32_39 dim 1 : vector<4x256xf32>, i32 -> vector<4x256xf32>
    %1040 = vector.extract_strided_slice %1 {offsets = [5, 0], sizes = [1, 256], strides = [1, 1]} : vector<9x256xf32> to vector<1x256xf32>
    %1041 = vector.broadcast %1040 : vector<1x256xf32> to vector<4x256xf32>
    %1042 = arith.mulf %1039, %1041 : vector<4x256xf32>
    %1043 = vector.extract_strided_slice %1042 {offsets = [0, 0], sizes = [1, 256], strides = [1, 1]} : vector<4x256xf32> to vector<1x256xf32>
    %1044 = vector.extract_strided_slice %3 {offsets = [20, 0, 0], sizes = [1, 4, 1], strides = [1, 1, 1]} : vector<36x4x1xf32> to vector<1x4x1xf32>
    %1045 = vector.shape_cast %1044 : vector<1x4x1xf32> to vector<4x1xf32>
    %1046 = vector.broadcast %1043 : vector<1x256xf32> to vector<4x256xf32>
    %1047 = vector.broadcast %1045 : vector<4x1xf32> to vector<4x256xf32>
    %1048 = arith.mulf %1046, %1047 : vector<4x256xf32>
    %1049 = arith.addf %1038, %1048 : vector<4x256xf32>
    %1050 = vector.extract_strided_slice %1042 {offsets = [1, 0], sizes = [1, 256], strides = [1, 1]} : vector<4x256xf32> to vector<1x256xf32>
    %1051 = vector.extract_strided_slice %3 {offsets = [21, 0, 0], sizes = [1, 4, 1], strides = [1, 1, 1]} : vector<36x4x1xf32> to vector<1x4x1xf32>
    %1052 = vector.shape_cast %1051 : vector<1x4x1xf32> to vector<4x1xf32>
    %1053 = vector.broadcast %1050 : vector<1x256xf32> to vector<4x256xf32>
    %1054 = vector.broadcast %1052 : vector<4x1xf32> to vector<4x256xf32>
    %1055 = arith.mulf %1053, %1054 : vector<4x256xf32>
    %1056 = arith.addf %1049, %1055 : vector<4x256xf32>
    %1057 = vector.extract_strided_slice %1042 {offsets = [2, 0], sizes = [1, 256], strides = [1, 1]} : vector<4x256xf32> to vector<1x256xf32>
    %1058 = vector.extract_strided_slice %3 {offsets = [22, 0, 0], sizes = [1, 4, 1], strides = [1, 1, 1]} : vector<36x4x1xf32> to vector<1x4x1xf32>
    %1059 = vector.shape_cast %1058 : vector<1x4x1xf32> to vector<4x1xf32>
    %1060 = vector.broadcast %1057 : vector<1x256xf32> to vector<4x256xf32>
    %1061 = vector.broadcast %1059 : vector<4x1xf32> to vector<4x256xf32>
    %1062 = arith.mulf %1060, %1061 : vector<4x256xf32>
    %1063 = arith.addf %1056, %1062 : vector<4x256xf32>
    %1064 = vector.extract_strided_slice %1042 {offsets = [3, 0], sizes = [1, 256], strides = [1, 1]} : vector<4x256xf32> to vector<1x256xf32>
    %1065 = vector.extract_strided_slice %3 {offsets = [23, 0, 0], sizes = [1, 4, 1], strides = [1, 1, 1]} : vector<36x4x1xf32> to vector<1x4x1xf32>
    %1066 = vector.shape_cast %1065 : vector<1x4x1xf32> to vector<4x1xf32>
    %1067 = vector.broadcast %1064 : vector<1x256xf32> to vector<4x256xf32>
    %1068 = vector.broadcast %1066 : vector<4x1xf32> to vector<4x256xf32>
    %1069 = arith.mulf %1067, %1068 : vector<4x256xf32>
    %1070 = arith.addf %1063, %1069 : vector<4x256xf32>
    %c241_i32_40 = arith.constant 241 : i32
    %1071 = tpu.dynamic_rotate %880 by %c241_i32_40 dim 1 : vector<4x256xf32>, i32 -> vector<4x256xf32>
    %1072 = vector.extract_strided_slice %1 {offsets = [6, 0], sizes = [1, 256], strides = [1, 1]} : vector<9x256xf32> to vector<1x256xf32>
    %1073 = vector.broadcast %1072 : vector<1x256xf32> to vector<4x256xf32>
    %1074 = arith.mulf %1071, %1073 : vector<4x256xf32>
    %1075 = vector.extract_strided_slice %1074 {offsets = [0, 0], sizes = [1, 256], strides = [1, 1]} : vector<4x256xf32> to vector<1x256xf32>
    %1076 = vector.extract_strided_slice %3 {offsets = [24, 0, 0], sizes = [1, 4, 1], strides = [1, 1, 1]} : vector<36x4x1xf32> to vector<1x4x1xf32>
    %1077 = vector.shape_cast %1076 : vector<1x4x1xf32> to vector<4x1xf32>
    %1078 = vector.broadcast %1075 : vector<1x256xf32> to vector<4x256xf32>
    %1079 = vector.broadcast %1077 : vector<4x1xf32> to vector<4x256xf32>
    %1080 = arith.mulf %1078, %1079 : vector<4x256xf32>
    %1081 = arith.addf %1070, %1080 : vector<4x256xf32>
    %1082 = vector.extract_strided_slice %1074 {offsets = [1, 0], sizes = [1, 256], strides = [1, 1]} : vector<4x256xf32> to vector<1x256xf32>
    %1083 = vector.extract_strided_slice %3 {offsets = [25, 0, 0], sizes = [1, 4, 1], strides = [1, 1, 1]} : vector<36x4x1xf32> to vector<1x4x1xf32>
    %1084 = vector.shape_cast %1083 : vector<1x4x1xf32> to vector<4x1xf32>
    %1085 = vector.broadcast %1082 : vector<1x256xf32> to vector<4x256xf32>
    %1086 = vector.broadcast %1084 : vector<4x1xf32> to vector<4x256xf32>
    %1087 = arith.mulf %1085, %1086 : vector<4x256xf32>
    %1088 = arith.addf %1081, %1087 : vector<4x256xf32>
    %1089 = vector.extract_strided_slice %1074 {offsets = [2, 0], sizes = [1, 256], strides = [1, 1]} : vector<4x256xf32> to vector<1x256xf32>
    %1090 = vector.extract_strided_slice %3 {offsets = [26, 0, 0], sizes = [1, 4, 1], strides = [1, 1, 1]} : vector<36x4x1xf32> to vector<1x4x1xf32>
    %1091 = vector.shape_cast %1090 : vector<1x4x1xf32> to vector<4x1xf32>
    %1092 = vector.broadcast %1089 : vector<1x256xf32> to vector<4x256xf32>
    %1093 = vector.broadcast %1091 : vector<4x1xf32> to vector<4x256xf32>
    %1094 = arith.mulf %1092, %1093 : vector<4x256xf32>
    %1095 = arith.addf %1088, %1094 : vector<4x256xf32>
    %1096 = vector.extract_strided_slice %1074 {offsets = [3, 0], sizes = [1, 256], strides = [1, 1]} : vector<4x256xf32> to vector<1x256xf32>
    %1097 = vector.extract_strided_slice %3 {offsets = [27, 0, 0], sizes = [1, 4, 1], strides = [1, 1, 1]} : vector<36x4x1xf32> to vector<1x4x1xf32>
    %1098 = vector.shape_cast %1097 : vector<1x4x1xf32> to vector<4x1xf32>
    %1099 = vector.broadcast %1096 : vector<1x256xf32> to vector<4x256xf32>
    %1100 = vector.broadcast %1098 : vector<4x1xf32> to vector<4x256xf32>
    %1101 = arith.mulf %1099, %1100 : vector<4x256xf32>
    %1102 = arith.addf %1095, %1101 : vector<4x256xf32>
    %c240_i32_41 = arith.constant 240 : i32
    %1103 = tpu.dynamic_rotate %880 by %c240_i32_41 dim 1 : vector<4x256xf32>, i32 -> vector<4x256xf32>
    %1104 = vector.extract_strided_slice %1 {offsets = [7, 0], sizes = [1, 256], strides = [1, 1]} : vector<9x256xf32> to vector<1x256xf32>
    %1105 = vector.broadcast %1104 : vector<1x256xf32> to vector<4x256xf32>
    %1106 = arith.mulf %1103, %1105 : vector<4x256xf32>
    %1107 = vector.extract_strided_slice %1106 {offsets = [0, 0], sizes = [1, 256], strides = [1, 1]} : vector<4x256xf32> to vector<1x256xf32>
    %1108 = vector.extract_strided_slice %3 {offsets = [28, 0, 0], sizes = [1, 4, 1], strides = [1, 1, 1]} : vector<36x4x1xf32> to vector<1x4x1xf32>
    %1109 = vector.shape_cast %1108 : vector<1x4x1xf32> to vector<4x1xf32>
    %1110 = vector.broadcast %1107 : vector<1x256xf32> to vector<4x256xf32>
    %1111 = vector.broadcast %1109 : vector<4x1xf32> to vector<4x256xf32>
    %1112 = arith.mulf %1110, %1111 : vector<4x256xf32>
    %1113 = arith.addf %1102, %1112 : vector<4x256xf32>
    %1114 = vector.extract_strided_slice %1106 {offsets = [1, 0], sizes = [1, 256], strides = [1, 1]} : vector<4x256xf32> to vector<1x256xf32>
    %1115 = vector.extract_strided_slice %3 {offsets = [29, 0, 0], sizes = [1, 4, 1], strides = [1, 1, 1]} : vector<36x4x1xf32> to vector<1x4x1xf32>
    %1116 = vector.shape_cast %1115 : vector<1x4x1xf32> to vector<4x1xf32>
    %1117 = vector.broadcast %1114 : vector<1x256xf32> to vector<4x256xf32>
    %1118 = vector.broadcast %1116 : vector<4x1xf32> to vector<4x256xf32>
    %1119 = arith.mulf %1117, %1118 : vector<4x256xf32>
    %1120 = arith.addf %1113, %1119 : vector<4x256xf32>
    %1121 = vector.extract_strided_slice %1106 {offsets = [2, 0], sizes = [1, 256], strides = [1, 1]} : vector<4x256xf32> to vector<1x256xf32>
    %1122 = vector.extract_strided_slice %3 {offsets = [30, 0, 0], sizes = [1, 4, 1], strides = [1, 1, 1]} : vector<36x4x1xf32> to vector<1x4x1xf32>
    %1123 = vector.shape_cast %1122 : vector<1x4x1xf32> to vector<4x1xf32>
    %1124 = vector.broadcast %1121 : vector<1x256xf32> to vector<4x256xf32>
    %1125 = vector.broadcast %1123 : vector<4x1xf32> to vector<4x256xf32>
    %1126 = arith.mulf %1124, %1125 : vector<4x256xf32>
    %1127 = arith.addf %1120, %1126 : vector<4x256xf32>
    %1128 = vector.extract_strided_slice %1106 {offsets = [3, 0], sizes = [1, 256], strides = [1, 1]} : vector<4x256xf32> to vector<1x256xf32>
    %1129 = vector.extract_strided_slice %3 {offsets = [31, 0, 0], sizes = [1, 4, 1], strides = [1, 1, 1]} : vector<36x4x1xf32> to vector<1x4x1xf32>
    %1130 = vector.shape_cast %1129 : vector<1x4x1xf32> to vector<4x1xf32>
    %1131 = vector.broadcast %1128 : vector<1x256xf32> to vector<4x256xf32>
    %1132 = vector.broadcast %1130 : vector<4x1xf32> to vector<4x256xf32>
    %1133 = arith.mulf %1131, %1132 : vector<4x256xf32>
    %1134 = arith.addf %1127, %1133 : vector<4x256xf32>
    %c239_i32_42 = arith.constant 239 : i32
    %1135 = tpu.dynamic_rotate %880 by %c239_i32_42 dim 1 : vector<4x256xf32>, i32 -> vector<4x256xf32>
    %1136 = vector.extract_strided_slice %1 {offsets = [8, 0], sizes = [1, 256], strides = [1, 1]} : vector<9x256xf32> to vector<1x256xf32>
    %1137 = vector.broadcast %1136 : vector<1x256xf32> to vector<4x256xf32>
    %1138 = arith.mulf %1135, %1137 : vector<4x256xf32>
    %1139 = vector.extract_strided_slice %1138 {offsets = [0, 0], sizes = [1, 256], strides = [1, 1]} : vector<4x256xf32> to vector<1x256xf32>
    %1140 = vector.extract_strided_slice %3 {offsets = [32, 0, 0], sizes = [1, 4, 1], strides = [1, 1, 1]} : vector<36x4x1xf32> to vector<1x4x1xf32>
    %1141 = vector.shape_cast %1140 : vector<1x4x1xf32> to vector<4x1xf32>
    %1142 = vector.broadcast %1139 : vector<1x256xf32> to vector<4x256xf32>
    %1143 = vector.broadcast %1141 : vector<4x1xf32> to vector<4x256xf32>
    %1144 = arith.mulf %1142, %1143 : vector<4x256xf32>
    %1145 = arith.addf %1134, %1144 : vector<4x256xf32>
    %1146 = vector.extract_strided_slice %1138 {offsets = [1, 0], sizes = [1, 256], strides = [1, 1]} : vector<4x256xf32> to vector<1x256xf32>
    %1147 = vector.extract_strided_slice %3 {offsets = [33, 0, 0], sizes = [1, 4, 1], strides = [1, 1, 1]} : vector<36x4x1xf32> to vector<1x4x1xf32>
    %1148 = vector.shape_cast %1147 : vector<1x4x1xf32> to vector<4x1xf32>
    %1149 = vector.broadcast %1146 : vector<1x256xf32> to vector<4x256xf32>
    %1150 = vector.broadcast %1148 : vector<4x1xf32> to vector<4x256xf32>
    %1151 = arith.mulf %1149, %1150 : vector<4x256xf32>
    %1152 = arith.addf %1145, %1151 : vector<4x256xf32>
    %1153 = vector.extract_strided_slice %1138 {offsets = [2, 0], sizes = [1, 256], strides = [1, 1]} : vector<4x256xf32> to vector<1x256xf32>
    %1154 = vector.extract_strided_slice %3 {offsets = [34, 0, 0], sizes = [1, 4, 1], strides = [1, 1, 1]} : vector<36x4x1xf32> to vector<1x4x1xf32>
    %1155 = vector.shape_cast %1154 : vector<1x4x1xf32> to vector<4x1xf32>
    %1156 = vector.broadcast %1153 : vector<1x256xf32> to vector<4x256xf32>
    %1157 = vector.broadcast %1155 : vector<4x1xf32> to vector<4x256xf32>
    %1158 = arith.mulf %1156, %1157 : vector<4x256xf32>
    %1159 = arith.addf %1152, %1158 : vector<4x256xf32>
    %1160 = vector.extract_strided_slice %1138 {offsets = [3, 0], sizes = [1, 256], strides = [1, 1]} : vector<4x256xf32> to vector<1x256xf32>
    %1161 = vector.extract_strided_slice %3 {offsets = [35, 0, 0], sizes = [1, 4, 1], strides = [1, 1, 1]} : vector<36x4x1xf32> to vector<1x4x1xf32>
    %1162 = vector.shape_cast %1161 : vector<1x4x1xf32> to vector<4x1xf32>
    %1163 = vector.broadcast %1160 : vector<1x256xf32> to vector<4x256xf32>
    %1164 = vector.broadcast %1162 : vector<4x1xf32> to vector<4x256xf32>
    %1165 = arith.mulf %1163, %1164 : vector<4x256xf32>
    %1166 = arith.addf %1159, %1165 : vector<4x256xf32>
    %1167 = arith.addf %1166, %590 : vector<4x256xf32>
    %cst_43 = arith.constant 0.000000e+00 : f32
    %cst_44 = arith.constant 2.000000e+01 : f32
    %1168 = vector.broadcast %cst_43 : f32 to vector<4x256xf32>
    %1169 = arith.maximumf %1168, %1167 : vector<4x256xf32>
    %1170 = vector.broadcast %cst_44 : f32 to vector<4x256xf32>
    %1171 = arith.minimumf %1170, %1169 : vector<4x256xf32>
    %1172 = vector.shape_cast %588 : vector<4x256xf32> to vector<1x4x256xf32>
    %1173 = vector.shape_cast %1171 : vector<4x256xf32> to vector<1x4x256xf32>
    %1174 = tpu.concatenate %1172, %1173 in 0 : vector<1x4x256xf32>, vector<1x4x256xf32> -> vector<2x4x256xf32>
    %c0_45 = arith.constant 0 : index
    %c0_46 = arith.constant 0 : index
    %c0_47 = arith.constant 0 : index
    %1175 = vector.load %arg7[%c0_45, %c0_46, %c0_47] : memref<2x4x256xf32, #tpu.memory_space<vmem>>, vector<2x4x256xf32>
    tpu.vector_store %arg7[%c0_45, %c0_46, %c0_47], %1174 {strides = array<i32>} : memref<2x4x256xf32, #tpu.memory_space<vmem>>, vector<2x4x256xf32>,
    return
  }
  func.func @transform_0(%arg0: i32) -> (i32, i32, i32) {
    %c0_i32 = arith.constant 0 : i32
    %c0_i32_0 = arith.constant 0 : i32
    %c0_i32_1 = arith.constant 0 : i32
    return %arg0, %c0_i32, %c0_i32_0 : i32, i32, i32
  }
  func.func @transform_1(%arg0: i32) -> (i32, i32) {
    %c0_i32 = arith.constant 0 : i32
    %c0_i32_0 = arith.constant 0 : i32
    %c0_i32_1 = arith.constant 0 : i32
    return %c0_i32, %c0_i32_0 : i32, i32
  }
  func.func @transform_2(%arg0: i32) -> (i32, i32, i32) {
    %c0_i32 = arith.constant 0 : i32
    %c0_i32_0 = arith.constant 0 : i32
    %c0_i32_1 = arith.constant 0 : i32
    %c0_i32_2 = arith.constant 0 : i32
    return %c0_i32, %c0_i32_0, %c0_i32_1 : i32, i32, i32
  }
  func.func @transform_3(%arg0: i32) -> (i32, i32) {
    %c0_i32 = arith.constant 0 : i32
    %c0_i32_0 = arith.constant 0 : i32
    %c0_i32_1 = arith.constant 0 : i32
    return %c0_i32, %c0_i32_0 : i32, i32
  }
  func.func @transform_4(%arg0: i32) -> (i32, i32, i32) {
    %c0_i32 = arith.constant 0 : i32
    %c0_i32_0 = arith.constant 0 : i32
    %c0_i32_1 = arith.constant 0 : i32
    %c0_i32_2 = arith.constant 0 : i32
    return %c0_i32, %c0_i32_0, %c0_i32_1 : i32, i32, i32
  }
  func.func @transform_5(%arg0: i32) -> (i32, i32) {
    %c0_i32 = arith.constant 0 : i32
    %c0_i32_0 = arith.constant 0 : i32
    %c0_i32_1 = arith.constant 0 : i32
    return %c0_i32, %c0_i32_0 : i32, i32
  }
  func.func @transform_6(%arg0: i32) -> (i32, i32, i32) {
    %c0_i32 = arith.constant 0 : i32
    %c0_i32_0 = arith.constant 0 : i32
    %c0_i32_1 = arith.constant 0 : i32
    return %arg0, %c0_i32, %c0_i32_0 : i32, i32, i32
  }
}

</mosaic_0001>

<llo_original>
// kernel: tpu_custom_call.1
$region0: #{tpu_custom_call.1}
  #allocation0 [shape = 'u32[]', space=smem, size = 0x4, offset = 0x4, fixed_abs, tag = 'smem constant byte address 0x4 - core index']
  #allocation1 [shape = 'u32[144,128]{1,0:T(1,128)}', space=vmem, size = 0x12000, scoped, tag = 'internal scratch']
  %s0 = inlined_call_operand.vmem [shape: f32[2,4,256], index: 0, kind: input, shape index: {}]
  %s1 = inlined_call_operand.vmem [shape: f32[9,256], index: 1, kind: input, shape index: {}]
  %s2 = inlined_call_operand.vmem [shape: f32[36,4,1], index: 2, kind: input, shape index: {}]
  %s3 = inlined_call_operand.vmem [shape: f32[4,1], index: 3, kind: input, shape index: {}]
  %s4 = inlined_call_operand.vmem [shape: f32[36,4,1], index: 4, kind: input, shape index: {}]
  %s5 = inlined_call_operand.vmem [shape: f32[4,1], index: 5, kind: input, shape index: {}]
  %s6 = inlined_call_operand.hbm [shape: f32[2,4,256], index: 6, kind: output, shape index: {}]
  %s7 = sld [smem:[#allocation0]]
  $region34: #{tpu_custom_call.1} parent=0
    _
  %s9 = ssub.s32 1, %s7
  %s10 = scalar_select 0, %s9, %s7
  $region1: #{tpu_custom_call.1} parent=0
    #allocation2 [shape = 'u8[8192]{0}', space=vmem, size = 0x2000, scoped, tag = 'output window, operand 0, single buffered']
    #allocation3 [shape = 's32[1]{0}', space=sflag, size = 0x4, scoped, tag = 'scoped memory for tpu_custom_call.1']
    %11 = vsyncpa [#allocation3], 0
    // Predicated region
    $region2: #{tpu_custom_call.1} parent=1 // pred_check
      _
    $region3: #{tpu_custom_call.1} parent=1 // pred_check_branch
      %13 = sbr.rel (0) target = $region5
    $region4: #{tpu_custom_call.1} parent=1 // pred_region
      _
    $region5: #{tpu_custom_call.1} parent=1 // pred_fallthru
      _
    // Predicated region
    $region6: #{tpu_custom_call.1} parent=1 // pred_check
      _
    $region7: #{tpu_custom_call.1} parent=1 // pred_check_branch
      %15 = sbr.rel (0) target = $region9
    $region8: #{tpu_custom_call.1} parent=1 // pred_region
      _
    $region9: #{tpu_custom_call.1} parent=1 // pred_fallthru
      _
    // Predicated region
    $region10: #{tpu_custom_call.1} parent=1 // pred_check
      _
    $region11: #{tpu_custom_call.1} parent=1 // pred_check_branch
      %17 = sbr.rel (0) target = $region13
    $region12: #{tpu_custom_call.1} parent=1 // pred_region
      _
    $region13: #{tpu_custom_call.1} parent=1 // pred_fallthru
      _
    // Predicated region
    $region14: #{tpu_custom_call.1} parent=1 // pred_check
      _
    $region15: #{tpu_custom_call.1} parent=1 // pred_check_branch
      %19 = sbr.rel (0) target = $region17
    $region16: #{tpu_custom_call.1} parent=1 // pred_region
      _
    $region17: #{tpu_custom_call.1} parent=1 // pred_fallthru
      _
    // Predicated region
    $region18: #{tpu_custom_call.1} parent=1 // pred_check
      _
    $region19: #{tpu_custom_call.1} parent=1 // pred_check_branch
      %21 = sbr.rel (0) target = $region21
    $region20: #{tpu_custom_call.1} parent=1 // pred_region
      _
    $region21: #{tpu_custom_call.1} parent=1 // pred_fallthru
      _
    // Predicated region
    $region22: #{tpu_custom_call.1} parent=1 // pred_check
      _
    $region23: #{tpu_custom_call.1} parent=1 // pred_check_branch
      %23 = sbr.rel (0) target = $region25
    $region24: #{tpu_custom_call.1} parent=1 // pred_region
      _
    $region25: #{tpu_custom_call.1} parent=1 // pred_fallthru
      _
    %v24 = vld [vmem:[%s0] sm:$0xff]
    %v25 = vld [vmem:[%s0 + $0x8] sm:$0xff]
    %v26 = vld [vmem:[%s1] sm:$0xff]
    %v27 = vld [vmem:[%s1 + $0x8] sm:$0xff]
    %v28 = vld [vmem:[%s1 + $0x10] sm:$0x1]
    %v29 = vld [vmem:[%s1 + $0x18] sm:$0x1]
    %v30 = vld [vmem:[%s2] sm:$0xf]
    %v31 = vld [vmem:[%s2 + $0x4] sm:$0xf]
    %v32 = vld [vmem:[%s2 + $0x8] sm:$0xf]
    %v33 = vld [vmem:[%s2 + $0xc] sm:$0xf]
    %v34 = vld [vmem:[%s2 + $0x10] sm:$0xf]
    %v35 = vld [vmem:[%s2 + $0x14] sm:$0xf]
    %v36 = vld [vmem:[%s2 + $0x18] sm:$0xf]
    %v37 = vld [vmem:[%s2 + $0x1c] sm:$0xf]
    %v38 = vld [vmem:[%s2 + $0x20] sm:$0xf]
    %v39 = vld [vmem:[%s2 + $0x24] sm:$0xf]
    %v40 = vld [vmem:[%s2 + $0x28] sm:$0xf]
    %v41 = vld [vmem:[%s2 + $0x2c] sm:$0xf]
    %v42 = vld [vmem:[%s2 + $0x30] sm:$0xf]
    %v43 = vld [vmem:[%s2 + $0x34] sm:$0xf]
    %v44 = vld [vmem:[%s2 + $0x38] sm:$0xf]
    %v45 = vld [vmem:[%s2 + $0x3c] sm:$0xf]
    %v46 = vld [vmem:[%s2 + $0x40] sm:$0xf]
    %v47 = vld [vmem:[%s2 + $0x44] sm:$0xf]
    %v48 = vld [vmem:[%s2 + $0x48] sm:$0xf]
    %v49 = vld [vmem:[%s2 + $0x4c] sm:$0xf]
    %v50 = vld [vmem:[%s2 + $0x50] sm:$0xf]
    %v51 = vld [vmem:[%s2 + $0x54] sm:$0xf]
    %v52 = vld [vmem:[%s2 + $0x58] sm:$0xf]
    %v53 = vld [vmem:[%s2 + $0x5c] sm:$0xf]
    %v54 = vld [vmem:[%s2 + $0x60] sm:$0xf]
    %v55 = vld [vmem:[%s2 + $0x64] sm:$0xf]
    %v56 = vld [vmem:[%s2 + $0x68] sm:$0xf]
    %v57 = vld [vmem:[%s2 + $0x6c] sm:$0xf]
    %v58 = vld [vmem:[%s2 + $0x70] sm:$0xf]
    %v59 = vld [vmem:[%s2 + $0x74] sm:$0xf]
    %v60 = vld [vmem:[%s2 + $0x78] sm:$0xf]
    %v61 = vld [vmem:[%s2 + $0x7c] sm:$0xf]
    %v62 = vld [vmem:[%s2 + $0x80] sm:$0xf]
    %v63 = vld [vmem:[%s2 + $0x84] sm:$0xf]
    %v64 = vld [vmem:[%s2 + $0x88] sm:$0xf]
    %v65 = vld [vmem:[%s2 + $0x8c] sm:$0xf]
    %v66 = vld [vmem:[%s4] sm:$0xf]
    %v67 = vld [vmem:[%s4 + $0x4] sm:$0xf]
    %v68 = vld [vmem:[%s4 + $0x8] sm:$0xf]
    %v69 = vld [vmem:[%s4 + $0xc] sm:$0xf]
    %v70 = vld [vmem:[%s4 + $0x10] sm:$0xf]
    %v71 = vld [vmem:[%s4 + $0x14] sm:$0xf]
    %v72 = vld [vmem:[%s4 + $0x18] sm:$0xf]
    %v73 = vld [vmem:[%s4 + $0x1c] sm:$0xf]
    %v74 = vld [vmem:[%s4 + $0x20] sm:$0xf]
    %v75 = vld [vmem:[%s4 + $0x24] sm:$0xf]
    %v76 = vld [vmem:[%s4 + $0x28] sm:$0xf]
    %v77 = vld [vmem:[%s4 + $0x2c] sm:$0xf]
    %v78 = vld [vmem:[%s4 + $0x30] sm:$0xf]
    %v79 = vld [vmem:[%s4 + $0x34] sm:$0xf]
    %v80 = vld [vmem:[%s4 + $0x38] sm:$0xf]
    %v81 = vld [vmem:[%s4 + $0x3c] sm:$0xf]
    %v82 = vld [vmem:[%s4 + $0x40] sm:$0xf]
    %v83 = vld [vmem:[%s4 + $0x44] sm:$0xf]
    %v84 = vld [vmem:[%s4 + $0x48] sm:$0xf]
    %v85 = vld [vmem:[%s4 + $0x4c] sm:$0xf]
    %v86 = vld [vmem:[%s4 + $0x50] sm:$0xf]
    %v87 = vld [vmem:[%s4 + $0x54] sm:$0xf]
    %v88 = vld [vmem:[%s4 + $0x58] sm:$0xf]
    %v89 = vld [vmem:[%s4 + $0x5c] sm:$0xf]
    %v90 = vld [vmem:[%s4 + $0x60] sm:$0xf]
    %v91 = vld [vmem:[%s4 + $0x64] sm:$0xf]
    %v92 = vld [vmem:[%s4 + $0x68] sm:$0xf]
    %v93 = vld [vmem:[%s4 + $0x6c] sm:$0xf]
    %v94 = vld [vmem:[%s4 + $0x70] sm:$0xf]
    %v95 = vld [vmem:[%s4 + $0x74] sm:$0xf]
    %v96 = vld [vmem:[%s4 + $0x78] sm:$0xf]
    %v97 = vld [vmem:[%s4 + $0x7c] sm:$0xf]
    %v98 = vld [vmem:[%s4 + $0x80] sm:$0xf]
    %v99 = vld [vmem:[%s4 + $0x84] sm:$0xf]
    %v100 = vld [vmem:[%s4 + $0x88] sm:$0xf]
    %v101 = vld [vmem:[%s4 + $0x8c] sm:$0xf]
    %v102 = vld [vmem:[%s3] sm:$0xf]
    %v103 = vld [vmem:[%s5] sm:$0xf]
    %105 = vset.pattern.permute.xlu0 0
    %106 = vperm.xlu0 %105, %v102
    %v107 = vpop.permute.xlu0 %106
    %v110 = vcombine.high %v24, %v24
    %112 = vrot.lane.b32.xlu0 %v24, 17
    %v113 = vpop.permute.xlu0 %112
    %114 = vrot.lane.b32.xlu0 %v110, 17
    %v115 = vpop.permute.xlu0 %114
    %v116 = vlaneseq
    %v117 = vand.u32 %v116, 127
    %vm118 = vcmp.lt.s32.totalorder %v117, 17
    %v119 = vsel %vm118, %v113, %v115
    %v120 = vsel %vm118, %v115, %v113
    %v121 = vlaneseq
    %v122 = vshrl.u32 %v121, 7
    %v123 = vsub.s32 0, %v122
    %v124 = vrot.slane %v26, %v123
    %v125 = vlaneseq
    %v126 = vshrl.u32 %v125, 7
    %v127 = vsub.s32 0, %v126
    %v128 = vrot.slane %v27, %v127
    %v129 = vmul.f32 %v120, %v124
    %v130 = vmul.f32 %v119, %v128
    %v131 = vlaneseq
    %v132 = vshrl.u32 %v131, 7
    %v133 = vsub.s32 0, %v132
    %v134 = vrot.slane %v129, %v133
    %v135 = vlaneseq
    %v136 = vshrl.u32 %v135, 7
    %v137 = vsub.s32 0, %v136
    %v138 = vrot.slane %v130, %v137
    %140 = vset.pattern.permute.xlu0 0
    %141 = vperm.xlu0 %140, %v30
    %v142 = vpop.permute.xlu0 %141
    %v144 = vmul.f32 %v134, %v142
    %v145 = vmul.f32 %v138, %v142
    %v146 = vadd.f32 %v107, %v144
    %v147 = vadd.f32 %v107, %v145
    %v148 = vlaneseq
    %v149 = vshrl.u32 %v148, 7
    %v150 = vsub.s32 1, %v149
    %v151 = vrot.slane %v129, %v150
    %v152 = vlaneseq
    %v153 = vshrl.u32 %v152, 7
    %v154 = vsub.s32 1, %v153
    %v155 = vrot.slane %v130, %v154
    %157 = vset.pattern.permute.xlu0 0
    %158 = vperm.xlu0 %157, %v31
    %v159 = vpop.permute.xlu0 %158
    %v161 = vmul.f32 %v151, %v159
    %v162 = vmul.f32 %v155, %v159
    %v163 = vadd.f32 %v146, %v161
    %v164 = vadd.f32 %v147, %v162
    %v165 = vlaneseq
    %v166 = vshrl.u32 %v165, 7
    %v167 = vsub.s32 2, %v166
    %v168 = vrot.slane %v129, %v167
    %v169 = vlaneseq
    %v170 = vshrl.u32 %v169, 7
    %v171 = vsub.s32 2, %v170
    %v172 = vrot.slane %v130, %v171
    %174 = vset.pattern.permute.xlu0 0
    %175 = vperm.xlu0 %174, %v32
    %v176 = vpop.permute.xlu0 %175
    %v178 = vmul.f32 %v168, %v176
    %v179 = vmul.f32 %v172, %v176
    %v180 = vadd.f32 %v163, %v178
    %v181 = vadd.f32 %v164, %v179
    %v182 = vlaneseq
    %v183 = vshrl.u32 %v182, 7
    %v184 = vsub.s32 3, %v183
    %v185 = vrot.slane %v129, %v184
    %v186 = vlaneseq
    %v187 = vshrl.u32 %v186, 7
    %v188 = vsub.s32 3, %v187
    %v189 = vrot.slane %v130, %v188
    %191 = vset.pattern.permute.xlu0 0
    %192 = vperm.xlu0 %191, %v33
    %v193 = vpop.permute.xlu0 %192
    %v195 = vmul.f32 %v185, %v193
    %v196 = vmul.f32 %v189, %v193
    %v197 = vadd.f32 %v180, %v195
    %v198 = vadd.f32 %v181, %v196
    %199 = vrot.lane.b32.xlu0 %v24, 16
    %v200 = vpop.permute.xlu0 %199
    %201 = vrot.lane.b32.xlu0 %v110, 16
    %v202 = vpop.permute.xlu0 %201
    %vm203 = vcmp.lt.s32.totalorder %v117, 16
    %v204 = vsel %vm203, %v200, %v202
    %v205 = vsel %vm203, %v202, %v200
    %v206 = vlaneseq
    %v207 = vshrl.u32 %v206, 7
    %v208 = vsub.s32 1, %v207
    %v209 = vrot.slane %v26, %v208
    %v210 = vlaneseq
    %v211 = vshrl.u32 %v210, 7
    %v212 = vsub.s32 1, %v211
    %v213 = vrot.slane %v27, %v212
    %v214 = vmul.f32 %v205, %v209
    %v215 = vmul.f32 %v204, %v213
    %v216 = vlaneseq
    %v217 = vshrl.u32 %v216, 7
    %v218 = vsub.s32 0, %v217
    %v219 = vrot.slane %v214, %v218
    %v220 = vlaneseq
    %v221 = vshrl.u32 %v220, 7
    %v222 = vsub.s32 0, %v221
    %v223 = vrot.slane %v215, %v222
    %225 = vset.pattern.permute.xlu0 0
    %226 = vperm.xlu0 %225, %v34
    %v227 = vpop.permute.xlu0 %226
    %v229 = vmul.f32 %v219, %v227
    %v230 = vmul.f32 %v223, %v227
    %v231 = vadd.f32 %v197, %v229
    %v232 = vadd.f32 %v198, %v230
    %v233 = vlaneseq
    %v234 = vshrl.u32 %v233, 7
    %v235 = vsub.s32 1, %v234
    %v236 = vrot.slane %v214, %v235
    %v237 = vlaneseq
    %v238 = vshrl.u32 %v237, 7
    %v239 = vsub.s32 1, %v238
    %v240 = vrot.slane %v215, %v239
    %242 = vset.pattern.permute.xlu0 0
    %243 = vperm.xlu0 %242, %v35
    %v244 = vpop.permute.xlu0 %243
    %v246 = vmul.f32 %v236, %v244
    %v247 = vmul.f32 %v240, %v244
    %v248 = vadd.f32 %v231, %v246
    %v249 = vadd.f32 %v232, %v247
    %v250 = vlaneseq
    %v251 = vshrl.u32 %v250, 7
    %v252 = vsub.s32 2, %v251
    %v253 = vrot.slane %v214, %v252
    %v254 = vlaneseq
    %v255 = vshrl.u32 %v254, 7
    %v256 = vsub.s32 2, %v255
    %v257 = vrot.slane %v215, %v256
    %259 = vset.pattern.permute.xlu0 0
    %260 = vperm.xlu0 %259, %v36
    %v261 = vpop.permute.xlu0 %260
    %v263 = vmul.f32 %v253, %v261
    %v264 = vmul.f32 %v257, %v261
    %v265 = vadd.f32 %v248, %v263
    %v266 = vadd.f32 %v249, %v264
    %v267 = vlaneseq
    %v268 = vshrl.u32 %v267, 7
    %v269 = vsub.s32 3, %v268
    %v270 = vrot.slane %v214, %v269
    %v271 = vlaneseq
    %v272 = vshrl.u32 %v271, 7
    %v273 = vsub.s32 3, %v272
    %v274 = vrot.slane %v215, %v273
    %276 = vset.pattern.permute.xlu0 0
    %277 = vperm.xlu0 %276, %v37
    %v278 = vpop.permute.xlu0 %277
    %v280 = vmul.f32 %v270, %v278
    %v281 = vmul.f32 %v274, %v278
    %v282 = vadd.f32 %v265, %v280
    %v283 = vadd.f32 %v266, %v281
    %284 = vrot.lane.b32.xlu0 %v24, 15
    %v285 = vpop.permute.xlu0 %284
    %286 = vrot.lane.b32.xlu0 %v110, 15
    %v287 = vpop.permute.xlu0 %286
    %vm288 = vcmp.lt.s32.totalorder %v117, 15
    %v289 = vsel %vm288, %v285, %v287
    %v290 = vsel %vm288, %v287, %v285
    %v291 = vlaneseq
    %v292 = vshrl.u32 %v291, 7
    %v293 = vsub.s32 2, %v292
    %v294 = vrot.slane %v26, %v293
    %v295 = vlaneseq
    %v296 = vshrl.u32 %v295, 7
    %v297 = vsub.s32 2, %v296
    %v298 = vrot.slane %v27, %v297
    %v299 = vmul.f32 %v290, %v294
    %v300 = vmul.f32 %v289, %v298
    %v301 = vlaneseq
    %v302 = vshrl.u32 %v301, 7
    %v303 = vsub.s32 0, %v302
    %v304 = vrot.slane %v299, %v303
    %v305 = vlaneseq
    %v306 = vshrl.u32 %v305, 7
    %v307 = vsub.s32 0, %v306
    %v308 = vrot.slane %v300, %v307
    %310 = vset.pattern.permute.xlu0 0
    %311 = vperm.xlu0 %310, %v38
    %v312 = vpop.permute.xlu0 %311
    %v314 = vmul.f32 %v304, %v312
    %v315 = vmul.f32 %v308, %v312
    %v316 = vadd.f32 %v282, %v314
    %v317 = vadd.f32 %v283, %v315
    %v318 = vlaneseq
    %v319 = vshrl.u32 %v318, 7
    %v320 = vsub.s32 1, %v319
    %v321 = vrot.slane %v299, %v320
    %v322 = vlaneseq
    %v323 = vshrl.u32 %v322, 7
    %v324 = vsub.s32 1, %v323
    %v325 = vrot.slane %v300, %v324
    %327 = vset.pattern.permute.xlu0 0
    %328 = vperm.xlu0 %327, %v39
    %v329 = vpop.permute.xlu0 %328
    %v331 = vmul.f32 %v321, %v329
    %v332 = vmul.f32 %v325, %v329
    %v333 = vadd.f32 %v316, %v331
    %v334 = vadd.f32 %v317, %v332
    %v335 = vlaneseq
    %v336 = vshrl.u32 %v335, 7
    %v337 = vsub.s32 2, %v336
    %v338 = vrot.slane %v299, %v337
    %v339 = vlaneseq
    %v340 = vshrl.u32 %v339, 7
    %v341 = vsub.s32 2, %v340
    %v342 = vrot.slane %v300, %v341
    %344 = vset.pattern.permute.xlu0 0
    %345 = vperm.xlu0 %344, %v40
    %v346 = vpop.permute.xlu0 %345
    %v348 = vmul.f32 %v338, %v346
    %v349 = vmul.f32 %v342, %v346
    %v350 = vadd.f32 %v333, %v348
    %v351 = vadd.f32 %v334, %v349
    %v352 = vlaneseq
    %v353 = vshrl.u32 %v352, 7
    %v354 = vsub.s32 3, %v353
    %v355 = vrot.slane %v299, %v354
    %v356 = vlaneseq
    %v357 = vshrl.u32 %v356, 7
    %v358 = vsub.s32 3, %v357
    %v359 = vrot.slane %v300, %v358
    %361 = vset.pattern.permute.xlu0 0
    %362 = vperm.xlu0 %361, %v41
    %v363 = vpop.permute.xlu0 %362
    %v365 = vmul.f32 %v355, %v363
    %v366 = vmul.f32 %v359, %v363
    %v367 = vadd.f32 %v350, %v365
    %v368 = vadd.f32 %v351, %v366
    %369 = vrot.lane.b32.xlu0 %v24, 1
    %v370 = vpop.permute.xlu0 %369
    %371 = vrot.lane.b32.xlu0 %v110, 1
    %v372 = vpop.permute.xlu0 %371
    %vm373 = vcmp.lt.s32.totalorder %v117, 1
    %v374 = vsel %vm373, %v370, %v372
    %v375 = vsel %vm373, %v372, %v370
    %v376 = vlaneseq
    %v377 = vshrl.u32 %v376, 7
    %v378 = vsub.s32 3, %v377
    %v379 = vrot.slane %v26, %v378
    %v380 = vlaneseq
    %v381 = vshrl.u32 %v380, 7
    %v382 = vsub.s32 3, %v381
    %v383 = vrot.slane %v27, %v382
    %v384 = vmul.f32 %v375, %v379
    %v385 = vmul.f32 %v374, %v383
    %v386 = vlaneseq
    %v387 = vshrl.u32 %v386, 7
    %v388 = vsub.s32 0, %v387
    %v389 = vrot.slane %v384, %v388
    %v390 = vlaneseq
    %v391 = vshrl.u32 %v390, 7
    %v392 = vsub.s32 0, %v391
    %v393 = vrot.slane %v385, %v392
    %395 = vset.pattern.permute.xlu0 0
    %396 = vperm.xlu0 %395, %v42
    %v397 = vpop.permute.xlu0 %396
    %v399 = vmul.f32 %v389, %v397
    %v400 = vmul.f32 %v393, %v397
    %v401 = vadd.f32 %v367, %v399
    %v402 = vadd.f32 %v368, %v400
    %v403 = vlaneseq
    %v404 = vshrl.u32 %v403, 7
    %v405 = vsub.s32 1, %v404
    %v406 = vrot.slane %v384, %v405
    %v407 = vlaneseq
    %v408 = vshrl.u32 %v407, 7
    %v409 = vsub.s32 1, %v408
    %v410 = vrot.slane %v385, %v409
    %412 = vset.pattern.permute.xlu0 0
    %413 = vperm.xlu0 %412, %v43
    %v414 = vpop.permute.xlu0 %413
    %v416 = vmul.f32 %v406, %v414
    %v417 = vmul.f32 %v410, %v414
    %v418 = vadd.f32 %v401, %v416
    %v419 = vadd.f32 %v402, %v417
    %v420 = vlaneseq
    %v421 = vshrl.u32 %v420, 7
    %v422 = vsub.s32 2, %v421
    %v423 = vrot.slane %v384, %v422
    %v424 = vlaneseq
    %v425 = vshrl.u32 %v424, 7
    %v426 = vsub.s32 2, %v425
    %v427 = vrot.slane %v385, %v426
    %429 = vset.pattern.permute.xlu0 0
    %430 = vperm.xlu0 %429, %v44
    %v431 = vpop.permute.xlu0 %430
    %v433 = vmul.f32 %v423, %v431
    %v434 = vmul.f32 %v427, %v431
    %v435 = vadd.f32 %v418, %v433
    %v436 = vadd.f32 %v419, %v434
    %v437 = vlaneseq
    %v438 = vshrl.u32 %v437, 7
    %v439 = vsub.s32 3, %v438
    %v440 = vrot.slane %v384, %v439
    %v441 = vlaneseq
    %v442 = vshrl.u32 %v441, 7
    %v443 = vsub.s32 3, %v442
    %v444 = vrot.slane %v385, %v443
    %446 = vset.pattern.permute.xlu0 0
    %447 = vperm.xlu0 %446, %v45
    %v448 = vpop.permute.xlu0 %447
    %v450 = vmul.f32 %v440, %v448
    %v451 = vmul.f32 %v444, %v448
    %v452 = vadd.f32 %v435, %v450
    %v453 = vadd.f32 %v436, %v451
    %v454 = vlaneseq
    %v455 = vshrl.u32 %v454, 7
    %v456 = vsub.s32 0, %v455
    %v457 = vrot.slane %v24, %v456
    %v458 = vlaneseq
    %v459 = vshrl.u32 %v458, 7
    %v460 = vsub.s32 4, %v459
    %v461 = vrot.slane %v24, %v460
    %v464 = vlaneseq
    %v465 = vshrl.u32 %v464, 7
    %v466 = vsub.s32 0, %v465
    %v467 = vrot.slane %v457, %v466
    %v468 = vlaneseq
    %v469 = vshrl.u32 %v468, 7
    %v470 = vsub.s32 0, %v469
    %v471 = vrot.slane %v461, %v470
    %473 = vset.pattern.permute.xlu0 0
    %474 = vperm.xlu0 %473, %v46
    %v475 = vpop.permute.xlu0 %474
    %v477 = vmul.f32 %v467, %v475
    %v478 = vmul.f32 %v471, %v475
    %v479 = vadd.f32 %v452, %v477
    %v480 = vadd.f32 %v453, %v478
    %v481 = vlaneseq
    %v482 = vshrl.u32 %v481, 7
    %v483 = vsub.s32 1, %v482
    %v484 = vrot.slane %v24, %v483
    %v485 = vlaneseq
    %v486 = vshrl.u32 %v485, 7
    %v487 = vsub.s32 5, %v486
    %v488 = vrot.slane %v24, %v487
    %v491 = vlaneseq
    %v492 = vshrl.u32 %v491, 7
    %v493 = vsub.s32 1, %v492
    %v494 = vrot.slane %v484, %v493
    %v495 = vlaneseq
    %v496 = vshrl.u32 %v495, 7
    %v497 = vsub.s32 1, %v496
    %v498 = vrot.slane %v488, %v497
    %500 = vset.pattern.permute.xlu0 0
    %501 = vperm.xlu0 %500, %v47
    %v502 = vpop.permute.xlu0 %501
    %v504 = vmul.f32 %v494, %v502
    %v505 = vmul.f32 %v498, %v502
    %v506 = vadd.f32 %v479, %v504
    %v507 = vadd.f32 %v480, %v505
    %v508 = vlaneseq
    %v509 = vshrl.u32 %v508, 7
    %v510 = vsub.s32 2, %v509
    %v511 = vrot.slane %v24, %v510
    %v512 = vlaneseq
    %v513 = vshrl.u32 %v512, 7
    %v514 = vsub.s32 6, %v513
    %v515 = vrot.slane %v24, %v514
    %v518 = vlaneseq
    %v519 = vshrl.u32 %v518, 7
    %v520 = vsub.s32 2, %v519
    %v521 = vrot.slane %v511, %v520
    %v522 = vlaneseq
    %v523 = vshrl.u32 %v522, 7
    %v524 = vsub.s32 2, %v523
    %v525 = vrot.slane %v515, %v524
    %527 = vset.pattern.permute.xlu0 0
    %528 = vperm.xlu0 %527, %v48
    %v529 = vpop.permute.xlu0 %528
    %v531 = vmul.f32 %v521, %v529
    %v532 = vmul.f32 %v525, %v529
    %v533 = vadd.f32 %v506, %v531
    %v534 = vadd.f32 %v507, %v532
    %v535 = vlaneseq
    %v536 = vshrl.u32 %v535, 7
    %v537 = vsub.s32 3, %v536
    %v538 = vrot.slane %v24, %v537
    %v539 = vlaneseq
    %v540 = vshrl.u32 %v539, 7
    %v541 = vsub.s32 7, %v540
    %v542 = vrot.slane %v24, %v541
    %v545 = vlaneseq
    %v546 = vshrl.u32 %v545, 7
    %v547 = vsub.s32 3, %v546
    %v548 = vrot.slane %v538, %v547
    %v549 = vlaneseq
    %v550 = vshrl.u32 %v549, 7
    %v551 = vsub.s32 3, %v550
    %v552 = vrot.slane %v542, %v551
    %554 = vset.pattern.permute.xlu0 0
    %555 = vperm.xlu0 %554, %v49
    %v556 = vpop.permute.xlu0 %555
    %v558 = vmul.f32 %v548, %v556
    %v559 = vmul.f32 %v552, %v556
    %v560 = vadd.f32 %v533, %v558
    %v561 = vadd.f32 %v534, %v559
    %562 = vrot.lane.b32.xlu0 %v24, 127
    %v563 = vpop.permute.xlu0 %562
    %564 = vrot.lane.b32.xlu0 %v110, 127
    %v565 = vpop.permute.xlu0 %564
    %vm566 = vcmp.lt.s32.totalorder %v117, 127
    %v567 = vsel %vm566, %v563, %v565
    %v568 = vsel %vm566, %v565, %v563
    %v569 = vlaneseq
    %v570 = vshrl.u32 %v569, 7
    %v571 = vsub.s32 5, %v570
    %v572 = vrot.slane %v26, %v571
    %v573 = vlaneseq
    %v574 = vshrl.u32 %v573, 7
    %v575 = vsub.s32 5, %v574
    %v576 = vrot.slane %v27, %v575
    %v577 = vmul.f32 %v567, %v572
    %v578 = vmul.f32 %v568, %v576
    %v579 = vlaneseq
    %v580 = vshrl.u32 %v579, 7
    %v581 = vsub.s32 0, %v580
    %v582 = vrot.slane %v577, %v581
    %v583 = vlaneseq
    %v584 = vshrl.u32 %v583, 7
    %v585 = vsub.s32 0, %v584
    %v586 = vrot.slane %v578, %v585
    %588 = vset.pattern.permute.xlu0 0
    %589 = vperm.xlu0 %588, %v50
    %v590 = vpop.permute.xlu0 %589
    %v592 = vmul.f32 %v582, %v590
    %v593 = vmul.f32 %v586, %v590
    %v594 = vadd.f32 %v560, %v592
    %v595 = vadd.f32 %v561, %v593
    %v596 = vlaneseq
    %v597 = vshrl.u32 %v596, 7
    %v598 = vsub.s32 1, %v597
    %v599 = vrot.slane %v577, %v598
    %v600 = vlaneseq
    %v601 = vshrl.u32 %v600, 7
    %v602 = vsub.s32 1, %v601
    %v603 = vrot.slane %v578, %v602
    %605 = vset.pattern.permute.xlu0 0
    %606 = vperm.xlu0 %605, %v51
    %v607 = vpop.permute.xlu0 %606
    %v609 = vmul.f32 %v599, %v607
    %v610 = vmul.f32 %v603, %v607
    %v611 = vadd.f32 %v594, %v609
    %v612 = vadd.f32 %v595, %v610
    %v613 = vlaneseq
    %v614 = vshrl.u32 %v613, 7
    %v615 = vsub.s32 2, %v614
    %v616 = vrot.slane %v577, %v615
    %v617 = vlaneseq
    %v618 = vshrl.u32 %v617, 7
    %v619 = vsub.s32 2, %v618
    %v620 = vrot.slane %v578, %v619
    %622 = vset.pattern.permute.xlu0 0
    %623 = vperm.xlu0 %622, %v52
    %v624 = vpop.permute.xlu0 %623
    %v626 = vmul.f32 %v616, %v624
    %v627 = vmul.f32 %v620, %v624
    %v628 = vadd.f32 %v611, %v626
    %v629 = vadd.f32 %v612, %v627
    %v630 = vlaneseq
    %v631 = vshrl.u32 %v630, 7
    %v632 = vsub.s32 3, %v631
    %v633 = vrot.slane %v577, %v632
    %v634 = vlaneseq
    %v635 = vshrl.u32 %v634, 7
    %v636 = vsub.s32 3, %v635
    %v637 = vrot.slane %v578, %v636
    %639 = vset.pattern.permute.xlu0 0
    %640 = vperm.xlu0 %639, %v53
    %v641 = vpop.permute.xlu0 %640
    %v643 = vmul.f32 %v633, %v641
    %v644 = vmul.f32 %v637, %v641
    %v645 = vadd.f32 %v628, %v643
    %v646 = vadd.f32 %v629, %v644
    %647 = vrot.lane.b32.xlu0 %v24, 113
    %v648 = vpop.permute.xlu0 %647
    %649 = vrot.lane.b32.xlu0 %v110, 113
    %v650 = vpop.permute.xlu0 %649
    %vm651 = vcmp.lt.s32.totalorder %v117, 113
    %v652 = vsel %vm651, %v648, %v650
    %v653 = vsel %vm651, %v650, %v648
    %v654 = vlaneseq
    %v655 = vshrl.u32 %v654, 7
    %v656 = vsub.s32 6, %v655
    %v657 = vrot.slane %v26, %v656
    %v658 = vlaneseq
    %v659 = vshrl.u32 %v658, 7
    %v660 = vsub.s32 6, %v659
    %v661 = vrot.slane %v27, %v660
    %v662 = vmul.f32 %v652, %v657
    %v663 = vmul.f32 %v653, %v661
    %v664 = vlaneseq
    %v665 = vshrl.u32 %v664, 7
    %v666 = vsub.s32 0, %v665
    %v667 = vrot.slane %v662, %v666
    %v668 = vlaneseq
    %v669 = vshrl.u32 %v668, 7
    %v670 = vsub.s32 0, %v669
    %v671 = vrot.slane %v663, %v670
    %673 = vset.pattern.permute.xlu0 0
    %674 = vperm.xlu0 %673, %v54
    %v675 = vpop.permute.xlu0 %674
    %v677 = vmul.f32 %v667, %v675
    %v678 = vmul.f32 %v671, %v675
    %v679 = vadd.f32 %v645, %v677
    %v680 = vadd.f32 %v646, %v678
    %v681 = vlaneseq
    %v682 = vshrl.u32 %v681, 7
    %v683 = vsub.s32 1, %v682
    %v684 = vrot.slane %v662, %v683
    %v685 = vlaneseq
    %v686 = vshrl.u32 %v685, 7
    %v687 = vsub.s32 1, %v686
    %v688 = vrot.slane %v663, %v687
    %690 = vset.pattern.permute.xlu0 0
    %691 = vperm.xlu0 %690, %v55
    %v692 = vpop.permute.xlu0 %691
    %v694 = vmul.f32 %v684, %v692
    %v695 = vmul.f32 %v688, %v692
    %v696 = vadd.f32 %v679, %v694
    %v697 = vadd.f32 %v680, %v695
    %v698 = vlaneseq
    %v699 = vshrl.u32 %v698, 7
    %v700 = vsub.s32 2, %v699
    %v701 = vrot.slane %v662, %v700
    %v702 = vlaneseq
    %v703 = vshrl.u32 %v702, 7
    %v704 = vsub.s32 2, %v703
    %v705 = vrot.slane %v663, %v704
    %707 = vset.pattern.permute.xlu0 0
    %708 = vperm.xlu0 %707, %v56
    %v709 = vpop.permute.xlu0 %708
    %v711 = vmul.f32 %v701, %v709
    %v712 = vmul.f32 %v705, %v709
    %v713 = vadd.f32 %v696, %v711
    %v714 = vadd.f32 %v697, %v712
    %v715 = vlaneseq
    %v716 = vshrl.u32 %v715, 7
    %v717 = vsub.s32 3, %v716
    %v718 = vrot.slane %v662, %v717
    %v719 = vlaneseq
    %v720 = vshrl.u32 %v719, 7
    %v721 = vsub.s32 3, %v720
    %v722 = vrot.slane %v663, %v721
    %724 = vset.pattern.permute.xlu0 0
    %725 = vperm.xlu0 %724, %v57
    %v726 = vpop.permute.xlu0 %725
    %v728 = vmul.f32 %v718, %v726
    %v729 = vmul.f32 %v722, %v726
    %v730 = vadd.f32 %v713, %v728
    %v731 = vadd.f32 %v714, %v729
    %732 = vrot.lane.b32.xlu0 %v24, 112
    %v733 = vpop.permute.xlu0 %732
    %734 = vrot.lane.b32.xlu0 %v110, 112
    %v735 = vpop.permute.xlu0 %734
    %vm736 = vcmp.lt.s32.totalorder %v117, 112
    %v737 = vsel %vm736, %v733, %v735
    %v738 = vsel %vm736, %v735, %v733
    %v739 = vlaneseq
    %v740 = vshrl.u32 %v739, 7
    %v741 = vsub.s32 7, %v740
    %v742 = vrot.slane %v26, %v741
    %v743 = vlaneseq
    %v744 = vshrl.u32 %v743, 7
    %v745 = vsub.s32 7, %v744
    %v746 = vrot.slane %v27, %v745
    %v747 = vmul.f32 %v737, %v742
    %v748 = vmul.f32 %v738, %v746
    %v749 = vlaneseq
    %v750 = vshrl.u32 %v749, 7
    %v751 = vsub.s32 0, %v750
    %v752 = vrot.slane %v747, %v751
    %v753 = vlaneseq
    %v754 = vshrl.u32 %v753, 7
    %v755 = vsub.s32 0, %v754
    %v756 = vrot.slane %v748, %v755
    %758 = vset.pattern.permute.xlu0 0
    %759 = vperm.xlu0 %758, %v58
    %v760 = vpop.permute.xlu0 %759
    %v762 = vmul.f32 %v752, %v760
    %v763 = vmul.f32 %v756, %v760
    %v764 = vadd.f32 %v730, %v762
    %v765 = vadd.f32 %v731, %v763
    %v766 = vlaneseq
    %v767 = vshrl.u32 %v766, 7
    %v768 = vsub.s32 1, %v767
    %v769 = vrot.slane %v747, %v768
    %v770 = vlaneseq
    %v771 = vshrl.u32 %v770, 7
    %v772 = vsub.s32 1, %v771
    %v773 = vrot.slane %v748, %v772
    %775 = vset.pattern.permute.xlu0 0
    %776 = vperm.xlu0 %775, %v59
    %v777 = vpop.permute.xlu0 %776
    %v779 = vmul.f32 %v769, %v777
    %v780 = vmul.f32 %v773, %v777
    %v781 = vadd.f32 %v764, %v779
    %v782 = vadd.f32 %v765, %v780
    %v783 = vlaneseq
    %v784 = vshrl.u32 %v783, 7
    %v785 = vsub.s32 2, %v784
    %v786 = vrot.slane %v747, %v785
    %v787 = vlaneseq
    %v788 = vshrl.u32 %v787, 7
    %v789 = vsub.s32 2, %v788
    %v790 = vrot.slane %v748, %v789
    %792 = vset.pattern.permute.xlu0 0
    %793 = vperm.xlu0 %792, %v60
    %v794 = vpop.permute.xlu0 %793
    %v796 = vmul.f32 %v786, %v794
    %v797 = vmul.f32 %v790, %v794
    %v798 = vadd.f32 %v781, %v796
    %v799 = vadd.f32 %v782, %v797
    %v800 = vlaneseq
    %v801 = vshrl.u32 %v800, 7
    %v802 = vsub.s32 3, %v801
    %v803 = vrot.slane %v747, %v802
    %v804 = vlaneseq
    %v805 = vshrl.u32 %v804, 7
    %v806 = vsub.s32 3, %v805
    %v807 = vrot.slane %v748, %v806
    %809 = vset.pattern.permute.xlu0 0
    %810 = vperm.xlu0 %809, %v61
    %v811 = vpop.permute.xlu0 %810
    %v813 = vmul.f32 %v803, %v811
    %v814 = vmul.f32 %v807, %v811
    %v815 = vadd.f32 %v798, %v813
    %v816 = vadd.f32 %v799, %v814
    %817 = vrot.lane.b32.xlu0 %v24, 111
    %v818 = vpop.permute.xlu0 %817
    %819 = vrot.lane.b32.xlu0 %v110, 111
    %v820 = vpop.permute.xlu0 %819
    %vm821 = vcmp.lt.s32.totalorder %v117, 111
    %v822 = vsel %vm821, %v818, %v820
    %v823 = vsel %vm821, %v820, %v818
    %v824 = vlaneseq
    %v825 = vshrl.u32 %v824, 7
    %v826 = vsub.s32 0, %v825
    %v827 = vrot.slane %v28, %v826
    %v828 = vlaneseq
    %v829 = vshrl.u32 %v828, 7
    %v830 = vsub.s32 0, %v829
    %v831 = vrot.slane %v29, %v830
    %v832 = vmul.f32 %v822, %v827
    %v833 = vmul.f32 %v823, %v831
    %v834 = vlaneseq
    %v835 = vshrl.u32 %v834, 7
    %v836 = vsub.s32 0, %v835
    %v837 = vrot.slane %v832, %v836
    %v838 = vlaneseq
    %v839 = vshrl.u32 %v838, 7
    %v840 = vsub.s32 0, %v839
    %v841 = vrot.slane %v833, %v840
    %843 = vset.pattern.permute.xlu0 0
    %844 = vperm.xlu0 %843, %v62
    %v845 = vpop.permute.xlu0 %844
    %v847 = vmul.f32 %v837, %v845
    %v848 = vmul.f32 %v841, %v845
    %v849 = vadd.f32 %v815, %v847
    %v850 = vadd.f32 %v816, %v848
    %v851 = vlaneseq
    %v852 = vshrl.u32 %v851, 7
    %v853 = vsub.s32 1, %v852
    %v854 = vrot.slane %v832, %v853
    %v855 = vlaneseq
    %v856 = vshrl.u32 %v855, 7
    %v857 = vsub.s32 1, %v856
    %v858 = vrot.slane %v833, %v857
    %860 = vset.pattern.permute.xlu0 0
    %861 = vperm.xlu0 %860, %v63
    %v862 = vpop.permute.xlu0 %861
    %v864 = vmul.f32 %v854, %v862
    %v865 = vmul.f32 %v858, %v862
    %v866 = vadd.f32 %v849, %v864
    %v867 = vadd.f32 %v850, %v865
    %v868 = vlaneseq
    %v869 = vshrl.u32 %v868, 7
    %v870 = vsub.s32 2, %v869
    %v871 = vrot.slane %v832, %v870
    %v872 = vlaneseq
    %v873 = vshrl.u32 %v872, 7
    %v874 = vsub.s32 2, %v873
    %v875 = vrot.slane %v833, %v874
    %877 = vset.pattern.permute.xlu0 0
    %878 = vperm.xlu0 %877, %v64
    %v879 = vpop.permute.xlu0 %878
    %v881 = vmul.f32 %v871, %v879
    %v882 = vmul.f32 %v875, %v879
    %v883 = vadd.f32 %v866, %v881
    %v884 = vadd.f32 %v867, %v882
    %v885 = vlaneseq
    %v886 = vshrl.u32 %v885, 7
    %v887 = vsub.s32 3, %v886
    %v888 = vrot.slane %v832, %v887
    %v889 = vlaneseq
    %v890 = vshrl.u32 %v889, 7
    %v891 = vsub.s32 3, %v890
    %v892 = vrot.slane %v833, %v891
    %894 = vset.pattern.permute.xlu0 0
    %895 = vperm.xlu0 %894, %v65
    %v896 = vpop.permute.xlu0 %895
    %v898 = vmul.f32 %v888, %v896
    %v899 = vmul.f32 %v892, %v896
    %v900 = vadd.f32 %v883, %v898
    %v901 = vadd.f32 %v884, %v899
    %v902 = vmax.f32 %v900, 0.0
    %v903 = vmax.f32 %v901, 0.0
    %v904 = vmin.f32 %v902, 20.0
    %v905 = vmin.f32 %v903, 20.0
    %907 = vset.pattern.permute.xlu0 0
    %908 = vperm.xlu0 %907, %v103
    %v909 = vpop.permute.xlu0 %908
    %911 = vrot.lane.b32.xlu0 %v904, 17
    %v912 = vpop.permute.xlu0 %911
    %913 = vrot.lane.b32.xlu0 %v905, 17
    %v914 = vpop.permute.xlu0 %913
    %v915 = vsel %vm118, %v912, %v914
    %v916 = vsel %vm118, %v914, %v912
    %v917 = vmul.f32 %v916, %v124
    %v918 = vmul.f32 %v915, %v128
    %v919 = vlaneseq
    %v920 = vshrl.u32 %v919, 7
    %v921 = vsub.s32 0, %v920
    %v922 = vrot.slane %v917, %v921
    %v923 = vlaneseq
    %v924 = vshrl.u32 %v923, 7
    %v925 = vsub.s32 0, %v924
    %v926 = vrot.slane %v918, %v925
    %928 = vset.pattern.permute.xlu0 0
    %929 = vperm.xlu0 %928, %v66
    %v930 = vpop.permute.xlu0 %929
    %v932 = vmul.f32 %v922, %v930
    %v933 = vmul.f32 %v926, %v930
    %v934 = vadd.f32 %v909, %v932
    %v935 = vadd.f32 %v909, %v933
    %v936 = vlaneseq
    %v937 = vshrl.u32 %v936, 7
    %v938 = vsub.s32 1, %v937
    %v939 = vrot.slane %v917, %v938
    %v940 = vlaneseq
    %v941 = vshrl.u32 %v940, 7
    %v942 = vsub.s32 1, %v941
    %v943 = vrot.slane %v918, %v942
    %945 = vset.pattern.permute.xlu0 0
    %946 = vperm.xlu0 %945, %v67
    %v947 = vpop.permute.xlu0 %946
    %v949 = vmul.f32 %v939, %v947
    %v950 = vmul.f32 %v943, %v947
    %v951 = vadd.f32 %v934, %v949
    %v952 = vadd.f32 %v935, %v950
    %v953 = vlaneseq
    %v954 = vshrl.u32 %v953, 7
    %v955 = vsub.s32 2, %v954
    %v956 = vrot.slane %v917, %v955
    %v957 = vlaneseq
    %v958 = vshrl.u32 %v957, 7
    %v959 = vsub.s32 2, %v958
    %v960 = vrot.slane %v918, %v959
    %962 = vset.pattern.permute.xlu0 0
    %963 = vperm.xlu0 %962, %v68
    %v964 = vpop.permute.xlu0 %963
    %v966 = vmul.f32 %v956, %v964
    %v967 = vmul.f32 %v960, %v964
    %v968 = vadd.f32 %v951, %v966
    %v969 = vadd.f32 %v952, %v967
    %v970 = vlaneseq
    %v971 = vshrl.u32 %v970, 7
    %v972 = vsub.s32 3, %v971
    %v973 = vrot.slane %v917, %v972
    %v974 = vlaneseq
    %v975 = vshrl.u32 %v974, 7
    %v976 = vsub.s32 3, %v975
    %v977 = vrot.slane %v918, %v976
    %979 = vset.pattern.permute.xlu0 0
    %980 = vperm.xlu0 %979, %v69
    %v981 = vpop.permute.xlu0 %980
    %v983 = vmul.f32 %v973, %v981
    %v984 = vmul.f32 %v977, %v981
    %v985 = vadd.f32 %v968, %v983
    %v986 = vadd.f32 %v969, %v984
    %987 = vrot.lane.b32.xlu0 %v904, 16
    %v988 = vpop.permute.xlu0 %987
    %989 = vrot.lane.b32.xlu0 %v905, 16
    %v990 = vpop.permute.xlu0 %989
    %v991 = vsel %vm203, %v988, %v990
    %v992 = vsel %vm203, %v990, %v988
    %v993 = vmul.f32 %v992, %v209
    %v994 = vmul.f32 %v991, %v213
    %v995 = vlaneseq
    %v996 = vshrl.u32 %v995, 7
    %v997 = vsub.s32 0, %v996
    %v998 = vrot.slane %v993, %v997
    %v999 = vlaneseq
    %v1000 = vshrl.u32 %v999, 7
    %v1001 = vsub.s32 0, %v1000
    %v1002 = vrot.slane %v994, %v1001
    %1004 = vset.pattern.permute.xlu0 0
    %1005 = vperm.xlu0 %1004, %v70
    %v1006 = vpop.permute.xlu0 %1005
    %v1008 = vmul.f32 %v998, %v1006
    %v1009 = vmul.f32 %v1002, %v1006
    %v1010 = vadd.f32 %v985, %v1008
    %v1011 = vadd.f32 %v986, %v1009
    %v1012 = vlaneseq
    %v1013 = vshrl.u32 %v1012, 7
    %v1014 = vsub.s32 1, %v1013
    %v1015 = vrot.slane %v993, %v1014
    %v1016 = vlaneseq
    %v1017 = vshrl.u32 %v1016, 7
    %v1018 = vsub.s32 1, %v1017
    %v1019 = vrot.slane %v994, %v1018
    %1021 = vset.pattern.permute.xlu0 0
    %1022 = vperm.xlu0 %1021, %v71
    %v1023 = vpop.permute.xlu0 %1022
    %v1025 = vmul.f32 %v1015, %v1023
    %v1026 = vmul.f32 %v1019, %v1023
    %v1027 = vadd.f32 %v1010, %v1025
    %v1028 = vadd.f32 %v1011, %v1026
    %v1029 = vlaneseq
    %v1030 = vshrl.u32 %v1029, 7
    %v1031 = vsub.s32 2, %v1030
    %v1032 = vrot.slane %v993, %v1031
    %v1033 = vlaneseq
    %v1034 = vshrl.u32 %v1033, 7
    %v1035 = vsub.s32 2, %v1034
    %v1036 = vrot.slane %v994, %v1035
    %1038 = vset.pattern.permute.xlu0 0
    %1039 = vperm.xlu0 %1038, %v72
    %v1040 = vpop.permute.xlu0 %1039
    %v1042 = vmul.f32 %v1032, %v1040
    %v1043 = vmul.f32 %v1036, %v1040
    %v1044 = vadd.f32 %v1027, %v1042
    %v1045 = vadd.f32 %v1028, %v1043
    %v1046 = vlaneseq
    %v1047 = vshrl.u32 %v1046, 7
    %v1048 = vsub.s32 3, %v1047
    %v1049 = vrot.slane %v993, %v1048
    %v1050 = vlaneseq
    %v1051 = vshrl.u32 %v1050, 7
    %v1052 = vsub.s32 3, %v1051
    %v1053 = vrot.slane %v994, %v1052
    %1055 = vset.pattern.permute.xlu0 0
    %1056 = vperm.xlu0 %1055, %v73
    %v1057 = vpop.permute.xlu0 %1056
    %v1059 = vmul.f32 %v1049, %v1057
    %v1060 = vmul.f32 %v1053, %v1057
    %v1061 = vadd.f32 %v1044, %v1059
    %v1062 = vadd.f32 %v1045, %v1060
    %1063 = vrot.lane.b32.xlu0 %v904, 15
    %v1064 = vpop.permute.xlu0 %1063
    %1065 = vrot.lane.b32.xlu0 %v905, 15
    %v1066 = vpop.permute.xlu0 %1065
    %v1067 = vsel %vm288, %v1064, %v1066
    %v1068 = vsel %vm288, %v1066, %v1064
    %v1069 = vmul.f32 %v1068, %v294
    %v1070 = vmul.f32 %v1067, %v298
    %v1071 = vlaneseq
    %v1072 = vshrl.u32 %v1071, 7
    %v1073 = vsub.s32 0, %v1072
    %v1074 = vrot.slane %v1069, %v1073
    %v1075 = vlaneseq
    %v1076 = vshrl.u32 %v1075, 7
    %v1077 = vsub.s32 0, %v1076
    %v1078 = vrot.slane %v1070, %v1077
    %1080 = vset.pattern.permute.xlu0 0
    %1081 = vperm.xlu0 %1080, %v74
    %v1082 = vpop.permute.xlu0 %1081
    %v1084 = vmul.f32 %v1074, %v1082
    %v1085 = vmul.f32 %v1078, %v1082
    %v1086 = vadd.f32 %v1061, %v1084
    %v1087 = vadd.f32 %v1062, %v1085
    %v1088 = vlaneseq
    %v1089 = vshrl.u32 %v1088, 7
    %v1090 = vsub.s32 1, %v1089
    %v1091 = vrot.slane %v1069, %v1090
    %v1092 = vlaneseq
    %v1093 = vshrl.u32 %v1092, 7
    %v1094 = vsub.s32 1, %v1093
    %v1095 = vrot.slane %v1070, %v1094
    %1097 = vset.pattern.permute.xlu0 0
    %1098 = vperm.xlu0 %1097, %v75
    %v1099 = vpop.permute.xlu0 %1098
    %v1101 = vmul.f32 %v1091, %v1099
    %v1102 = vmul.f32 %v1095, %v1099
    %v1103 = vadd.f32 %v1086, %v1101
    %v1104 = vadd.f32 %v1087, %v1102
    %v1105 = vlaneseq
    %v1106 = vshrl.u32 %v1105, 7
    %v1107 = vsub.s32 2, %v1106
    %v1108 = vrot.slane %v1069, %v1107
    %v1109 = vlaneseq
    %v1110 = vshrl.u32 %v1109, 7
    %v1111 = vsub.s32 2, %v1110
    %v1112 = vrot.slane %v1070, %v1111
    %1114 = vset.pattern.permute.xlu0 0
    %1115 = vperm.xlu0 %1114, %v76
    %v1116 = vpop.permute.xlu0 %1115
    %v1118 = vmul.f32 %v1108, %v1116
    %v1119 = vmul.f32 %v1112, %v1116
    %v1120 = vadd.f32 %v1103, %v1118
    %v1121 = vadd.f32 %v1104, %v1119
    %v1122 = vlaneseq
    %v1123 = vshrl.u32 %v1122, 7
    %v1124 = vsub.s32 3, %v1123
    %v1125 = vrot.slane %v1069, %v1124
    %v1126 = vlaneseq
    %v1127 = vshrl.u32 %v1126, 7
    %v1128 = vsub.s32 3, %v1127
    %v1129 = vrot.slane %v1070, %v1128
    %1131 = vset.pattern.permute.xlu0 0
    %1132 = vperm.xlu0 %1131, %v77
    %v1133 = vpop.permute.xlu0 %1132
    %v1135 = vmul.f32 %v1125, %v1133
    %v1136 = vmul.f32 %v1129, %v1133
    %v1137 = vadd.f32 %v1120, %v1135
    %v1138 = vadd.f32 %v1121, %v1136
    %1139 = vrot.lane.b32.xlu0 %v904, 1
    %v1140 = vpop.permute.xlu0 %1139
    %1141 = vrot.lane.b32.xlu0 %v905, 1
    %v1142 = vpop.permute.xlu0 %1141
    %v1143 = vsel %vm373, %v1140, %v1142
    %v1144 = vsel %vm373, %v1142, %v1140
    %v1145 = vmul.f32 %v1144, %v379
    %v1146 = vmul.f32 %v1143, %v383
    %v1147 = vlaneseq
    %v1148 = vshrl.u32 %v1147, 7
    %v1149 = vsub.s32 0, %v1148
    %v1150 = vrot.slane %v1145, %v1149
    %v1151 = vlaneseq
    %v1152 = vshrl.u32 %v1151, 7
    %v1153 = vsub.s32 0, %v1152
    %v1154 = vrot.slane %v1146, %v1153
    %1156 = vset.pattern.permute.xlu0 0
    %1157 = vperm.xlu0 %1156, %v78
    %v1158 = vpop.permute.xlu0 %1157
    %v1160 = vmul.f32 %v1150, %v1158
    %v1161 = vmul.f32 %v1154, %v1158
    %v1162 = vadd.f32 %v1137, %v1160
    %v1163 = vadd.f32 %v1138, %v1161
    %v1164 = vlaneseq
    %v1165 = vshrl.u32 %v1164, 7
    %v1166 = vsub.s32 1, %v1165
    %v1167 = vrot.slane %v1145, %v1166
    %v1168 = vlaneseq
    %v1169 = vshrl.u32 %v1168, 7
    %v1170 = vsub.s32 1, %v1169
    %v1171 = vrot.slane %v1146, %v1170
    %1173 = vset.pattern.permute.xlu0 0
    %1174 = vperm.xlu0 %1173, %v79
    %v1175 = vpop.permute.xlu0 %1174
    %v1177 = vmul.f32 %v1167, %v1175
    %v1178 = vmul.f32 %v1171, %v1175
    %v1179 = vadd.f32 %v1162, %v1177
    %v1180 = vadd.f32 %v1163, %v1178
    %v1181 = vlaneseq
    %v1182 = vshrl.u32 %v1181, 7
    %v1183 = vsub.s32 2, %v1182
    %v1184 = vrot.slane %v1145, %v1183
    %v1185 = vlaneseq
    %v1186 = vshrl.u32 %v1185, 7
    %v1187 = vsub.s32 2, %v1186
    %v1188 = vrot.slane %v1146, %v1187
    %1190 = vset.pattern.permute.xlu0 0
    %1191 = vperm.xlu0 %1190, %v80
    %v1192 = vpop.permute.xlu0 %1191
    %v1194 = vmul.f32 %v1184, %v1192
    %v1195 = vmul.f32 %v1188, %v1192
    %v1196 = vadd.f32 %v1179, %v1194
    %v1197 = vadd.f32 %v1180, %v1195
    %v1198 = vlaneseq
    %v1199 = vshrl.u32 %v1198, 7
    %v1200 = vsub.s32 3, %v1199
    %v1201 = vrot.slane %v1145, %v1200
    %v1202 = vlaneseq
    %v1203 = vshrl.u32 %v1202, 7
    %v1204 = vsub.s32 3, %v1203
    %v1205 = vrot.slane %v1146, %v1204
    %1207 = vset.pattern.permute.xlu0 0
    %1208 = vperm.xlu0 %1207, %v81
    %v1209 = vpop.permute.xlu0 %1208
    %v1211 = vmul.f32 %v1201, %v1209
    %v1212 = vmul.f32 %v1205, %v1209
    %v1213 = vadd.f32 %v1196, %v1211
    %v1214 = vadd.f32 %v1197, %v1212
    %v1215 = vlaneseq
    %v1216 = vshrl.u32 %v1215, 7
    %v1217 = vsub.s32 0, %v1216
    %v1218 = vrot.slane %v904, %v1217
    %v1219 = vlaneseq
    %v1220 = vshrl.u32 %v1219, 7
    %v1221 = vsub.s32 0, %v1220
    %v1222 = vrot.slane %v905, %v1221
    %1224 = vset.pattern.permute.xlu0 0
    %1225 = vperm.xlu0 %1224, %v82
    %v1226 = vpop.permute.xlu0 %1225
    %v1228 = vmul.f32 %v1218, %v1226
    %v1229 = vmul.f32 %v1222, %v1226
    %v1230 = vadd.f32 %v1213, %v1228
    %v1231 = vadd.f32 %v1214, %v1229
    %v1232 = vlaneseq
    %v1233 = vshrl.u32 %v1232, 7
    %v1234 = vsub.s32 1, %v1233
    %v1235 = vrot.slane %v904, %v1234
    %v1236 = vlaneseq
    %v1237 = vshrl.u32 %v1236, 7
    %v1238 = vsub.s32 1, %v1237
    %v1239 = vrot.slane %v905, %v1238
    %1241 = vset.pattern.permute.xlu0 0
    %1242 = vperm.xlu0 %1241, %v83
    %v1243 = vpop.permute.xlu0 %1242
    %v1245 = vmul.f32 %v1235, %v1243
    %v1246 = vmul.f32 %v1239, %v1243
    %v1247 = vadd.f32 %v1230, %v1245
    %v1248 = vadd.f32 %v1231, %v1246
    %v1249 = vlaneseq
    %v1250 = vshrl.u32 %v1249, 7
    %v1251 = vsub.s32 2, %v1250
    %v1252 = vrot.slane %v904, %v1251
    %v1253 = vlaneseq
    %v1254 = vshrl.u32 %v1253, 7
    %v1255 = vsub.s32 2, %v1254
    %v1256 = vrot.slane %v905, %v1255
    %1258 = vset.pattern.permute.xlu0 0
    %1259 = vperm.xlu0 %1258, %v84
    %v1260 = vpop.permute.xlu0 %1259
    %v1262 = vmul.f32 %v1252, %v1260
    %v1263 = vmul.f32 %v1256, %v1260
    %v1264 = vadd.f32 %v1247, %v1262
    %v1265 = vadd.f32 %v1248, %v1263
    %v1266 = vlaneseq
    %v1267 = vshrl.u32 %v1266, 7
    %v1268 = vsub.s32 3, %v1267
    %v1269 = vrot.slane %v904, %v1268
    %v1270 = vlaneseq
    %v1271 = vshrl.u32 %v1270, 7
    %v1272 = vsub.s32 3, %v1271
    %v1273 = vrot.slane %v905, %v1272
    %1275 = vset.pattern.permute.xlu0 0
    %1276 = vperm.xlu0 %1275, %v85
    %v1277 = vpop.permute.xlu0 %1276
    %v1279 = vmul.f32 %v1269, %v1277
    %v1280 = vmul.f32 %v1273, %v1277
    %v1281 = vadd.f32 %v1264, %v1279
    %v1282 = vadd.f32 %v1265, %v1280
    %1283 = vrot.lane.b32.xlu0 %v904, 127
    %v1284 = vpop.permute.xlu0 %1283
    %1285 = vrot.lane.b32.xlu0 %v905, 127
    %v1286 = vpop.permute.xlu0 %1285
    %v1287 = vsel %vm566, %v1284, %v1286
    %v1288 = vsel %vm566, %v1286, %v1284
    %v1289 = vmul.f32 %v1287, %v572
    %v1290 = vmul.f32 %v1288, %v576
    %v1291 = vlaneseq
    %v1292 = vshrl.u32 %v1291, 7
    %v1293 = vsub.s32 0, %v1292
    %v1294 = vrot.slane %v1289, %v1293
    %v1295 = vlaneseq
    %v1296 = vshrl.u32 %v1295, 7
    %v1297 = vsub.s32 0, %v1296
    %v1298 = vrot.slane %v1290, %v1297
    %1300 = vset.pattern.permute.xlu0 0
    %1301 = vperm.xlu0 %1300, %v86
    %v1302 = vpop.permute.xlu0 %1301
    %v1304 = vmul.f32 %v1294, %v1302
    %v1305 = vmul.f32 %v1298, %v1302
    %v1306 = vadd.f32 %v1281, %v1304
    %v1307 = vadd.f32 %v1282, %v1305
    %v1308 = vlaneseq
    %v1309 = vshrl.u32 %v1308, 7
    %v1310 = vsub.s32 1, %v1309
    %v1311 = vrot.slane %v1289, %v1310
    %v1312 = vlaneseq
    %v1313 = vshrl.u32 %v1312, 7
    %v1314 = vsub.s32 1, %v1313
    %v1315 = vrot.slane %v1290, %v1314
    %1317 = vset.pattern.permute.xlu0 0
    %1318 = vperm.xlu0 %1317, %v87
    %v1319 = vpop.permute.xlu0 %1318
    %v1321 = vmul.f32 %v1311, %v1319
    %v1322 = vmul.f32 %v1315, %v1319
    %v1323 = vadd.f32 %v1306, %v1321
    %v1324 = vadd.f32 %v1307, %v1322
    %v1325 = vlaneseq
    %v1326 = vshrl.u32 %v1325, 7
    %v1327 = vsub.s32 2, %v1326
    %v1328 = vrot.slane %v1289, %v1327
    %v1329 = vlaneseq
    %v1330 = vshrl.u32 %v1329, 7
    %v1331 = vsub.s32 2, %v1330
    %v1332 = vrot.slane %v1290, %v1331
    %1334 = vset.pattern.permute.xlu0 0
    %1335 = vperm.xlu0 %1334, %v88
    %v1336 = vpop.permute.xlu0 %1335
    %v1338 = vmul.f32 %v1328, %v1336
    %v1339 = vmul.f32 %v1332, %v1336
    %v1340 = vadd.f32 %v1323, %v1338
    %v1341 = vadd.f32 %v1324, %v1339
    %v1342 = vlaneseq
    %v1343 = vshrl.u32 %v1342, 7
    %v1344 = vsub.s32 3, %v1343
    %v1345 = vrot.slane %v1289, %v1344
    %v1346 = vlaneseq
    %v1347 = vshrl.u32 %v1346, 7
    %v1348 = vsub.s32 3, %v1347
    %v1349 = vrot.slane %v1290, %v1348
    %1351 = vset.pattern.permute.xlu0 0
    %1352 = vperm.xlu0 %1351, %v89
    %v1353 = vpop.permute.xlu0 %1352
    %v1355 = vmul.f32 %v1345, %v1353
    %v1356 = vmul.f32 %v1349, %v1353
    %v1357 = vadd.f32 %v1340, %v1355
    %v1358 = vadd.f32 %v1341, %v1356
    %1359 = vrot.lane.b32.xlu0 %v904, 113
    %v1360 = vpop.permute.xlu0 %1359
    %1361 = vrot.lane.b32.xlu0 %v905, 113
    %v1362 = vpop.permute.xlu0 %1361
    %v1363 = vsel %vm651, %v1360, %v1362
    %v1364 = vsel %vm651, %v1362, %v1360
    %v1365 = vmul.f32 %v1363, %v657
    %v1366 = vmul.f32 %v1364, %v661
    %v1367 = vlaneseq
    %v1368 = vshrl.u32 %v1367, 7
    %v1369 = vsub.s32 0, %v1368
    %v1370 = vrot.slane %v1365, %v1369
    %v1371 = vlaneseq
    %v1372 = vshrl.u32 %v1371, 7
    %v1373 = vsub.s32 0, %v1372
    %v1374 = vrot.slane %v1366, %v1373
    %1376 = vset.pattern.permute.xlu0 0
    %1377 = vperm.xlu0 %1376, %v90
    %v1378 = vpop.permute.xlu0 %1377
    %v1380 = vmul.f32 %v1370, %v1378
    %v1381 = vmul.f32 %v1374, %v1378
    %v1382 = vadd.f32 %v1357, %v1380
    %v1383 = vadd.f32 %v1358, %v1381
    %v1384 = vlaneseq
    %v1385 = vshrl.u32 %v1384, 7
    %v1386 = vsub.s32 1, %v1385
    %v1387 = vrot.slane %v1365, %v1386
    %v1388 = vlaneseq
    %v1389 = vshrl.u32 %v1388, 7
    %v1390 = vsub.s32 1, %v1389
    %v1391 = vrot.slane %v1366, %v1390
    %1393 = vset.pattern.permute.xlu0 0
    %1394 = vperm.xlu0 %1393, %v91
    %v1395 = vpop.permute.xlu0 %1394
    %v1397 = vmul.f32 %v1387, %v1395
    %v1398 = vmul.f32 %v1391, %v1395
    %v1399 = vadd.f32 %v1382, %v1397
    %v1400 = vadd.f32 %v1383, %v1398
    %v1401 = vlaneseq
    %v1402 = vshrl.u32 %v1401, 7
    %v1403 = vsub.s32 2, %v1402
    %v1404 = vrot.slane %v1365, %v1403
    %v1405 = vlaneseq
    %v1406 = vshrl.u32 %v1405, 7
    %v1407 = vsub.s32 2, %v1406
    %v1408 = vrot.slane %v1366, %v1407
    %1410 = vset.pattern.permute.xlu0 0
    %1411 = vperm.xlu0 %1410, %v92
    %v1412 = vpop.permute.xlu0 %1411
    %v1414 = vmul.f32 %v1404, %v1412
    %v1415 = vmul.f32 %v1408, %v1412
    %v1416 = vadd.f32 %v1399, %v1414
    %v1417 = vadd.f32 %v1400, %v1415
    %v1418 = vlaneseq
    %v1419 = vshrl.u32 %v1418, 7
    %v1420 = vsub.s32 3, %v1419
    %v1421 = vrot.slane %v1365, %v1420
    %v1422 = vlaneseq
    %v1423 = vshrl.u32 %v1422, 7
    %v1424 = vsub.s32 3, %v1423
    %v1425 = vrot.slane %v1366, %v1424
    %1427 = vset.pattern.permute.xlu0 0
    %1428 = vperm.xlu0 %1427, %v93
    %v1429 = vpop.permute.xlu0 %1428
    %v1431 = vmul.f32 %v1421, %v1429
    %v1432 = vmul.f32 %v1425, %v1429
    %v1433 = vadd.f32 %v1416, %v1431
    %v1434 = vadd.f32 %v1417, %v1432
    %1435 = vrot.lane.b32.xlu0 %v904, 112
    %v1436 = vpop.permute.xlu0 %1435
    %1437 = vrot.lane.b32.xlu0 %v905, 112
    %v1438 = vpop.permute.xlu0 %1437
    %v1439 = vsel %vm736, %v1436, %v1438
    %v1440 = vsel %vm736, %v1438, %v1436
    %v1441 = vmul.f32 %v1439, %v742
    %v1442 = vmul.f32 %v1440, %v746
    %v1443 = vlaneseq
    %v1444 = vshrl.u32 %v1443, 7
    %v1445 = vsub.s32 0, %v1444
    %v1446 = vrot.slane %v1441, %v1445
    %v1447 = vlaneseq
    %v1448 = vshrl.u32 %v1447, 7
    %v1449 = vsub.s32 0, %v1448
    %v1450 = vrot.slane %v1442, %v1449
    %1452 = vset.pattern.permute.xlu0 0
    %1453 = vperm.xlu0 %1452, %v94
    %v1454 = vpop.permute.xlu0 %1453
    %v1456 = vmul.f32 %v1446, %v1454
    %v1457 = vmul.f32 %v1450, %v1454
    %v1458 = vadd.f32 %v1433, %v1456
    %v1459 = vadd.f32 %v1434, %v1457
    %v1460 = vlaneseq
    %v1461 = vshrl.u32 %v1460, 7
    %v1462 = vsub.s32 1, %v1461
    %v1463 = vrot.slane %v1441, %v1462
    %v1464 = vlaneseq
    %v1465 = vshrl.u32 %v1464, 7
    %v1466 = vsub.s32 1, %v1465
    %v1467 = vrot.slane %v1442, %v1466
    %1469 = vset.pattern.permute.xlu0 0
    %1470 = vperm.xlu0 %1469, %v95
    %v1471 = vpop.permute.xlu0 %1470
    %v1473 = vmul.f32 %v1463, %v1471
    %v1474 = vmul.f32 %v1467, %v1471
    %v1475 = vadd.f32 %v1458, %v1473
    %v1476 = vadd.f32 %v1459, %v1474
    %v1477 = vlaneseq
    %v1478 = vshrl.u32 %v1477, 7
    %v1479 = vsub.s32 2, %v1478
    %v1480 = vrot.slane %v1441, %v1479
    %v1481 = vlaneseq
    %v1482 = vshrl.u32 %v1481, 7
    %v1483 = vsub.s32 2, %v1482
    %v1484 = vrot.slane %v1442, %v1483
    %1486 = vset.pattern.permute.xlu0 0
    %1487 = vperm.xlu0 %1486, %v96
    %v1488 = vpop.permute.xlu0 %1487
    %v1490 = vmul.f32 %v1480, %v1488
    %v1491 = vmul.f32 %v1484, %v1488
    %v1492 = vadd.f32 %v1475, %v1490
    %v1493 = vadd.f32 %v1476, %v1491
    %v1494 = vlaneseq
    %v1495 = vshrl.u32 %v1494, 7
    %v1496 = vsub.s32 3, %v1495
    %v1497 = vrot.slane %v1441, %v1496
    %v1498 = vlaneseq
    %v1499 = vshrl.u32 %v1498, 7
    %v1500 = vsub.s32 3, %v1499
    %v1501 = vrot.slane %v1442, %v1500
    %1503 = vset.pattern.permute.xlu0 0
    %1504 = vperm.xlu0 %1503, %v97
    %v1505 = vpop.permute.xlu0 %1504
    %v1507 = vmul.f32 %v1497, %v1505
    %v1508 = vmul.f32 %v1501, %v1505
    %v1509 = vadd.f32 %v1492, %v1507
    %v1510 = vadd.f32 %v1493, %v1508
    %1511 = vrot.lane.b32.xlu0 %v904, 111
    %v1512 = vpop.permute.xlu0 %1511
    %1513 = vrot.lane.b32.xlu0 %v905, 111
    %v1514 = vpop.permute.xlu0 %1513
    %v1515 = vsel %vm821, %v1512, %v1514
    %v1516 = vsel %vm821, %v1514, %v1512
    %v1517 = vmul.f32 %v1515, %v827
    %v1518 = vmul.f32 %v1516, %v831
    %v1519 = vlaneseq
    %v1520 = vshrl.u32 %v1519, 7
    %v1521 = vsub.s32 0, %v1520
    %v1522 = vrot.slane %v1517, %v1521
    %v1523 = vlaneseq
    %v1524 = vshrl.u32 %v1523, 7
    %v1525 = vsub.s32 0, %v1524
    %v1526 = vrot.slane %v1518, %v1525
    %1528 = vset.pattern.permute.xlu0 0
    %1529 = vperm.xlu0 %1528, %v98
    %v1530 = vpop.permute.xlu0 %1529
    %v1532 = vmul.f32 %v1522, %v1530
    %v1533 = vmul.f32 %v1526, %v1530
    %v1534 = vadd.f32 %v1509, %v1532
    %v1535 = vadd.f32 %v1510, %v1533
    %v1536 = vlaneseq
    %v1537 = vshrl.u32 %v1536, 7
    %v1538 = vsub.s32 1, %v1537
    %v1539 = vrot.slane %v1517, %v1538
    %v1540 = vlaneseq
    %v1541 = vshrl.u32 %v1540, 7
    %v1542 = vsub.s32 1, %v1541
    %v1543 = vrot.slane %v1518, %v1542
    %1545 = vset.pattern.permute.xlu0 0
    %1546 = vperm.xlu0 %1545, %v99
    %v1547 = vpop.permute.xlu0 %1546
    %v1549 = vmul.f32 %v1539, %v1547
    %v1550 = vmul.f32 %v1543, %v1547
    %v1551 = vadd.f32 %v1534, %v1549
    %v1552 = vadd.f32 %v1535, %v1550
    %v1553 = vlaneseq
    %v1554 = vshrl.u32 %v1553, 7
    %v1555 = vsub.s32 2, %v1554
    %v1556 = vrot.slane %v1517, %v1555
    %v1557 = vlaneseq
    %v1558 = vshrl.u32 %v1557, 7
    %v1559 = vsub.s32 2, %v1558
    %v1560 = vrot.slane %v1518, %v1559
    %1562 = vset.pattern.permute.xlu0 0
    %1563 = vperm.xlu0 %1562, %v100
    %v1564 = vpop.permute.xlu0 %1563
    %v1566 = vmul.f32 %v1556, %v1564
    %v1567 = vmul.f32 %v1560, %v1564
    %v1568 = vadd.f32 %v1551, %v1566
    %v1569 = vadd.f32 %v1552, %v1567
    %v1570 = vlaneseq
    %v1571 = vshrl.u32 %v1570, 7
    %v1572 = vsub.s32 3, %v1571
    %v1573 = vrot.slane %v1517, %v1572
    %v1574 = vlaneseq
    %v1575 = vshrl.u32 %v1574, 7
    %v1576 = vsub.s32 3, %v1575
    %v1577 = vrot.slane %v1518, %v1576
    %1579 = vset.pattern.permute.xlu0 0
    %1580 = vperm.xlu0 %1579, %v101
    %v1581 = vpop.permute.xlu0 %1580
    %v1583 = vmul.f32 %v1573, %v1581
    %v1584 = vmul.f32 %v1577, %v1581
    %v1585 = vadd.f32 %v1568, %v1583
    %v1586 = vadd.f32 %v1569, %v1584
    %v1587 = vadd.f32 %v1585, %v24
    %v1588 = vadd.f32 %v1586, %v110
    %v1589 = vmax.f32 %v1587, 0.0
    %v1590 = vmax.f32 %v1588, 0.0
    %v1591 = vmin.f32 %v1589, 20.0
    %v1592 = vmin.f32 %v1590, 20.0
    %v1594 = vcombine.high %v25, %v25
    %1596 = vrot.lane.b32.xlu0 %v25, 17
    %v1597 = vpop.permute.xlu0 %1596
    %1598 = vrot.lane.b32.xlu0 %v1594, 17
    %v1599 = vpop.permute.xlu0 %1598
    %v1600 = vsel %vm118, %v1597, %v1599
    %v1601 = vsel %vm118, %v1599, %v1597
    %v1602 = vmul.f32 %v1601, %v124
    %v1603 = vmul.f32 %v1600, %v128
    %v1604 = vlaneseq
    %v1605 = vshrl.u32 %v1604, 7
    %v1606 = vsub.s32 0, %v1605
    %v1607 = vrot.slane %v1602, %v1606
    %v1608 = vlaneseq
    %v1609 = vshrl.u32 %v1608, 7
    %v1610 = vsub.s32 0, %v1609
    %v1611 = vrot.slane %v1603, %v1610
    %v1612 = vmul.f32 %v1607, %v142
    %v1613 = vmul.f32 %v1611, %v142
    %v1614 = vadd.f32 %v107, %v1612
    %v1615 = vadd.f32 %v107, %v1613
    %v1616 = vlaneseq
    %v1617 = vshrl.u32 %v1616, 7
    %v1618 = vsub.s32 1, %v1617
    %v1619 = vrot.slane %v1602, %v1618
    %v1620 = vlaneseq
    %v1621 = vshrl.u32 %v1620, 7
    %v1622 = vsub.s32 1, %v1621
    %v1623 = vrot.slane %v1603, %v1622
    %v1624 = vmul.f32 %v1619, %v159
    %v1625 = vmul.f32 %v1623, %v159
    %v1626 = vadd.f32 %v1614, %v1624
    %v1627 = vadd.f32 %v1615, %v1625
    %v1628 = vlaneseq
    %v1629 = vshrl.u32 %v1628, 7
    %v1630 = vsub.s32 2, %v1629
    %v1631 = vrot.slane %v1602, %v1630
    %v1632 = vlaneseq
    %v1633 = vshrl.u32 %v1632, 7
    %v1634 = vsub.s32 2, %v1633
    %v1635 = vrot.slane %v1603, %v1634
    %v1636 = vmul.f32 %v1631, %v176
    %v1637 = vmul.f32 %v1635, %v176
    %v1638 = vadd.f32 %v1626, %v1636
    %v1639 = vadd.f32 %v1627, %v1637
    %v1640 = vlaneseq
    %v1641 = vshrl.u32 %v1640, 7
    %v1642 = vsub.s32 3, %v1641
    %v1643 = vrot.slane %v1602, %v1642
    %v1644 = vlaneseq
    %v1645 = vshrl.u32 %v1644, 7
    %v1646 = vsub.s32 3, %v1645
    %v1647 = vrot.slane %v1603, %v1646
    %v1648 = vmul.f32 %v1643, %v193
    %v1649 = vmul.f32 %v1647, %v193
    %v1650 = vadd.f32 %v1638, %v1648
    %v1651 = vadd.f32 %v1639, %v1649
    %1652 = vrot.lane.b32.xlu0 %v25, 16
    %v1653 = vpop.permute.xlu0 %1652
    %1654 = vrot.lane.b32.xlu0 %v1594, 16
    %v1655 = vpop.permute.xlu0 %1654
    %v1656 = vsel %vm203, %v1653, %v1655
    %v1657 = vsel %vm203, %v1655, %v1653
    %v1658 = vmul.f32 %v1657, %v209
    %v1659 = vmul.f32 %v1656, %v213
    %v1660 = vlaneseq
    %v1661 = vshrl.u32 %v1660, 7
    %v1662 = vsub.s32 0, %v1661
    %v1663 = vrot.slane %v1658, %v1662
    %v1664 = vlaneseq
    %v1665 = vshrl.u32 %v1664, 7
    %v1666 = vsub.s32 0, %v1665
    %v1667 = vrot.slane %v1659, %v1666
    %v1668 = vmul.f32 %v1663, %v227
    %v1669 = vmul.f32 %v1667, %v227
    %v1670 = vadd.f32 %v1650, %v1668
    %v1671 = vadd.f32 %v1651, %v1669
    %v1672 = vlaneseq
    %v1673 = vshrl.u32 %v1672, 7
    %v1674 = vsub.s32 1, %v1673
    %v1675 = vrot.slane %v1658, %v1674
    %v1676 = vlaneseq
    %v1677 = vshrl.u32 %v1676, 7
    %v1678 = vsub.s32 1, %v1677
    %v1679 = vrot.slane %v1659, %v1678
    %v1680 = vmul.f32 %v1675, %v244
    %v1681 = vmul.f32 %v1679, %v244
    %v1682 = vadd.f32 %v1670, %v1680
    %v1683 = vadd.f32 %v1671, %v1681
    %v1684 = vlaneseq
    %v1685 = vshrl.u32 %v1684, 7
    %v1686 = vsub.s32 2, %v1685
    %v1687 = vrot.slane %v1658, %v1686
    %v1688 = vlaneseq
    %v1689 = vshrl.u32 %v1688, 7
    %v1690 = vsub.s32 2, %v1689
    %v1691 = vrot.slane %v1659, %v1690
    %v1692 = vmul.f32 %v1687, %v261
    %v1693 = vmul.f32 %v1691, %v261
    %v1694 = vadd.f32 %v1682, %v1692
    %v1695 = vadd.f32 %v1683, %v1693
    %v1696 = vlaneseq
    %v1697 = vshrl.u32 %v1696, 7
    %v1698 = vsub.s32 3, %v1697
    %v1699 = vrot.slane %v1658, %v1698
    %v1700 = vlaneseq
    %v1701 = vshrl.u32 %v1700, 7
    %v1702 = vsub.s32 3, %v1701
    %v1703 = vrot.slane %v1659, %v1702
    %v1704 = vmul.f32 %v1699, %v278
    %v1705 = vmul.f32 %v1703, %v278
    %v1706 = vadd.f32 %v1694, %v1704
    %v1707 = vadd.f32 %v1695, %v1705
    %1708 = vrot.lane.b32.xlu0 %v25, 15
    %v1709 = vpop.permute.xlu0 %1708
    %1710 = vrot.lane.b32.xlu0 %v1594, 15
    %v1711 = vpop.permute.xlu0 %1710
    %v1712 = vsel %vm288, %v1709, %v1711
    %v1713 = vsel %vm288, %v1711, %v1709
    %v1714 = vmul.f32 %v1713, %v294
    %v1715 = vmul.f32 %v1712, %v298
    %v1716 = vlaneseq
    %v1717 = vshrl.u32 %v1716, 7
    %v1718 = vsub.s32 0, %v1717
    %v1719 = vrot.slane %v1714, %v1718
    %v1720 = vlaneseq
    %v1721 = vshrl.u32 %v1720, 7
    %v1722 = vsub.s32 0, %v1721
    %v1723 = vrot.slane %v1715, %v1722
    %v1724 = vmul.f32 %v1719, %v312
    %v1725 = vmul.f32 %v1723, %v312
    %v1726 = vadd.f32 %v1706, %v1724
    %v1727 = vadd.f32 %v1707, %v1725
    %v1728 = vlaneseq
    %v1729 = vshrl.u32 %v1728, 7
    %v1730 = vsub.s32 1, %v1729
    %v1731 = vrot.slane %v1714, %v1730
    %v1732 = vlaneseq
    %v1733 = vshrl.u32 %v1732, 7
    %v1734 = vsub.s32 1, %v1733
    %v1735 = vrot.slane %v1715, %v1734
    %v1736 = vmul.f32 %v1731, %v329
    %v1737 = vmul.f32 %v1735, %v329
    %v1738 = vadd.f32 %v1726, %v1736
    %v1739 = vadd.f32 %v1727, %v1737
    %v1740 = vlaneseq
    %v1741 = vshrl.u32 %v1740, 7
    %v1742 = vsub.s32 2, %v1741
    %v1743 = vrot.slane %v1714, %v1742
    %v1744 = vlaneseq
    %v1745 = vshrl.u32 %v1744, 7
    %v1746 = vsub.s32 2, %v1745
    %v1747 = vrot.slane %v1715, %v1746
    %v1748 = vmul.f32 %v1743, %v346
    %v1749 = vmul.f32 %v1747, %v346
    %v1750 = vadd.f32 %v1738, %v1748
    %v1751 = vadd.f32 %v1739, %v1749
    %v1752 = vlaneseq
    %v1753 = vshrl.u32 %v1752, 7
    %v1754 = vsub.s32 3, %v1753
    %v1755 = vrot.slane %v1714, %v1754
    %v1756 = vlaneseq
    %v1757 = vshrl.u32 %v1756, 7
    %v1758 = vsub.s32 3, %v1757
    %v1759 = vrot.slane %v1715, %v1758
    %v1760 = vmul.f32 %v1755, %v363
    %v1761 = vmul.f32 %v1759, %v363
    %v1762 = vadd.f32 %v1750, %v1760
    %v1763 = vadd.f32 %v1751, %v1761
    %1764 = vrot.lane.b32.xlu0 %v25, 1
    %v1765 = vpop.permute.xlu0 %1764
    %1766 = vrot.lane.b32.xlu0 %v1594, 1
    %v1767 = vpop.permute.xlu0 %1766
    %v1768 = vsel %vm373, %v1765, %v1767
    %v1769 = vsel %vm373, %v1767, %v1765
    %v1770 = vmul.f32 %v1769, %v379
    %v1771 = vmul.f32 %v1768, %v383
    %v1772 = vlaneseq
    %v1773 = vshrl.u32 %v1772, 7
    %v1774 = vsub.s32 0, %v1773
    %v1775 = vrot.slane %v1770, %v1774
    %v1776 = vlaneseq
    %v1777 = vshrl.u32 %v1776, 7
    %v1778 = vsub.s32 0, %v1777
    %v1779 = vrot.slane %v1771, %v1778
    %v1780 = vmul.f32 %v1775, %v397
    %v1781 = vmul.f32 %v1779, %v397
    %v1782 = vadd.f32 %v1762, %v1780
    %v1783 = vadd.f32 %v1763, %v1781
    %v1784 = vlaneseq
    %v1785 = vshrl.u32 %v1784, 7
    %v1786 = vsub.s32 1, %v1785
    %v1787 = vrot.slane %v1770, %v1786
    %v1788 = vlaneseq
    %v1789 = vshrl.u32 %v1788, 7
    %v1790 = vsub.s32 1, %v1789
    %v1791 = vrot.slane %v1771, %v1790
    %v1792 = vmul.f32 %v1787, %v414
    %v1793 = vmul.f32 %v1791, %v414
    %v1794 = vadd.f32 %v1782, %v1792
    %v1795 = vadd.f32 %v1783, %v1793
    %v1796 = vlaneseq
    %v1797 = vshrl.u32 %v1796, 7
    %v1798 = vsub.s32 2, %v1797
    %v1799 = vrot.slane %v1770, %v1798
    %v1800 = vlaneseq
    %v1801 = vshrl.u32 %v1800, 7
    %v1802 = vsub.s32 2, %v1801
    %v1803 = vrot.slane %v1771, %v1802
    %v1804 = vmul.f32 %v1799, %v431
    %v1805 = vmul.f32 %v1803, %v431
    %v1806 = vadd.f32 %v1794, %v1804
    %v1807 = vadd.f32 %v1795, %v1805
    %v1808 = vlaneseq
    %v1809 = vshrl.u32 %v1808, 7
    %v1810 = vsub.s32 3, %v1809
    %v1811 = vrot.slane %v1770, %v1810
    %v1812 = vlaneseq
    %v1813 = vshrl.u32 %v1812, 7
    %v1814 = vsub.s32 3, %v1813
    %v1815 = vrot.slane %v1771, %v1814
    %v1816 = vmul.f32 %v1811, %v448
    %v1817 = vmul.f32 %v1815, %v448
    %v1818 = vadd.f32 %v1806, %v1816
    %v1819 = vadd.f32 %v1807, %v1817
    %v1820 = vlaneseq
    %v1821 = vshrl.u32 %v1820, 7
    %v1822 = vsub.s32 0, %v1821
    %v1823 = vrot.slane %v25, %v1822
    %v1824 = vlaneseq
    %v1825 = vshrl.u32 %v1824, 7
    %v1826 = vsub.s32 4, %v1825
    %v1827 = vrot.slane %v25, %v1826
    %v1830 = vlaneseq
    %v1831 = vshrl.u32 %v1830, 7
    %v1832 = vsub.s32 0, %v1831
    %v1833 = vrot.slane %v1823, %v1832
    %v1834 = vlaneseq
    %v1835 = vshrl.u32 %v1834, 7
    %v1836 = vsub.s32 0, %v1835
    %v1837 = vrot.slane %v1827, %v1836
    %v1838 = vmul.f32 %v1833, %v475
    %v1839 = vmul.f32 %v1837, %v475
    %v1840 = vadd.f32 %v1818, %v1838
    %v1841 = vadd.f32 %v1819, %v1839
    %v1842 = vlaneseq
    %v1843 = vshrl.u32 %v1842, 7
    %v1844 = vsub.s32 1, %v1843
    %v1845 = vrot.slane %v25, %v1844
    %v1846 = vlaneseq
    %v1847 = vshrl.u32 %v1846, 7
    %v1848 = vsub.s32 5, %v1847
    %v1849 = vrot.slane %v25, %v1848
    %v1852 = vlaneseq
    %v1853 = vshrl.u32 %v1852, 7
    %v1854 = vsub.s32 1, %v1853
    %v1855 = vrot.slane %v1845, %v1854
    %v1856 = vlaneseq
    %v1857 = vshrl.u32 %v1856, 7
    %v1858 = vsub.s32 1, %v1857
    %v1859 = vrot.slane %v1849, %v1858
    %v1860 = vmul.f32 %v1855, %v502
    %v1861 = vmul.f32 %v1859, %v502
    %v1862 = vadd.f32 %v1840, %v1860
    %v1863 = vadd.f32 %v1841, %v1861
    %v1864 = vlaneseq
    %v1865 = vshrl.u32 %v1864, 7
    %v1866 = vsub.s32 2, %v1865
    %v1867 = vrot.slane %v25, %v1866
    %v1868 = vlaneseq
    %v1869 = vshrl.u32 %v1868, 7
    %v1870 = vsub.s32 6, %v1869
    %v1871 = vrot.slane %v25, %v1870
    %v1874 = vlaneseq
    %v1875 = vshrl.u32 %v1874, 7
    %v1876 = vsub.s32 2, %v1875
    %v1877 = vrot.slane %v1867, %v1876
    %v1878 = vlaneseq
    %v1879 = vshrl.u32 %v1878, 7
    %v1880 = vsub.s32 2, %v1879
    %v1881 = vrot.slane %v1871, %v1880
    %v1882 = vmul.f32 %v1877, %v529
    %v1883 = vmul.f32 %v1881, %v529
    %v1884 = vadd.f32 %v1862, %v1882
    %v1885 = vadd.f32 %v1863, %v1883
    %v1886 = vlaneseq
    %v1887 = vshrl.u32 %v1886, 7
    %v1888 = vsub.s32 3, %v1887
    %v1889 = vrot.slane %v25, %v1888
    %v1890 = vlaneseq
    %v1891 = vshrl.u32 %v1890, 7
    %v1892 = vsub.s32 7, %v1891
    %v1893 = vrot.slane %v25, %v1892
    %v1896 = vlaneseq
    %v1897 = vshrl.u32 %v1896, 7
    %v1898 = vsub.s32 3, %v1897
    %v1899 = vrot.slane %v1889, %v1898
    %v1900 = vlaneseq
    %v1901 = vshrl.u32 %v1900, 7
    %v1902 = vsub.s32 3, %v1901
    %v1903 = vrot.slane %v1893, %v1902
    %v1904 = vmul.f32 %v1899, %v556
    %v1905 = vmul.f32 %v1903, %v556
    %v1906 = vadd.f32 %v1884, %v1904
    %v1907 = vadd.f32 %v1885, %v1905
    %1908 = vrot.lane.b32.xlu0 %v25, 127
    %v1909 = vpop.permute.xlu0 %1908
    %1910 = vrot.lane.b32.xlu0 %v1594, 127
    %v1911 = vpop.permute.xlu0 %1910
    %v1912 = vsel %vm566, %v1909, %v1911
    %v1913 = vsel %vm566, %v1911, %v1909
    %v1914 = vmul.f32 %v1912, %v572
    %v1915 = vmul.f32 %v1913, %v576
    %v1916 = vlaneseq
    %v1917 = vshrl.u32 %v1916, 7
    %v1918 = vsub.s32 0, %v1917
    %v1919 = vrot.slane %v1914, %v1918
    %v1920 = vlaneseq
    %v1921 = vshrl.u32 %v1920, 7
    %v1922 = vsub.s32 0, %v1921
    %v1923 = vrot.slane %v1915, %v1922
    %v1924 = vmul.f32 %v1919, %v590
    %v1925 = vmul.f32 %v1923, %v590
    %v1926 = vadd.f32 %v1906, %v1924
    %v1927 = vadd.f32 %v1907, %v1925
    %v1928 = vlaneseq
    %v1929 = vshrl.u32 %v1928, 7
    %v1930 = vsub.s32 1, %v1929
    %v1931 = vrot.slane %v1914, %v1930
    %v1932 = vlaneseq
    %v1933 = vshrl.u32 %v1932, 7
    %v1934 = vsub.s32 1, %v1933
    %v1935 = vrot.slane %v1915, %v1934
    %v1936 = vmul.f32 %v1931, %v607
    %v1937 = vmul.f32 %v1935, %v607
    %v1938 = vadd.f32 %v1926, %v1936
    %v1939 = vadd.f32 %v1927, %v1937
    %v1940 = vlaneseq
    %v1941 = vshrl.u32 %v1940, 7
    %v1942 = vsub.s32 2, %v1941
    %v1943 = vrot.slane %v1914, %v1942
    %v1944 = vlaneseq
    %v1945 = vshrl.u32 %v1944, 7
    %v1946 = vsub.s32 2, %v1945
    %v1947 = vrot.slane %v1915, %v1946
    %v1948 = vmul.f32 %v1943, %v624
    %v1949 = vmul.f32 %v1947, %v624
    %v1950 = vadd.f32 %v1938, %v1948
    %v1951 = vadd.f32 %v1939, %v1949
    %v1952 = vlaneseq
    %v1953 = vshrl.u32 %v1952, 7
    %v1954 = vsub.s32 3, %v1953
    %v1955 = vrot.slane %v1914, %v1954
    %v1956 = vlaneseq
    %v1957 = vshrl.u32 %v1956, 7
    %v1958 = vsub.s32 3, %v1957
    %v1959 = vrot.slane %v1915, %v1958
    %v1960 = vmul.f32 %v1955, %v641
    %v1961 = vmul.f32 %v1959, %v641
    %v1962 = vadd.f32 %v1950, %v1960
    %v1963 = vadd.f32 %v1951, %v1961
    %1964 = vrot.lane.b32.xlu0 %v25, 113
    %v1965 = vpop.permute.xlu0 %1964
    %1966 = vrot.lane.b32.xlu0 %v1594, 113
    %v1967 = vpop.permute.xlu0 %1966
    %v1968 = vsel %vm651, %v1965, %v1967
    %v1969 = vsel %vm651, %v1967, %v1965
    %v1970 = vmul.f32 %v1968, %v657
    %v1971 = vmul.f32 %v1969, %v661
    %v1972 = vlaneseq
    %v1973 = vshrl.u32 %v1972, 7
    %v1974 = vsub.s32 0, %v1973
    %v1975 = vrot.slane %v1970, %v1974
    %v1976 = vlaneseq
    %v1977 = vshrl.u32 %v1976, 7
    %v1978 = vsub.s32 0, %v1977
    %v1979 = vrot.slane %v1971, %v1978
    %v1980 = vmul.f32 %v1975, %v675
    %v1981 = vmul.f32 %v1979, %v675
    %v1982 = vadd.f32 %v1962, %v1980
    %v1983 = vadd.f32 %v1963, %v1981
    %v1984 = vlaneseq
    %v1985 = vshrl.u32 %v1984, 7
    %v1986 = vsub.s32 1, %v1985
    %v1987 = vrot.slane %v1970, %v1986
    %v1988 = vlaneseq
    %v1989 = vshrl.u32 %v1988, 7
    %v1990 = vsub.s32 1, %v1989
    %v1991 = vrot.slane %v1971, %v1990
    %v1992 = vmul.f32 %v1987, %v692
    %v1993 = vmul.f32 %v1991, %v692
    %v1994 = vadd.f32 %v1982, %v1992
    %v1995 = vadd.f32 %v1983, %v1993
    %v1996 = vlaneseq
    %v1997 = vshrl.u32 %v1996, 7
    %v1998 = vsub.s32 2, %v1997
    %v1999 = vrot.slane %v1970, %v1998
    %v2000 = vlaneseq
    %v2001 = vshrl.u32 %v2000, 7
    %v2002 = vsub.s32 2, %v2001
    %v2003 = vrot.slane %v1971, %v2002
    %v2004 = vmul.f32 %v1999, %v709
    %v2005 = vmul.f32 %v2003, %v709
    %v2006 = vadd.f32 %v1994, %v2004
    %v2007 = vadd.f32 %v1995, %v2005
    %v2008 = vlaneseq
    %v2009 = vshrl.u32 %v2008, 7
    %v2010 = vsub.s32 3, %v2009
    %v2011 = vrot.slane %v1970, %v2010
    %v2012 = vlaneseq
    %v2013 = vshrl.u32 %v2012, 7
    %v2014 = vsub.s32 3, %v2013
    %v2015 = vrot.slane %v1971, %v2014
    %v2016 = vmul.f32 %v2011, %v726
    %v2017 = vmul.f32 %v2015, %v726
    %v2018 = vadd.f32 %v2006, %v2016
    %v2019 = vadd.f32 %v2007, %v2017
    %2020 = vrot.lane.b32.xlu0 %v25, 112
    %v2021 = vpop.permute.xlu0 %2020
    %2022 = vrot.lane.b32.xlu0 %v1594, 112
    %v2023 = vpop.permute.xlu0 %2022
    %v2024 = vsel %vm736, %v2021, %v2023
    %v2025 = vsel %vm736, %v2023, %v2021
    %v2026 = vmul.f32 %v2024, %v742
    %v2027 = vmul.f32 %v2025, %v746
    %v2028 = vlaneseq
    %v2029 = vshrl.u32 %v2028, 7
    %v2030 = vsub.s32 0, %v2029
    %v2031 = vrot.slane %v2026, %v2030
    %v2032 = vlaneseq
    %v2033 = vshrl.u32 %v2032, 7
    %v2034 = vsub.s32 0, %v2033
    %v2035 = vrot.slane %v2027, %v2034
    %v2036 = vmul.f32 %v2031, %v760
    %v2037 = vmul.f32 %v2035, %v760
    %v2038 = vadd.f32 %v2018, %v2036
    %v2039 = vadd.f32 %v2019, %v2037
    %v2040 = vlaneseq
    %v2041 = vshrl.u32 %v2040, 7
    %v2042 = vsub.s32 1, %v2041
    %v2043 = vrot.slane %v2026, %v2042
    %v2044 = vlaneseq
    %v2045 = vshrl.u32 %v2044, 7
    %v2046 = vsub.s32 1, %v2045
    %v2047 = vrot.slane %v2027, %v2046
    %v2048 = vmul.f32 %v2043, %v777
    %v2049 = vmul.f32 %v2047, %v777
    %v2050 = vadd.f32 %v2038, %v2048
    %v2051 = vadd.f32 %v2039, %v2049
    %v2052 = vlaneseq
    %v2053 = vshrl.u32 %v2052, 7
    %v2054 = vsub.s32 2, %v2053
    %v2055 = vrot.slane %v2026, %v2054
    %v2056 = vlaneseq
    %v2057 = vshrl.u32 %v2056, 7
    %v2058 = vsub.s32 2, %v2057
    %v2059 = vrot.slane %v2027, %v2058
    %v2060 = vmul.f32 %v2055, %v794
    %v2061 = vmul.f32 %v2059, %v794
    %v2062 = vadd.f32 %v2050, %v2060
    %v2063 = vadd.f32 %v2051, %v2061
    %v2064 = vlaneseq
    %v2065 = vshrl.u32 %v2064, 7
    %v2066 = vsub.s32 3, %v2065
    %v2067 = vrot.slane %v2026, %v2066
    %v2068 = vlaneseq
    %v2069 = vshrl.u32 %v2068, 7
    %v2070 = vsub.s32 3, %v2069
    %v2071 = vrot.slane %v2027, %v2070
    %v2072 = vmul.f32 %v2067, %v811
    %v2073 = vmul.f32 %v2071, %v811
    %v2074 = vadd.f32 %v2062, %v2072
    %v2075 = vadd.f32 %v2063, %v2073
    %2076 = vrot.lane.b32.xlu0 %v25, 111
    %v2077 = vpop.permute.xlu0 %2076
    %2078 = vrot.lane.b32.xlu0 %v1594, 111
    %v2079 = vpop.permute.xlu0 %2078
    %v2080 = vsel %vm821, %v2077, %v2079
    %v2081 = vsel %vm821, %v2079, %v2077
    %v2082 = vmul.f32 %v2080, %v827
    %v2083 = vmul.f32 %v2081, %v831
    %v2084 = vlaneseq
    %v2085 = vshrl.u32 %v2084, 7
    %v2086 = vsub.s32 0, %v2085
    %v2087 = vrot.slane %v2082, %v2086
    %v2088 = vlaneseq
    %v2089 = vshrl.u32 %v2088, 7
    %v2090 = vsub.s32 0, %v2089
    %v2091 = vrot.slane %v2083, %v2090
    %v2092 = vmul.f32 %v2087, %v845
    %v2093 = vmul.f32 %v2091, %v845
    %v2094 = vadd.f32 %v2074, %v2092
    %v2095 = vadd.f32 %v2075, %v2093
    %v2096 = vlaneseq
    %v2097 = vshrl.u32 %v2096, 7
    %v2098 = vsub.s32 1, %v2097
    %v2099 = vrot.slane %v2082, %v2098
    %v2100 = vlaneseq
    %v2101 = vshrl.u32 %v2100, 7
    %v2102 = vsub.s32 1, %v2101
    %v2103 = vrot.slane %v2083, %v2102
    %v2104 = vmul.f32 %v2099, %v862
    %v2105 = vmul.f32 %v2103, %v862
    %v2106 = vadd.f32 %v2094, %v2104
    %v2107 = vadd.f32 %v2095, %v2105
    %v2108 = vlaneseq
    %v2109 = vshrl.u32 %v2108, 7
    %v2110 = vsub.s32 2, %v2109
    %v2111 = vrot.slane %v2082, %v2110
    %v2112 = vlaneseq
    %v2113 = vshrl.u32 %v2112, 7
    %v2114 = vsub.s32 2, %v2113
    %v2115 = vrot.slane %v2083, %v2114
    %v2116 = vmul.f32 %v2111, %v879
    %v2117 = vmul.f32 %v2115, %v879
    %v2118 = vadd.f32 %v2106, %v2116
    %v2119 = vadd.f32 %v2107, %v2117
    %v2120 = vlaneseq
    %v2121 = vshrl.u32 %v2120, 7
    %v2122 = vsub.s32 3, %v2121
    %v2123 = vrot.slane %v2082, %v2122
    %v2124 = vlaneseq
    %v2125 = vshrl.u32 %v2124, 7
    %v2126 = vsub.s32 3, %v2125
    %v2127 = vrot.slane %v2083, %v2126
    %v2128 = vmul.f32 %v2123, %v896
    %v2129 = vmul.f32 %v2127, %v896
    %v2130 = vadd.f32 %v2118, %v2128
    %v2131 = vadd.f32 %v2119, %v2129
    %v2132 = vmax.f32 %v2130, 0.0
    %v2133 = vmax.f32 %v2131, 0.0
    %v2134 = vmin.f32 %v2132, 20.0
    %v2135 = vmin.f32 %v2133, 20.0
    %2136 = vrot.lane.b32.xlu0 %v2134, 17
    %v2137 = vpop.permute.xlu0 %2136
    %2138 = vrot.lane.b32.xlu0 %v2135, 17
    %v2139 = vpop.permute.xlu0 %2138
    %v2140 = vsel %vm118, %v2137, %v2139
    %v2141 = vsel %vm118, %v2139, %v2137
    %v2142 = vmul.f32 %v2141, %v124
    %v2143 = vmul.f32 %v2140, %v128
    %v2144 = vlaneseq
    %v2145 = vshrl.u32 %v2144, 7
    %v2146 = vsub.s32 0, %v2145
    %v2147 = vrot.slane %v2142, %v2146
    %v2148 = vlaneseq
    %v2149 = vshrl.u32 %v2148, 7
    %v2150 = vsub.s32 0, %v2149
    %v2151 = vrot.slane %v2143, %v2150
    %v2152 = vmul.f32 %v2147, %v930
    %v2153 = vmul.f32 %v2151, %v930
    %v2154 = vadd.f32 %v909, %v2152
    %v2155 = vadd.f32 %v909, %v2153
    %v2156 = vlaneseq
    %v2157 = vshrl.u32 %v2156, 7
    %v2158 = vsub.s32 1, %v2157
    %v2159 = vrot.slane %v2142, %v2158
    %v2160 = vlaneseq
    %v2161 = vshrl.u32 %v2160, 7
    %v2162 = vsub.s32 1, %v2161
    %v2163 = vrot.slane %v2143, %v2162
    %v2164 = vmul.f32 %v2159, %v947
    %v2165 = vmul.f32 %v2163, %v947
    %v2166 = vadd.f32 %v2154, %v2164
    %v2167 = vadd.f32 %v2155, %v2165
    %v2168 = vlaneseq
    %v2169 = vshrl.u32 %v2168, 7
    %v2170 = vsub.s32 2, %v2169
    %v2171 = vrot.slane %v2142, %v2170
    %v2172 = vlaneseq
    %v2173 = vshrl.u32 %v2172, 7
    %v2174 = vsub.s32 2, %v2173
    %v2175 = vrot.slane %v2143, %v2174
    %v2176 = vmul.f32 %v2171, %v964
    %v2177 = vmul.f32 %v2175, %v964
    %v2178 = vadd.f32 %v2166, %v2176
    %v2179 = vadd.f32 %v2167, %v2177
    %v2180 = vlaneseq
    %v2181 = vshrl.u32 %v2180, 7
    %v2182 = vsub.s32 3, %v2181
    %v2183 = vrot.slane %v2142, %v2182
    %v2184 = vlaneseq
    %v2185 = vshrl.u32 %v2184, 7
    %v2186 = vsub.s32 3, %v2185
    %v2187 = vrot.slane %v2143, %v2186
    %v2188 = vmul.f32 %v2183, %v981
    %v2189 = vmul.f32 %v2187, %v981
    %v2190 = vadd.f32 %v2178, %v2188
    %v2191 = vadd.f32 %v2179, %v2189
    %2192 = vrot.lane.b32.xlu0 %v2134, 16
    %v2193 = vpop.permute.xlu0 %2192
    %2194 = vrot.lane.b32.xlu0 %v2135, 16
    %v2195 = vpop.permute.xlu0 %2194
    %v2196 = vsel %vm203, %v2193, %v2195
    %v2197 = vsel %vm203, %v2195, %v2193
    %v2198 = vmul.f32 %v2197, %v209
    %v2199 = vmul.f32 %v2196, %v213
    %v2200 = vlaneseq
    %v2201 = vshrl.u32 %v2200, 7
    %v2202 = vsub.s32 0, %v2201
    %v2203 = vrot.slane %v2198, %v2202
    %v2204 = vlaneseq
    %v2205 = vshrl.u32 %v2204, 7
    %v2206 = vsub.s32 0, %v2205
    %v2207 = vrot.slane %v2199, %v2206
    %v2208 = vmul.f32 %v2203, %v1006
    %v2209 = vmul.f32 %v2207, %v1006
    %v2210 = vadd.f32 %v2190, %v2208
    %v2211 = vadd.f32 %v2191, %v2209
    %v2212 = vlaneseq
    %v2213 = vshrl.u32 %v2212, 7
    %v2214 = vsub.s32 1, %v2213
    %v2215 = vrot.slane %v2198, %v2214
    %v2216 = vlaneseq
    %v2217 = vshrl.u32 %v2216, 7
    %v2218 = vsub.s32 1, %v2217
    %v2219 = vrot.slane %v2199, %v2218
    %v2220 = vmul.f32 %v2215, %v1023
    %v2221 = vmul.f32 %v2219, %v1023
    %v2222 = vadd.f32 %v2210, %v2220
    %v2223 = vadd.f32 %v2211, %v2221
    %v2224 = vlaneseq
    %v2225 = vshrl.u32 %v2224, 7
    %v2226 = vsub.s32 2, %v2225
    %v2227 = vrot.slane %v2198, %v2226
    %v2228 = vlaneseq
    %v2229 = vshrl.u32 %v2228, 7
    %v2230 = vsub.s32 2, %v2229
    %v2231 = vrot.slane %v2199, %v2230
    %v2232 = vmul.f32 %v2227, %v1040
    %v2233 = vmul.f32 %v2231, %v1040
    %v2234 = vadd.f32 %v2222, %v2232
    %v2235 = vadd.f32 %v2223, %v2233
    %v2236 = vlaneseq
    %v2237 = vshrl.u32 %v2236, 7
    %v2238 = vsub.s32 3, %v2237
    %v2239 = vrot.slane %v2198, %v2238
    %v2240 = vlaneseq
    %v2241 = vshrl.u32 %v2240, 7
    %v2242 = vsub.s32 3, %v2241
    %v2243 = vrot.slane %v2199, %v2242
    %v2244 = vmul.f32 %v2239, %v1057
    %v2245 = vmul.f32 %v2243, %v1057
    %v2246 = vadd.f32 %v2234, %v2244
    %v2247 = vadd.f32 %v2235, %v2245
    %2248 = vrot.lane.b32.xlu0 %v2134, 15
    %v2249 = vpop.permute.xlu0 %2248
    %2250 = vrot.lane.b32.xlu0 %v2135, 15
    %v2251 = vpop.permute.xlu0 %2250
    %v2252 = vsel %vm288, %v2249, %v2251
    %v2253 = vsel %vm288, %v2251, %v2249
    %v2254 = vmul.f32 %v2253, %v294
    %v2255 = vmul.f32 %v2252, %v298
    %v2256 = vlaneseq
    %v2257 = vshrl.u32 %v2256, 7
    %v2258 = vsub.s32 0, %v2257
    %v2259 = vrot.slane %v2254, %v2258
    %v2260 = vlaneseq
    %v2261 = vshrl.u32 %v2260, 7
    %v2262 = vsub.s32 0, %v2261
    %v2263 = vrot.slane %v2255, %v2262
    %v2264 = vmul.f32 %v2259, %v1082
    %v2265 = vmul.f32 %v2263, %v1082
    %v2266 = vadd.f32 %v2246, %v2264
    %v2267 = vadd.f32 %v2247, %v2265
    %v2268 = vlaneseq
    %v2269 = vshrl.u32 %v2268, 7
    %v2270 = vsub.s32 1, %v2269
    %v2271 = vrot.slane %v2254, %v2270
    %v2272 = vlaneseq
    %v2273 = vshrl.u32 %v2272, 7
    %v2274 = vsub.s32 1, %v2273
    %v2275 = vrot.slane %v2255, %v2274
    %v2276 = vmul.f32 %v2271, %v1099
    %v2277 = vmul.f32 %v2275, %v1099
    %v2278 = vadd.f32 %v2266, %v2276
    %v2279 = vadd.f32 %v2267, %v2277
    %v2280 = vlaneseq
    %v2281 = vshrl.u32 %v2280, 7
    %v2282 = vsub.s32 2, %v2281
    %v2283 = vrot.slane %v2254, %v2282
    %v2284 = vlaneseq
    %v2285 = vshrl.u32 %v2284, 7
    %v2286 = vsub.s32 2, %v2285
    %v2287 = vrot.slane %v2255, %v2286
    %v2288 = vmul.f32 %v2283, %v1116
    %v2289 = vmul.f32 %v2287, %v1116
    %v2290 = vadd.f32 %v2278, %v2288
    %v2291 = vadd.f32 %v2279, %v2289
    %v2292 = vlaneseq
    %v2293 = vshrl.u32 %v2292, 7
    %v2294 = vsub.s32 3, %v2293
    %v2295 = vrot.slane %v2254, %v2294
    %v2296 = vlaneseq
    %v2297 = vshrl.u32 %v2296, 7
    %v2298 = vsub.s32 3, %v2297
    %v2299 = vrot.slane %v2255, %v2298
    %v2300 = vmul.f32 %v2295, %v1133
    %v2301 = vmul.f32 %v2299, %v1133
    %v2302 = vadd.f32 %v2290, %v2300
    %v2303 = vadd.f32 %v2291, %v2301
    %2304 = vrot.lane.b32.xlu0 %v2134, 1
    %v2305 = vpop.permute.xlu0 %2304
    %2306 = vrot.lane.b32.xlu0 %v2135, 1
    %v2307 = vpop.permute.xlu0 %2306
    %v2308 = vsel %vm373, %v2305, %v2307
    %v2309 = vsel %vm373, %v2307, %v2305
    %v2310 = vmul.f32 %v2309, %v379
    %v2311 = vmul.f32 %v2308, %v383
    %v2312 = vlaneseq
    %v2313 = vshrl.u32 %v2312, 7
    %v2314 = vsub.s32 0, %v2313
    %v2315 = vrot.slane %v2310, %v2314
    %v2316 = vlaneseq
    %v2317 = vshrl.u32 %v2316, 7
    %v2318 = vsub.s32 0, %v2317
    %v2319 = vrot.slane %v2311, %v2318
    %v2320 = vmul.f32 %v2315, %v1158
    %v2321 = vmul.f32 %v2319, %v1158
    %v2322 = vadd.f32 %v2302, %v2320
    %v2323 = vadd.f32 %v2303, %v2321
    %v2324 = vlaneseq
    %v2325 = vshrl.u32 %v2324, 7
    %v2326 = vsub.s32 1, %v2325
    %v2327 = vrot.slane %v2310, %v2326
    %v2328 = vlaneseq
    %v2329 = vshrl.u32 %v2328, 7
    %v2330 = vsub.s32 1, %v2329
    %v2331 = vrot.slane %v2311, %v2330
    %v2332 = vmul.f32 %v2327, %v1175
    %v2333 = vmul.f32 %v2331, %v1175
    %v2334 = vadd.f32 %v2322, %v2332
    %v2335 = vadd.f32 %v2323, %v2333
    %v2336 = vlaneseq
    %v2337 = vshrl.u32 %v2336, 7
    %v2338 = vsub.s32 2, %v2337
    %v2339 = vrot.slane %v2310, %v2338
    %v2340 = vlaneseq
    %v2341 = vshrl.u32 %v2340, 7
    %v2342 = vsub.s32 2, %v2341
    %v2343 = vrot.slane %v2311, %v2342
    %v2344 = vmul.f32 %v2339, %v1192
    %v2345 = vmul.f32 %v2343, %v1192
    %v2346 = vadd.f32 %v2334, %v2344
    %v2347 = vadd.f32 %v2335, %v2345
    %v2348 = vlaneseq
    %v2349 = vshrl.u32 %v2348, 7
    %v2350 = vsub.s32 3, %v2349
    %v2351 = vrot.slane %v2310, %v2350
    %v2352 = vlaneseq
    %v2353 = vshrl.u32 %v2352, 7
    %v2354 = vsub.s32 3, %v2353
    %v2355 = vrot.slane %v2311, %v2354
    %v2356 = vmul.f32 %v2351, %v1209
    %v2357 = vmul.f32 %v2355, %v1209
    %v2358 = vadd.f32 %v2346, %v2356
    %v2359 = vadd.f32 %v2347, %v2357
    %v2360 = vlaneseq
    %v2361 = vshrl.u32 %v2360, 7
    %v2362 = vsub.s32 0, %v2361
    %v2363 = vrot.slane %v2134, %v2362
    %v2364 = vlaneseq
    %v2365 = vshrl.u32 %v2364, 7
    %v2366 = vsub.s32 0, %v2365
    %v2367 = vrot.slane %v2135, %v2366
    %v2368 = vmul.f32 %v2363, %v1226
    %v2369 = vmul.f32 %v2367, %v1226
    %v2370 = vadd.f32 %v2358, %v2368
    %v2371 = vadd.f32 %v2359, %v2369
    %v2372 = vlaneseq
    %v2373 = vshrl.u32 %v2372, 7
    %v2374 = vsub.s32 1, %v2373
    %v2375 = vrot.slane %v2134, %v2374
    %v2376 = vlaneseq
    %v2377 = vshrl.u32 %v2376, 7
    %v2378 = vsub.s32 1, %v2377
    %v2379 = vrot.slane %v2135, %v2378
    %v2380 = vmul.f32 %v2375, %v1243
    %v2381 = vmul.f32 %v2379, %v1243
    %v2382 = vadd.f32 %v2370, %v2380
    %v2383 = vadd.f32 %v2371, %v2381
    %v2384 = vlaneseq
    %v2385 = vshrl.u32 %v2384, 7
    %v2386 = vsub.s32 2, %v2385
    %v2387 = vrot.slane %v2134, %v2386
    %v2388 = vlaneseq
    %v2389 = vshrl.u32 %v2388, 7
    %v2390 = vsub.s32 2, %v2389
    %v2391 = vrot.slane %v2135, %v2390
    %v2392 = vmul.f32 %v2387, %v1260
    %v2393 = vmul.f32 %v2391, %v1260
    %v2394 = vadd.f32 %v2382, %v2392
    %v2395 = vadd.f32 %v2383, %v2393
    %v2396 = vlaneseq
    %v2397 = vshrl.u32 %v2396, 7
    %v2398 = vsub.s32 3, %v2397
    %v2399 = vrot.slane %v2134, %v2398
    %v2400 = vlaneseq
    %v2401 = vshrl.u32 %v2400, 7
    %v2402 = vsub.s32 3, %v2401
    %v2403 = vrot.slane %v2135, %v2402
    %v2404 = vmul.f32 %v2399, %v1277
    %v2405 = vmul.f32 %v2403, %v1277
    %v2406 = vadd.f32 %v2394, %v2404
    %v2407 = vadd.f32 %v2395, %v2405
    %2408 = vrot.lane.b32.xlu0 %v2134, 127
    %v2409 = vpop.permute.xlu0 %2408
    %2410 = vrot.lane.b32.xlu0 %v2135, 127
    %v2411 = vpop.permute.xlu0 %2410
    %v2412 = vsel %vm566, %v2409, %v2411
    %v2413 = vsel %vm566, %v2411, %v2409
    %v2414 = vmul.f32 %v2412, %v572
    %v2415 = vmul.f32 %v2413, %v576
    %v2416 = vlaneseq
    %v2417 = vshrl.u32 %v2416, 7
    %v2418 = vsub.s32 0, %v2417
    %v2419 = vrot.slane %v2414, %v2418
    %v2420 = vlaneseq
    %v2421 = vshrl.u32 %v2420, 7
    %v2422 = vsub.s32 0, %v2421
    %v2423 = vrot.slane %v2415, %v2422
    %v2424 = vmul.f32 %v2419, %v1302
    %v2425 = vmul.f32 %v2423, %v1302
    %v2426 = vadd.f32 %v2406, %v2424
    %v2427 = vadd.f32 %v2407, %v2425
    %v2428 = vlaneseq
    %v2429 = vshrl.u32 %v2428, 7
    %v2430 = vsub.s32 1, %v2429
    %v2431 = vrot.slane %v2414, %v2430
    %v2432 = vlaneseq
    %v2433 = vshrl.u32 %v2432, 7
    %v2434 = vsub.s32 1, %v2433
    %v2435 = vrot.slane %v2415, %v2434
    %v2436 = vmul.f32 %v2431, %v1319
    %v2437 = vmul.f32 %v2435, %v1319
    %v2438 = vadd.f32 %v2426, %v2436
    %v2439 = vadd.f32 %v2427, %v2437
    %v2440 = vlaneseq
    %v2441 = vshrl.u32 %v2440, 7
    %v2442 = vsub.s32 2, %v2441
    %v2443 = vrot.slane %v2414, %v2442
    %v2444 = vlaneseq
    %v2445 = vshrl.u32 %v2444, 7
    %v2446 = vsub.s32 2, %v2445
    %v2447 = vrot.slane %v2415, %v2446
    %v2448 = vmul.f32 %v2443, %v1336
    %v2449 = vmul.f32 %v2447, %v1336
    %v2450 = vadd.f32 %v2438, %v2448
    %v2451 = vadd.f32 %v2439, %v2449
    %v2452 = vlaneseq
    %v2453 = vshrl.u32 %v2452, 7
    %v2454 = vsub.s32 3, %v2453
    %v2455 = vrot.slane %v2414, %v2454
    %v2456 = vlaneseq
    %v2457 = vshrl.u32 %v2456, 7
    %v2458 = vsub.s32 3, %v2457
    %v2459 = vrot.slane %v2415, %v2458
    %v2460 = vmul.f32 %v2455, %v1353
    %v2461 = vmul.f32 %v2459, %v1353
    %v2462 = vadd.f32 %v2450, %v2460
    %v2463 = vadd.f32 %v2451, %v2461
    %2464 = vrot.lane.b32.xlu0 %v2134, 113
    %v2465 = vpop.permute.xlu0 %2464
    %2466 = vrot.lane.b32.xlu0 %v2135, 113
    %v2467 = vpop.permute.xlu0 %2466
    %v2468 = vsel %vm651, %v2465, %v2467
    %v2469 = vsel %vm651, %v2467, %v2465
    %v2470 = vmul.f32 %v2468, %v657
    %v2471 = vmul.f32 %v2469, %v661
    %v2472 = vlaneseq
    %v2473 = vshrl.u32 %v2472, 7
    %v2474 = vsub.s32 0, %v2473
    %v2475 = vrot.slane %v2470, %v2474
    %v2476 = vlaneseq
    %v2477 = vshrl.u32 %v2476, 7
    %v2478 = vsub.s32 0, %v2477
    %v2479 = vrot.slane %v2471, %v2478
    %v2480 = vmul.f32 %v2475, %v1378
    %v2481 = vmul.f32 %v2479, %v1378
    %v2482 = vadd.f32 %v2462, %v2480
    %v2483 = vadd.f32 %v2463, %v2481
    %v2484 = vlaneseq
    %v2485 = vshrl.u32 %v2484, 7
    %v2486 = vsub.s32 1, %v2485
    %v2487 = vrot.slane %v2470, %v2486
    %v2488 = vlaneseq
    %v2489 = vshrl.u32 %v2488, 7
    %v2490 = vsub.s32 1, %v2489
    %v2491 = vrot.slane %v2471, %v2490
    %v2492 = vmul.f32 %v2487, %v1395
    %v2493 = vmul.f32 %v2491, %v1395
    %v2494 = vadd.f32 %v2482, %v2492
    %v2495 = vadd.f32 %v2483, %v2493
    %v2496 = vlaneseq
    %v2497 = vshrl.u32 %v2496, 7
    %v2498 = vsub.s32 2, %v2497
    %v2499 = vrot.slane %v2470, %v2498
    %v2500 = vlaneseq
    %v2501 = vshrl.u32 %v2500, 7
    %v2502 = vsub.s32 2, %v2501
    %v2503 = vrot.slane %v2471, %v2502
    %v2504 = vmul.f32 %v2499, %v1412
    %v2505 = vmul.f32 %v2503, %v1412
    %v2506 = vadd.f32 %v2494, %v2504
    %v2507 = vadd.f32 %v2495, %v2505
    %v2508 = vlaneseq
    %v2509 = vshrl.u32 %v2508, 7
    %v2510 = vsub.s32 3, %v2509
    %v2511 = vrot.slane %v2470, %v2510
    %v2512 = vlaneseq
    %v2513 = vshrl.u32 %v2512, 7
    %v2514 = vsub.s32 3, %v2513
    %v2515 = vrot.slane %v2471, %v2514
    %v2516 = vmul.f32 %v2511, %v1429
    %v2517 = vmul.f32 %v2515, %v1429
    %v2518 = vadd.f32 %v2506, %v2516
    %v2519 = vadd.f32 %v2507, %v2517
    %2520 = vrot.lane.b32.xlu0 %v2134, 112
    %v2521 = vpop.permute.xlu0 %2520
    %2522 = vrot.lane.b32.xlu0 %v2135, 112
    %v2523 = vpop.permute.xlu0 %2522
    %v2524 = vsel %vm736, %v2521, %v2523
    %v2525 = vsel %vm736, %v2523, %v2521
    %v2526 = vmul.f32 %v2524, %v742
    %v2527 = vmul.f32 %v2525, %v746
    %v2528 = vlaneseq
    %v2529 = vshrl.u32 %v2528, 7
    %v2530 = vsub.s32 0, %v2529
    %v2531 = vrot.slane %v2526, %v2530
    %v2532 = vlaneseq
    %v2533 = vshrl.u32 %v2532, 7
    %v2534 = vsub.s32 0, %v2533
    %v2535 = vrot.slane %v2527, %v2534
    %v2536 = vmul.f32 %v2531, %v1454
    %v2537 = vmul.f32 %v2535, %v1454
    %v2538 = vadd.f32 %v2518, %v2536
    %v2539 = vadd.f32 %v2519, %v2537
    %v2540 = vlaneseq
    %v2541 = vshrl.u32 %v2540, 7
    %v2542 = vsub.s32 1, %v2541
    %v2543 = vrot.slane %v2526, %v2542
    %v2544 = vlaneseq
    %v2545 = vshrl.u32 %v2544, 7
    %v2546 = vsub.s32 1, %v2545
    %v2547 = vrot.slane %v2527, %v2546
    %v2548 = vmul.f32 %v2543, %v1471
    %v2549 = vmul.f32 %v2547, %v1471
    %v2550 = vadd.f32 %v2538, %v2548
    %v2551 = vadd.f32 %v2539, %v2549
    %v2552 = vlaneseq
    %v2553 = vshrl.u32 %v2552, 7
    %v2554 = vsub.s32 2, %v2553
    %v2555 = vrot.slane %v2526, %v2554
    %v2556 = vlaneseq
    %v2557 = vshrl.u32 %v2556, 7
    %v2558 = vsub.s32 2, %v2557
    %v2559 = vrot.slane %v2527, %v2558
    %v2560 = vmul.f32 %v2555, %v1488
    %v2561 = vmul.f32 %v2559, %v1488
    %v2562 = vadd.f32 %v2550, %v2560
    %v2563 = vadd.f32 %v2551, %v2561
    %v2564 = vlaneseq
    %v2565 = vshrl.u32 %v2564, 7
    %v2566 = vsub.s32 3, %v2565
    %v2567 = vrot.slane %v2526, %v2566
    %v2568 = vlaneseq
    %v2569 = vshrl.u32 %v2568, 7
    %v2570 = vsub.s32 3, %v2569
    %v2571 = vrot.slane %v2527, %v2570
    %v2572 = vmul.f32 %v2567, %v1505
    %v2573 = vmul.f32 %v2571, %v1505
    %v2574 = vadd.f32 %v2562, %v2572
    %v2575 = vadd.f32 %v2563, %v2573
    %2576 = vrot.lane.b32.xlu0 %v2134, 111
    %v2577 = vpop.permute.xlu0 %2576
    %2578 = vrot.lane.b32.xlu0 %v2135, 111
    %v2579 = vpop.permute.xlu0 %2578
    %v2580 = vsel %vm821, %v2577, %v2579
    %v2581 = vsel %vm821, %v2579, %v2577
    %v2582 = vmul.f32 %v2580, %v827
    %v2583 = vmul.f32 %v2581, %v831
    %v2584 = vlaneseq
    %v2585 = vshrl.u32 %v2584, 7
    %v2586 = vsub.s32 0, %v2585
    %v2587 = vrot.slane %v2582, %v2586
    %v2588 = vlaneseq
    %v2589 = vshrl.u32 %v2588, 7
    %v2590 = vsub.s32 0, %v2589
    %v2591 = vrot.slane %v2583, %v2590
    %v2592 = vmul.f32 %v2587, %v1530
    %v2593 = vmul.f32 %v2591, %v1530
    %v2594 = vadd.f32 %v2574, %v2592
    %v2595 = vadd.f32 %v2575, %v2593
    %v2596 = vlaneseq
    %v2597 = vshrl.u32 %v2596, 7
    %v2598 = vsub.s32 1, %v2597
    %v2599 = vrot.slane %v2582, %v2598
    %v2600 = vlaneseq
    %v2601 = vshrl.u32 %v2600, 7
    %v2602 = vsub.s32 1, %v2601
    %v2603 = vrot.slane %v2583, %v2602
    %v2604 = vmul.f32 %v2599, %v1547
    %v2605 = vmul.f32 %v2603, %v1547
    %v2606 = vadd.f32 %v2594, %v2604
    %v2607 = vadd.f32 %v2595, %v2605
    %v2608 = vlaneseq
    %v2609 = vshrl.u32 %v2608, 7
    %v2610 = vsub.s32 2, %v2609
    %v2611 = vrot.slane %v2582, %v2610
    %v2612 = vlaneseq
    %v2613 = vshrl.u32 %v2612, 7
    %v2614 = vsub.s32 2, %v2613
    %v2615 = vrot.slane %v2583, %v2614
    %v2616 = vmul.f32 %v2611, %v1564
    %v2617 = vmul.f32 %v2615, %v1564
    %v2618 = vadd.f32 %v2606, %v2616
    %v2619 = vadd.f32 %v2607, %v2617
    %v2620 = vlaneseq
    %v2621 = vshrl.u32 %v2620, 7
    %v2622 = vsub.s32 3, %v2621
    %v2623 = vrot.slane %v2582, %v2622
    %v2624 = vlaneseq
    %v2625 = vshrl.u32 %v2624, 7
    %v2626 = vsub.s32 3, %v2625
    %v2627 = vrot.slane %v2583, %v2626
    %v2628 = vmul.f32 %v2623, %v1581
    %v2629 = vmul.f32 %v2627, %v1581
    %v2630 = vadd.f32 %v2618, %v2628
    %v2631 = vadd.f32 %v2619, %v2629
    %v2632 = vadd.f32 %v2630, %v25
    %v2633 = vadd.f32 %v2631, %v1594
    %v2634 = vmax.f32 %v2632, 0.0
    %v2635 = vmax.f32 %v2633, 0.0
    %v2636 = vmin.f32 %v2634, 20.0
    %v2637 = vmin.f32 %v2635, 20.0
    %v2642 = vcombine.low %v1591, %v1592
    %v2643 = vcombine.low %v2636, %v2637
    %2646 = vst [vmem:[#allocation2] sm:$0xff] %v2642
    %2647 = vst [vmem:[#allocation2 + $0x8] sm:$0xff] %v2643
    // Predicated region
    $region26: #{tpu_custom_call.1} parent=1 // pred_check
      _
    $region27: #{tpu_custom_call.1} parent=1 // pred_check_branch
      %2649 = sbr.rel (0) target = $region29
    $region28: #{tpu_custom_call.1} parent=1 // pred_region
      %s2651 = ssub.s32 256, 256
      %2652 = vsyncadd [#allocation3], %s2651
      %s2653 = sshll.u32 [#allocation2], 4
      %s2654 = int_to_ptr.vmem [resolvable:$true] %s2653
      %2659 = dma.vmem_to_hbm [thread:$0]  %s2654, 256, %s6, [#allocation3], 128, 128, 8
    $region29: #{tpu_custom_call.1} parent=1 // pred_fallthru
      _
    // Predicated region
    $region30: #{tpu_custom_call.1} parent=1 // pred_check
      _
    $region31: #{tpu_custom_call.1} parent=1 // pred_check_branch
      %2661 = sbr.rel (0) target = $region33
    $region32: #{tpu_custom_call.1} parent=1 // pred_region
      %2662 = dma.done [#allocation3], 256
    $region33: #{tpu_custom_call.1} parent=1 // pred_fallthru
      _
    %2663 = vsyncpa [#allocation3], 1

</llo_original>
